<compile_context>
chip_gen: v6e
topology: v6e:2x2x1
jax: 0.10.0
libtpu: 0.0.40
codegen_flags: <defaults>
</compile_context>

<pallas_src>
import functools

import jax
import jax.numpy as jnp
from jax import lax
from jax.experimental import pallas as pl
from jax.experimental.pallas import tpu as pltpu


OUT_LANES = 128   # lane-padded output slab: [:, :D] = embed, [:, D:D+K] = logits


# ----------------------------------------------------------------------------
# Single fused kernel: embedding -> 4 x ResBlock -> maxpool -> MLP head
# ----------------------------------------------------------------------------
def _cluster_kernel(ids_ref, colv_ref, emb_ref, convw_ref, convb_ref, demb_ref,
                    w1_ref, b1_ref, w2_ref, b2_ref, gamma_ref, beta_ref,
                    w3_ref, b3_ref, out_ref, *, B, T, C):
    BC = B * C
    E = demb_ref.shape[1]

    # ---- embedding lookup as a one-hot matmul, directly into packed layout --
    #   onehot[t, b*vocab + v] = (text[b, t] == v)
    #   emb_ref is the block-diagonal table [B*vocab, B*C]
    onehot = (ids_ref[...] == colv_ref[...]).astype(jnp.float32)     # [T, B*V]
    h = jnp.dot(onehot, emb_ref[...],
                preferred_element_type=jnp.float32)                  # [T, B*C]

    # ---- 4 x ResBlock on the lane-packed [T, B*C] layout --------------------
    t_row = lax.broadcasted_iota(jnp.int32, (T, BC), 0)
    first_t = t_row == 0          # t == 0     (left pad)
    last_t = t_row == (T - 1)     # t == T - 1 (right pad)

    def conv3(x, layer):
        # Conv1d(C, C, kernel_size=3, padding=1), channels-last, batch packed
        # into lanes; three block-diagonal [B*C, B*C] taps, summed.
        xm1 = jnp.where(first_t, 0.0, pltpu.roll(x, shift=1, axis=0))      # x[t-1]
        xp1 = jnp.where(last_t, 0.0, pltpu.roll(x, shift=T - 1, axis=0))   # x[t+1]
        return (jnp.dot(xm1, convw_ref[layer, 0],
                        preferred_element_type=jnp.float32)
                + jnp.dot(x, convw_ref[layer, 1],
                          preferred_element_type=jnp.float32)
                + jnp.dot(xp1, convw_ref[layer, 2],
                          preferred_element_type=jnp.float32)
                + convb_ref[layer])

    for blk in range(4):              # 4 ResBlocks, fully unrolled
        y = jnp.maximum(conv3(h, 2 * blk), 0.0)
        y = conv3(y, 2 * blk + 1)
        h = jnp.maximum(y + h, 0.0)

    # ---- AdaptiveMaxPool1d(1): max over time = one sublane reduce -----------
    pooled_row = jnp.max(h, axis=0, keepdims=True)                   # [1, B*C]
    # un-pack lanes -> [B, C] for the head (tiny one-off relayout)
    pooled = jnp.concatenate(
        [pooled_row[:, b * C:(b + 1) * C] for b in range(B)], axis=0)  # [B, C]

    # ---- MLP head; the latent concat is folded into a split matmul ----------
    # NOTE: matmul operands kept in f32 (numerics parity, v5e VPU has no bf16);
    # bf16 operands only pay off once B/T scale.
    h1 = jnp.maximum(
        jnp.dot(pooled, w1_ref[pl.ds(0, C), :],
                preferred_element_type=jnp.float32)
        + jnp.dot(demb_ref[...], w1_ref[pl.ds(C, E), :],
                  preferred_element_type=jnp.float32)
        + b1_ref[...], 0.0)                                          # [B, 256]

    e = (jnp.dot(h1, w2_ref[...], preferred_element_type=jnp.float32)
         + b2_ref[...])                                              # [B, D]

    # BatchNorm1d, training mode: per-feature batch mean / biased variance.
    mean = jnp.mean(e, axis=0, keepdims=True)
    var = jnp.mean((e - mean) ** 2, axis=0, keepdims=True)
    e_bn = (e - mean) * lax.rsqrt(var + 1e-5) * gamma_ref[...] + beta_ref[...]

    embed = jnp.maximum(e_bn, 0.0)                                   # [B, D]
    logits = (jnp.dot(embed, w3_ref[...], preferred_element_type=jnp.float32)
              + b3_ref[...])                                         # [B, K]

    # ---- single lane-dense writeback ----------------------------------------
    D = embed.shape[1]
    K = logits.shape[1]
    parts = [embed, logits]
    pad = OUT_LANES - D - K
    if pad > 0:
        parts.append(jnp.zeros((B, pad), jnp.float32))
    out_ref[...] = jnp.concatenate(parts, axis=1)


# ----------------------------------------------------------------------------
# Wrapper: one pallas_call for the whole forward
# ----------------------------------------------------------------------------
def cluster_forward(text, d_embedding, params):
    B, T = text.shape
    vocab, C = params["emb_table"].shape
    E = d_embedding.shape[1]
    D = params["w2"].shape[1]
    K = params["w3"].shape[1]
    assert D + K <= OUT_LANES, "embed+logits must fit the 128-lane output slab"

    BC = B * C
    eye_b = jnp.eye(B, dtype=jnp.float32)

    # Lane-packing of parameters (plain XLA ops, fused into the surrounding jit).
    emb_blk = jnp.kron(eye_b, params["emb_table"])                   # [B*V, B*C]
    convw_blk = jax.vmap(jax.vmap(lambda w: jnp.kron(eye_b, w)))(
        params["conv_w"])                                            # [8,3,BC,BC]
    convb_pk = jnp.tile(params["conv_b"], (1, B)).reshape(8, 1, BC)  # [8,1,BC]

    # One-hot driving inputs, packed layout: ids_rep[t, b*V+v] = text[b, t].
    ids_rep = jnp.repeat(text.T.astype(jnp.int32), vocab, axis=1)    # [T, B*V]
    colv = jnp.tile(jnp.arange(vocab, dtype=jnp.int32), B)[None, :]  # [1, B*V]

    kernel = functools.partial(_cluster_kernel, B=B, T=T, C=C)

    flops = 2 * (T * (B * vocab) * BC                # embedding one-hot matmul
                 + 8 * 3 * T * BC * BC               # 8 convs x 3 taps
                 + B * (C * 256 + E * 256 + 256 * D + D * K))
    bytes_accessed = 4 * (ids_rep.size + colv.size + emb_blk.size
                          + convw_blk.size + convb_pk.size + d_embedding.size
                          + params["w1"].size + params["b1"].size
                          + params["w2"].size + params["b2"].size
                          + params["gamma"].size + params["beta"].size
                          + params["w3"].size + params["b3"].size
                          + B * OUT_LANES)
    cost = pl.CostEstimate(flops=int(flops), transcendentals=int(D),
                           bytes_accessed=int(bytes_accessed))

    vmem_spec = pl.BlockSpec(memory_space=pltpu.MemorySpace.VMEM)
    out = pl.pallas_call(
        kernel,
        out_shape=jax.ShapeDtypeStruct((B, OUT_LANES), jnp.float32),
        in_specs=[vmem_spec] * 14,
        out_specs=vmem_spec,
        cost_estimate=cost,
    )(ids_rep, colv, emb_blk, convw_blk, convb_pk, d_embedding,
      params["w1"], params["b1"], params["w2"], params["b2"],
      params["gamma"], params["beta"], params["w3"], params["b3"])

    embed = out[:, :D]
    logits = out[:, D:D + K]
    return logits, embed


# ----------------------------------------------------------------------------
# Parameter construction (torch-layout weights, per-tap conv matrices)
# ----------------------------------------------------------------------------
def make_params(key, vocab, C, E, D, K):
    ks = jax.random.split(key, 9)
    scale = 0.1

    emb_table = scale * jax.random.normal(ks[0], (vocab, C), jnp.float32)

    # 8 Conv1d layers (4 ResBlocks x 2 convs), torch weight shape [C_out, C_in, 3]
    conv_w_t = scale * jax.random.normal(ks[1], (8, C, C, 3), jnp.float32)
    conv_b = scale * jax.random.normal(ks[2], (8, C), jnp.float32)
    # [layer, C_out, C_in, tap] -> [layer, tap, C_in, C_out]:
    #   tap 0 multiplies x[t-1], tap 1 x[t], tap 2 x[t+1]
    conv_w = jnp.transpose(conv_w_t, (0, 3, 2, 1))

    w1 = scale * jax.random.normal(ks[3], (C + E, 256), jnp.float32)
    b1 = scale * jax.random.normal(ks[4], (1, 256), jnp.float32)
    w2 = scale * jax.random.normal(ks[5], (256, D), jnp.float32)
    b2 = scale * jax.random.normal(ks[6], (1, D), jnp.float32)
    gamma = jnp.ones((1, D), jnp.float32)
    beta = jnp.zeros((1, D), jnp.float32)
    w3 = scale * jax.random.normal(ks[7], (D, K), jnp.float32)
    b3 = scale * jax.random.normal(ks[8], (1, K), jnp.float32)

    return dict(emb_table=emb_table, conv_w=conv_w, conv_b=conv_b,
                w1=w1, b1=b1, w2=w2, b2=b2, gamma=gamma, beta=beta,
                w3=w3, b3=b3)


if __name__ == "__main__":
    # Small, module-consistent shapes; B * C == 128 fills the lane dimension.
    B, T = 4, 8
    vocab = 50
    C = 32          # embedding_dim
    E = 16          # embed_dim (d_embedding width)
    D = 32          # output_embed_dim
    K = 5           # k_bins

    key = jax.random.PRNGKey(0)
    k_par, k_txt, k_demb = jax.random.split(key, 3)

    params = make_params(k_par, vocab, C, E, D, K)
    text = jax.random.randint(k_txt, (B, T), 0, vocab, dtype=jnp.int32)
    d_embedding = jax.random.normal(k_demb, (B, E), jnp.float32)

    logits, embed = jax.jit(cluster_forward)(text, d_embedding, params)
    jax.block_until_ready((logits, embed))

    assert logits.shape == (B, K) and embed.shape == (B, D)
    assert bool(jnp.all(jnp.isfinite(logits))) and bool(jnp.all(jnp.isfinite(embed)))
    print("KERNEL_OK")
</pallas_src>

<mosaic_0001>
module attributes {stable_mosaic.version = 11 : i64} {
  func.func @_cluster_kernel(%arg0: memref<8x200xi32, #tpu.memory_space<vmem>>, %arg1: memref<1x200xi32, #tpu.memory_space<vmem>>, %arg2: memref<200x128xf32, #tpu.memory_space<vmem>>, %arg3: memref<8x3x128x128xf32, #tpu.memory_space<vmem>>, %arg4: memref<8x1x128xf32, #tpu.memory_space<vmem>>, %arg5: memref<4x16xf32, #tpu.memory_space<vmem>>, %arg6: memref<48x256xf32, #tpu.memory_space<vmem>>, %arg7: memref<1x256xf32, #tpu.memory_space<vmem>>, %arg8: memref<256x32xf32, #tpu.memory_space<vmem>>, %arg9: memref<1x32xf32, #tpu.memory_space<vmem>>, %arg10: memref<1x32xf32, #tpu.memory_space<vmem>>, %arg11: memref<1x32xf32, #tpu.memory_space<vmem>>, %arg12: memref<32x5xf32, #tpu.memory_space<vmem>>, %arg13: memref<1x5xf32, #tpu.memory_space<vmem>>, %arg14: memref<4x128xf32, #tpu.memory_space<vmem>>) attributes {dimension_semantics = [], scalar_prefetch = 0 : i64, scratch_operands = 0 : i64, tpu.core_type = #tpu.core_type<tc>} {
    %c0 = arith.constant 0 : index
    %c0_0 = arith.constant 0 : index
    %0 = vector.load %arg0[%c0, %c0_0] : memref<8x200xi32, #tpu.memory_space<vmem>>, vector<8x200xi32>
    %c0_1 = arith.constant 0 : index
    %c0_2 = arith.constant 0 : index
    %1 = vector.load %arg1[%c0_1, %c0_2] : memref<1x200xi32, #tpu.memory_space<vmem>>, vector<1x200xi32>
    %2 = vector.broadcast %1 : vector<1x200xi32> to vector<8x200xi32>
    %3 = arith.cmpi eq, %0, %2 : vector<8x200xi32>
    %4 = arith.extui %3 : vector<8x200xi1> to vector<8x200xi32>
    %5 = arith.sitofp %4 : vector<8x200xi32> to vector<8x200xf32>
    %c0_3 = arith.constant 0 : index
    %c0_4 = arith.constant 0 : index
    %6 = vector.load %arg2[%c0_3, %c0_4] : memref<200x128xf32, #tpu.memory_space<vmem>>, vector<200x128xf32>
    %cst = arith.constant dense<0.000000e+00> : vector<8x128xf32>
    %7 = tpu.matmul %5, %6, %cst {dimension_numbers = #tpu.dot_dimension_numbers<[1], [0], [0], [1], [0, 0, 1, 1], [], []>} : vector<8x200xf32>, vector<200x128xf32>, vector<8x128xf32> -> vector<8x128xf32>
    %8 = tpu.iota {dimensions = array<i32: 0>} : vector<8x128xi32>
    %c0_i32 = arith.constant 0 : i32
    %9 = vector.broadcast %c0_i32 : i32 to vector<8x128xi32>
    %10 = arith.cmpi eq, %8, %9 : vector<8x128xi32>
    %c7_i32 = arith.constant 7 : i32
    %11 = vector.broadcast %c7_i32 : i32 to vector<8x128xi32>
    %12 = arith.cmpi eq, %8, %11 : vector<8x128xi32>
    %c1_i32 = arith.constant 1 : i32
    %13 = tpu.dynamic_rotate %7 by %c1_i32 dim 0 : vector<8x128xf32>, i32 -> vector<8x128xf32>
    %cst_5 = arith.constant 0.000000e+00 : f32
    %14 = vector.broadcast %cst_5 : f32 to vector<8x128xf32>
    %15 = arith.select %10, %14, %13 : vector<8x128xi1>, vector<8x128xf32>
    %c7_i32_6 = arith.constant 7 : i32
    %16 = tpu.dynamic_rotate %7 by %c7_i32_6 dim 0 : vector<8x128xf32>, i32 -> vector<8x128xf32>
    %cst_7 = arith.constant 0.000000e+00 : f32
    %17 = vector.broadcast %cst_7 : f32 to vector<8x128xf32>
    %18 = arith.select %12, %17, %16 : vector<8x128xi1>, vector<8x128xf32>
    %c0_8 = arith.constant 0 : index
    %c0_9 = arith.constant 0 : index
    %c0_10 = arith.constant 0 : index
    %c0_11 = arith.constant 0 : index
    %19 = vector.load %arg3[%c0_8, %c0_9, %c0_10, %c0_11] : memref<8x3x128x128xf32, #tpu.memory_space<vmem>>, vector<1x1x128x128xf32>
    %20 = vector.shape_cast %19 : vector<1x1x128x128xf32> to vector<128x128xf32>
    %cst_12 = arith.constant dense<0.000000e+00> : vector<8x128xf32>
    %21 = tpu.matmul %15, %20, %cst_12 {dimension_numbers = #tpu.dot_dimension_numbers<[1], [0], [0], [1], [0, 0, 1, 1], [], []>} : vector<8x128xf32>, vector<128x128xf32>, vector<8x128xf32> -> vector<8x128xf32>
    %c0_13 = arith.constant 0 : index
    %c1 = arith.constant 1 : index
    %c0_14 = arith.constant 0 : index
    %c0_15 = arith.constant 0 : index
    %22 = vector.load %arg3[%c0_13, %c1, %c0_14, %c0_15] : memref<8x3x128x128xf32, #tpu.memory_space<vmem>>, vector<1x1x128x128xf32>
    %23 = vector.shape_cast %22 : vector<1x1x128x128xf32> to vector<128x128xf32>
    %cst_16 = arith.constant dense<0.000000e+00> : vector<8x128xf32>
    %24 = tpu.matmul %7, %23, %cst_16 {dimension_numbers = #tpu.dot_dimension_numbers<[1], [0], [0], [1], [0, 0, 1, 1], [], []>} : vector<8x128xf32>, vector<128x128xf32>, vector<8x128xf32> -> vector<8x128xf32>
    %25 = arith.addf %21, %24 : vector<8x128xf32>
    %c0_17 = arith.constant 0 : index
    %c2 = arith.constant 2 : index
    %c0_18 = arith.constant 0 : index
    %c0_19 = arith.constant 0 : index
    %26 = vector.load %arg3[%c0_17, %c2, %c0_18, %c0_19] : memref<8x3x128x128xf32, #tpu.memory_space<vmem>>, vector<1x1x128x128xf32>
    %27 = vector.shape_cast %26 : vector<1x1x128x128xf32> to vector<128x128xf32>
    %cst_20 = arith.constant dense<0.000000e+00> : vector<8x128xf32>
    %28 = tpu.matmul %18, %27, %cst_20 {dimension_numbers = #tpu.dot_dimension_numbers<[1], [0], [0], [1], [0, 0, 1, 1], [], []>} : vector<8x128xf32>, vector<128x128xf32>, vector<8x128xf32> -> vector<8x128xf32>
    %29 = arith.addf %25, %28 : vector<8x128xf32>
    %c0_21 = arith.constant 0 : index
    %c0_22 = arith.constant 0 : index
    %c0_23 = arith.constant 0 : index
    %30 = vector.load %arg4[%c0_21, %c0_22, %c0_23] : memref<8x1x128xf32, #tpu.memory_space<vmem>>, vector<1x1x128xf32>
    %31 = vector.shape_cast %30 : vector<1x1x128xf32> to vector<1x128xf32>
    %32 = vector.broadcast %31 : vector<1x128xf32> to vector<8x128xf32>
    %33 = arith.addf %29, %32 : vector<8x128xf32>
    %cst_24 = arith.constant 0.000000e+00 : f32
    %34 = vector.broadcast %cst_24 : f32 to vector<8x128xf32>
    %35 = arith.maximumf %33, %34 : vector<8x128xf32>
    %c1_i32_25 = arith.constant 1 : i32
    %36 = tpu.dynamic_rotate %35 by %c1_i32_25 dim 0 : vector<8x128xf32>, i32 -> vector<8x128xf32>
    %cst_26 = arith.constant 0.000000e+00 : f32
    %37 = vector.broadcast %cst_26 : f32 to vector<8x128xf32>
    %38 = arith.select %10, %37, %36 : vector<8x128xi1>, vector<8x128xf32>
    %c7_i32_27 = arith.constant 7 : i32
    %39 = tpu.dynamic_rotate %35 by %c7_i32_27 dim 0 : vector<8x128xf32>, i32 -> vector<8x128xf32>
    %cst_28 = arith.constant 0.000000e+00 : f32
    %40 = vector.broadcast %cst_28 : f32 to vector<8x128xf32>
    %41 = arith.select %12, %40, %39 : vector<8x128xi1>, vector<8x128xf32>
    %c1_29 = arith.constant 1 : index
    %c0_30 = arith.constant 0 : index
    %c0_31 = arith.constant 0 : index
    %c0_32 = arith.constant 0 : index
    %42 = vector.load %arg3[%c1_29, %c0_30, %c0_31, %c0_32] : memref<8x3x128x128xf32, #tpu.memory_space<vmem>>, vector<1x1x128x128xf32>
    %43 = vector.shape_cast %42 : vector<1x1x128x128xf32> to vector<128x128xf32>
    %cst_33 = arith.constant dense<0.000000e+00> : vector<8x128xf32>
    %44 = tpu.matmul %38, %43, %cst_33 {dimension_numbers = #tpu.dot_dimension_numbers<[1], [0], [0], [1], [0, 0, 1, 1], [], []>} : vector<8x128xf32>, vector<128x128xf32>, vector<8x128xf32> -> vector<8x128xf32>
    %c1_34 = arith.constant 1 : index
    %c1_35 = arith.constant 1 : index
    %c0_36 = arith.constant 0 : index
    %c0_37 = arith.constant 0 : index
    %45 = vector.load %arg3[%c1_34, %c1_35, %c0_36, %c0_37] : memref<8x3x128x128xf32, #tpu.memory_space<vmem>>, vector<1x1x128x128xf32>
    %46 = vector.shape_cast %45 : vector<1x1x128x128xf32> to vector<128x128xf32>
    %cst_38 = arith.constant dense<0.000000e+00> : vector<8x128xf32>
    %47 = tpu.matmul %35, %46, %cst_38 {dimension_numbers = #tpu.dot_dimension_numbers<[1], [0], [0], [1], [0, 0, 1, 1], [], []>} : vector<8x128xf32>, vector<128x128xf32>, vector<8x128xf32> -> vector<8x128xf32>
    %48 = arith.addf %44, %47 : vector<8x128xf32>
    %c1_39 = arith.constant 1 : index
    %c2_40 = arith.constant 2 : index
    %c0_41 = arith.constant 0 : index
    %c0_42 = arith.constant 0 : index
    %49 = vector.load %arg3[%c1_39, %c2_40, %c0_41, %c0_42] : memref<8x3x128x128xf32, #tpu.memory_space<vmem>>, vector<1x1x128x128xf32>
    %50 = vector.shape_cast %49 : vector<1x1x128x128xf32> to vector<128x128xf32>
    %cst_43 = arith.constant dense<0.000000e+00> : vector<8x128xf32>
    %51 = tpu.matmul %41, %50, %cst_43 {dimension_numbers = #tpu.dot_dimension_numbers<[1], [0], [0], [1], [0, 0, 1, 1], [], []>} : vector<8x128xf32>, vector<128x128xf32>, vector<8x128xf32> -> vector<8x128xf32>
    %52 = arith.addf %48, %51 : vector<8x128xf32>
    %c1_44 = arith.constant 1 : index
    %c0_45 = arith.constant 0 : index
    %c0_46 = arith.constant 0 : index
    %53 = vector.load %arg4[%c1_44, %c0_45, %c0_46] : memref<8x1x128xf32, #tpu.memory_space<vmem>>, vector<1x1x128xf32>
    %54 = vector.shape_cast %53 : vector<1x1x128xf32> to vector<1x128xf32>
    %55 = vector.broadcast %54 : vector<1x128xf32> to vector<8x128xf32>
    %56 = arith.addf %52, %55 : vector<8x128xf32>
    %57 = arith.addf %56, %7 : vector<8x128xf32>
    %cst_47 = arith.constant 0.000000e+00 : f32
    %58 = vector.broadcast %cst_47 : f32 to vector<8x128xf32>
    %59 = arith.maximumf %57, %58 : vector<8x128xf32>
    %c1_i32_48 = arith.constant 1 : i32
    %60 = tpu.dynamic_rotate %59 by %c1_i32_48 dim 0 : vector<8x128xf32>, i32 -> vector<8x128xf32>
    %cst_49 = arith.constant 0.000000e+00 : f32
    %61 = vector.broadcast %cst_49 : f32 to vector<8x128xf32>
    %62 = arith.select %10, %61, %60 : vector<8x128xi1>, vector<8x128xf32>
    %c7_i32_50 = arith.constant 7 : i32
    %63 = tpu.dynamic_rotate %59 by %c7_i32_50 dim 0 : vector<8x128xf32>, i32 -> vector<8x128xf32>
    %cst_51 = arith.constant 0.000000e+00 : f32
    %64 = vector.broadcast %cst_51 : f32 to vector<8x128xf32>
    %65 = arith.select %12, %64, %63 : vector<8x128xi1>, vector<8x128xf32>
    %c2_52 = arith.constant 2 : index
    %c0_53 = arith.constant 0 : index
    %c0_54 = arith.constant 0 : index
    %c0_55 = arith.constant 0 : index
    %66 = vector.load %arg3[%c2_52, %c0_53, %c0_54, %c0_55] : memref<8x3x128x128xf32, #tpu.memory_space<vmem>>, vector<1x1x128x128xf32>
    %67 = vector.shape_cast %66 : vector<1x1x128x128xf32> to vector<128x128xf32>
    %cst_56 = arith.constant dense<0.000000e+00> : vector<8x128xf32>
    %68 = tpu.matmul %62, %67, %cst_56 {dimension_numbers = #tpu.dot_dimension_numbers<[1], [0], [0], [1], [0, 0, 1, 1], [], []>} : vector<8x128xf32>, vector<128x128xf32>, vector<8x128xf32> -> vector<8x128xf32>
    %c2_57 = arith.constant 2 : index
    %c1_58 = arith.constant 1 : index
    %c0_59 = arith.constant 0 : index
    %c0_60 = arith.constant 0 : index
    %69 = vector.load %arg3[%c2_57, %c1_58, %c0_59, %c0_60] : memref<8x3x128x128xf32, #tpu.memory_space<vmem>>, vector<1x1x128x128xf32>
    %70 = vector.shape_cast %69 : vector<1x1x128x128xf32> to vector<128x128xf32>
    %cst_61 = arith.constant dense<0.000000e+00> : vector<8x128xf32>
    %71 = tpu.matmul %59, %70, %cst_61 {dimension_numbers = #tpu.dot_dimension_numbers<[1], [0], [0], [1], [0, 0, 1, 1], [], []>} : vector<8x128xf32>, vector<128x128xf32>, vector<8x128xf32> -> vector<8x128xf32>
    %72 = arith.addf %68, %71 : vector<8x128xf32>
    %c2_62 = arith.constant 2 : index
    %c2_63 = arith.constant 2 : index
    %c0_64 = arith.constant 0 : index
    %c0_65 = arith.constant 0 : index
    %73 = vector.load %arg3[%c2_62, %c2_63, %c0_64, %c0_65] : memref<8x3x128x128xf32, #tpu.memory_space<vmem>>, vector<1x1x128x128xf32>
    %74 = vector.shape_cast %73 : vector<1x1x128x128xf32> to vector<128x128xf32>
    %cst_66 = arith.constant dense<0.000000e+00> : vector<8x128xf32>
    %75 = tpu.matmul %65, %74, %cst_66 {dimension_numbers = #tpu.dot_dimension_numbers<[1], [0], [0], [1], [0, 0, 1, 1], [], []>} : vector<8x128xf32>, vector<128x128xf32>, vector<8x128xf32> -> vector<8x128xf32>
    %76 = arith.addf %72, %75 : vector<8x128xf32>
    %c2_67 = arith.constant 2 : index
    %c0_68 = arith.constant 0 : index
    %c0_69 = arith.constant 0 : index
    %77 = vector.load %arg4[%c2_67, %c0_68, %c0_69] : memref<8x1x128xf32, #tpu.memory_space<vmem>>, vector<1x1x128xf32>
    %78 = vector.shape_cast %77 : vector<1x1x128xf32> to vector<1x128xf32>
    %79 = vector.broadcast %78 : vector<1x128xf32> to vector<8x128xf32>
    %80 = arith.addf %76, %79 : vector<8x128xf32>
    %cst_70 = arith.constant 0.000000e+00 : f32
    %81 = vector.broadcast %cst_70 : f32 to vector<8x128xf32>
    %82 = arith.maximumf %80, %81 : vector<8x128xf32>
    %c1_i32_71 = arith.constant 1 : i32
    %83 = tpu.dynamic_rotate %82 by %c1_i32_71 dim 0 : vector<8x128xf32>, i32 -> vector<8x128xf32>
    %cst_72 = arith.constant 0.000000e+00 : f32
    %84 = vector.broadcast %cst_72 : f32 to vector<8x128xf32>
    %85 = arith.select %10, %84, %83 : vector<8x128xi1>, vector<8x128xf32>
    %c7_i32_73 = arith.constant 7 : i32
    %86 = tpu.dynamic_rotate %82 by %c7_i32_73 dim 0 : vector<8x128xf32>, i32 -> vector<8x128xf32>
    %cst_74 = arith.constant 0.000000e+00 : f32
    %87 = vector.broadcast %cst_74 : f32 to vector<8x128xf32>
    %88 = arith.select %12, %87, %86 : vector<8x128xi1>, vector<8x128xf32>
    %c3 = arith.constant 3 : index
    %c0_75 = arith.constant 0 : index
    %c0_76 = arith.constant 0 : index
    %c0_77 = arith.constant 0 : index
    %89 = vector.load %arg3[%c3, %c0_75, %c0_76, %c0_77] : memref<8x3x128x128xf32, #tpu.memory_space<vmem>>, vector<1x1x128x128xf32>
    %90 = vector.shape_cast %89 : vector<1x1x128x128xf32> to vector<128x128xf32>
    %cst_78 = arith.constant dense<0.000000e+00> : vector<8x128xf32>
    %91 = tpu.matmul %85, %90, %cst_78 {dimension_numbers = #tpu.dot_dimension_numbers<[1], [0], [0], [1], [0, 0, 1, 1], [], []>} : vector<8x128xf32>, vector<128x128xf32>, vector<8x128xf32> -> vector<8x128xf32>
    %c3_79 = arith.constant 3 : index
    %c1_80 = arith.constant 1 : index
    %c0_81 = arith.constant 0 : index
    %c0_82 = arith.constant 0 : index
    %92 = vector.load %arg3[%c3_79, %c1_80, %c0_81, %c0_82] : memref<8x3x128x128xf32, #tpu.memory_space<vmem>>, vector<1x1x128x128xf32>
    %93 = vector.shape_cast %92 : vector<1x1x128x128xf32> to vector<128x128xf32>
    %cst_83 = arith.constant dense<0.000000e+00> : vector<8x128xf32>
    %94 = tpu.matmul %82, %93, %cst_83 {dimension_numbers = #tpu.dot_dimension_numbers<[1], [0], [0], [1], [0, 0, 1, 1], [], []>} : vector<8x128xf32>, vector<128x128xf32>, vector<8x128xf32> -> vector<8x128xf32>
    %95 = arith.addf %91, %94 : vector<8x128xf32>
    %c3_84 = arith.constant 3 : index
    %c2_85 = arith.constant 2 : index
    %c0_86 = arith.constant 0 : index
    %c0_87 = arith.constant 0 : index
    %96 = vector.load %arg3[%c3_84, %c2_85, %c0_86, %c0_87] : memref<8x3x128x128xf32, #tpu.memory_space<vmem>>, vector<1x1x128x128xf32>
    %97 = vector.shape_cast %96 : vector<1x1x128x128xf32> to vector<128x128xf32>
    %cst_88 = arith.constant dense<0.000000e+00> : vector<8x128xf32>
    %98 = tpu.matmul %88, %97, %cst_88 {dimension_numbers = #tpu.dot_dimension_numbers<[1], [0], [0], [1], [0, 0, 1, 1], [], []>} : vector<8x128xf32>, vector<128x128xf32>, vector<8x128xf32> -> vector<8x128xf32>
    %99 = arith.addf %95, %98 : vector<8x128xf32>
    %c3_89 = arith.constant 3 : index
    %c0_90 = arith.constant 0 : index
    %c0_91 = arith.constant 0 : index
    %100 = vector.load %arg4[%c3_89, %c0_90, %c0_91] : memref<8x1x128xf32, #tpu.memory_space<vmem>>, vector<1x1x128xf32>
    %101 = vector.shape_cast %100 : vector<1x1x128xf32> to vector<1x128xf32>
    %102 = vector.broadcast %101 : vector<1x128xf32> to vector<8x128xf32>
    %103 = arith.addf %99, %102 : vector<8x128xf32>
    %104 = arith.addf %103, %59 : vector<8x128xf32>
    %cst_92 = arith.constant 0.000000e+00 : f32
    %105 = vector.broadcast %cst_92 : f32 to vector<8x128xf32>
    %106 = arith.maximumf %104, %105 : vector<8x128xf32>
    %c1_i32_93 = arith.constant 1 : i32
    %107 = tpu.dynamic_rotate %106 by %c1_i32_93 dim 0 : vector<8x128xf32>, i32 -> vector<8x128xf32>
    %cst_94 = arith.constant 0.000000e+00 : f32
    %108 = vector.broadcast %cst_94 : f32 to vector<8x128xf32>
    %109 = arith.select %10, %108, %107 : vector<8x128xi1>, vector<8x128xf32>
    %c7_i32_95 = arith.constant 7 : i32
    %110 = tpu.dynamic_rotate %106 by %c7_i32_95 dim 0 : vector<8x128xf32>, i32 -> vector<8x128xf32>
    %cst_96 = arith.constant 0.000000e+00 : f32
    %111 = vector.broadcast %cst_96 : f32 to vector<8x128xf32>
    %112 = arith.select %12, %111, %110 : vector<8x128xi1>, vector<8x128xf32>
    %c4 = arith.constant 4 : index
    %c0_97 = arith.constant 0 : index
    %c0_98 = arith.constant 0 : index
    %c0_99 = arith.constant 0 : index
    %113 = vector.load %arg3[%c4, %c0_97, %c0_98, %c0_99] : memref<8x3x128x128xf32, #tpu.memory_space<vmem>>, vector<1x1x128x128xf32>
    %114 = vector.shape_cast %113 : vector<1x1x128x128xf32> to vector<128x128xf32>
    %cst_100 = arith.constant dense<0.000000e+00> : vector<8x128xf32>
    %115 = tpu.matmul %109, %114, %cst_100 {dimension_numbers = #tpu.dot_dimension_numbers<[1], [0], [0], [1], [0, 0, 1, 1], [], []>} : vector<8x128xf32>, vector<128x128xf32>, vector<8x128xf32> -> vector<8x128xf32>
    %c4_101 = arith.constant 4 : index
    %c1_102 = arith.constant 1 : index
    %c0_103 = arith.constant 0 : index
    %c0_104 = arith.constant 0 : index
    %116 = vector.load %arg3[%c4_101, %c1_102, %c0_103, %c0_104] : memref<8x3x128x128xf32, #tpu.memory_space<vmem>>, vector<1x1x128x128xf32>
    %117 = vector.shape_cast %116 : vector<1x1x128x128xf32> to vector<128x128xf32>
    %cst_105 = arith.constant dense<0.000000e+00> : vector<8x128xf32>
    %118 = tpu.matmul %106, %117, %cst_105 {dimension_numbers = #tpu.dot_dimension_numbers<[1], [0], [0], [1], [0, 0, 1, 1], [], []>} : vector<8x128xf32>, vector<128x128xf32>, vector<8x128xf32> -> vector<8x128xf32>
    %119 = arith.addf %115, %118 : vector<8x128xf32>
    %c4_106 = arith.constant 4 : index
    %c2_107 = arith.constant 2 : index
    %c0_108 = arith.constant 0 : index
    %c0_109 = arith.constant 0 : index
    %120 = vector.load %arg3[%c4_106, %c2_107, %c0_108, %c0_109] : memref<8x3x128x128xf32, #tpu.memory_space<vmem>>, vector<1x1x128x128xf32>
    %121 = vector.shape_cast %120 : vector<1x1x128x128xf32> to vector<128x128xf32>
    %cst_110 = arith.constant dense<0.000000e+00> : vector<8x128xf32>
    %122 = tpu.matmul %112, %121, %cst_110 {dimension_numbers = #tpu.dot_dimension_numbers<[1], [0], [0], [1], [0, 0, 1, 1], [], []>} : vector<8x128xf32>, vector<128x128xf32>, vector<8x128xf32> -> vector<8x128xf32>
    %123 = arith.addf %119, %122 : vector<8x128xf32>
    %c4_111 = arith.constant 4 : index
    %c0_112 = arith.constant 0 : index
    %c0_113 = arith.constant 0 : index
    %124 = vector.load %arg4[%c4_111, %c0_112, %c0_113] : memref<8x1x128xf32, #tpu.memory_space<vmem>>, vector<1x1x128xf32>
    %125 = vector.shape_cast %124 : vector<1x1x128xf32> to vector<1x128xf32>
    %126 = vector.broadcast %125 : vector<1x128xf32> to vector<8x128xf32>
    %127 = arith.addf %123, %126 : vector<8x128xf32>
    %cst_114 = arith.constant 0.000000e+00 : f32
    %128 = vector.broadcast %cst_114 : f32 to vector<8x128xf32>
    %129 = arith.maximumf %127, %128 : vector<8x128xf32>
    %c1_i32_115 = arith.constant 1 : i32
    %130 = tpu.dynamic_rotate %129 by %c1_i32_115 dim 0 : vector<8x128xf32>, i32 -> vector<8x128xf32>
    %cst_116 = arith.constant 0.000000e+00 : f32
    %131 = vector.broadcast %cst_116 : f32 to vector<8x128xf32>
    %132 = arith.select %10, %131, %130 : vector<8x128xi1>, vector<8x128xf32>
    %c7_i32_117 = arith.constant 7 : i32
    %133 = tpu.dynamic_rotate %129 by %c7_i32_117 dim 0 : vector<8x128xf32>, i32 -> vector<8x128xf32>
    %cst_118 = arith.constant 0.000000e+00 : f32
    %134 = vector.broadcast %cst_118 : f32 to vector<8x128xf32>
    %135 = arith.select %12, %134, %133 : vector<8x128xi1>, vector<8x128xf32>
    %c5 = arith.constant 5 : index
    %c0_119 = arith.constant 0 : index
    %c0_120 = arith.constant 0 : index
    %c0_121 = arith.constant 0 : index
    %136 = vector.load %arg3[%c5, %c0_119, %c0_120, %c0_121] : memref<8x3x128x128xf32, #tpu.memory_space<vmem>>, vector<1x1x128x128xf32>
    %137 = vector.shape_cast %136 : vector<1x1x128x128xf32> to vector<128x128xf32>
    %cst_122 = arith.constant dense<0.000000e+00> : vector<8x128xf32>
    %138 = tpu.matmul %132, %137, %cst_122 {dimension_numbers = #tpu.dot_dimension_numbers<[1], [0], [0], [1], [0, 0, 1, 1], [], []>} : vector<8x128xf32>, vector<128x128xf32>, vector<8x128xf32> -> vector<8x128xf32>
    %c5_123 = arith.constant 5 : index
    %c1_124 = arith.constant 1 : index
    %c0_125 = arith.constant 0 : index
    %c0_126 = arith.constant 0 : index
    %139 = vector.load %arg3[%c5_123, %c1_124, %c0_125, %c0_126] : memref<8x3x128x128xf32, #tpu.memory_space<vmem>>, vector<1x1x128x128xf32>
    %140 = vector.shape_cast %139 : vector<1x1x128x128xf32> to vector<128x128xf32>
    %cst_127 = arith.constant dense<0.000000e+00> : vector<8x128xf32>
    %141 = tpu.matmul %129, %140, %cst_127 {dimension_numbers = #tpu.dot_dimension_numbers<[1], [0], [0], [1], [0, 0, 1, 1], [], []>} : vector<8x128xf32>, vector<128x128xf32>, vector<8x128xf32> -> vector<8x128xf32>
    %142 = arith.addf %138, %141 : vector<8x128xf32>
    %c5_128 = arith.constant 5 : index
    %c2_129 = arith.constant 2 : index
    %c0_130 = arith.constant 0 : index
    %c0_131 = arith.constant 0 : index
    %143 = vector.load %arg3[%c5_128, %c2_129, %c0_130, %c0_131] : memref<8x3x128x128xf32, #tpu.memory_space<vmem>>, vector<1x1x128x128xf32>
    %144 = vector.shape_cast %143 : vector<1x1x128x128xf32> to vector<128x128xf32>
    %cst_132 = arith.constant dense<0.000000e+00> : vector<8x128xf32>
    %145 = tpu.matmul %135, %144, %cst_132 {dimension_numbers = #tpu.dot_dimension_numbers<[1], [0], [0], [1], [0, 0, 1, 1], [], []>} : vector<8x128xf32>, vector<128x128xf32>, vector<8x128xf32> -> vector<8x128xf32>
    %146 = arith.addf %142, %145 : vector<8x128xf32>
    %c5_133 = arith.constant 5 : index
    %c0_134 = arith.constant 0 : index
    %c0_135 = arith.constant 0 : index
    %147 = vector.load %arg4[%c5_133, %c0_134, %c0_135] : memref<8x1x128xf32, #tpu.memory_space<vmem>>, vector<1x1x128xf32>
    %148 = vector.shape_cast %147 : vector<1x1x128xf32> to vector<1x128xf32>
    %149 = vector.broadcast %148 : vector<1x128xf32> to vector<8x128xf32>
    %150 = arith.addf %146, %149 : vector<8x128xf32>
    %151 = arith.addf %150, %106 : vector<8x128xf32>
    %cst_136 = arith.constant 0.000000e+00 : f32
    %152 = vector.broadcast %cst_136 : f32 to vector<8x128xf32>
    %153 = arith.maximumf %151, %152 : vector<8x128xf32>
    %c1_i32_137 = arith.constant 1 : i32
    %154 = tpu.dynamic_rotate %153 by %c1_i32_137 dim 0 : vector<8x128xf32>, i32 -> vector<8x128xf32>
    %cst_138 = arith.constant 0.000000e+00 : f32
    %155 = vector.broadcast %cst_138 : f32 to vector<8x128xf32>
    %156 = arith.select %10, %155, %154 : vector<8x128xi1>, vector<8x128xf32>
    %c7_i32_139 = arith.constant 7 : i32
    %157 = tpu.dynamic_rotate %153 by %c7_i32_139 dim 0 : vector<8x128xf32>, i32 -> vector<8x128xf32>
    %cst_140 = arith.constant 0.000000e+00 : f32
    %158 = vector.broadcast %cst_140 : f32 to vector<8x128xf32>
    %159 = arith.select %12, %158, %157 : vector<8x128xi1>, vector<8x128xf32>
    %c6 = arith.constant 6 : index
    %c0_141 = arith.constant 0 : index
    %c0_142 = arith.constant 0 : index
    %c0_143 = arith.constant 0 : index
    %160 = vector.load %arg3[%c6, %c0_141, %c0_142, %c0_143] : memref<8x3x128x128xf32, #tpu.memory_space<vmem>>, vector<1x1x128x128xf32>
    %161 = vector.shape_cast %160 : vector<1x1x128x128xf32> to vector<128x128xf32>
    %cst_144 = arith.constant dense<0.000000e+00> : vector<8x128xf32>
    %162 = tpu.matmul %156, %161, %cst_144 {dimension_numbers = #tpu.dot_dimension_numbers<[1], [0], [0], [1], [0, 0, 1, 1], [], []>} : vector<8x128xf32>, vector<128x128xf32>, vector<8x128xf32> -> vector<8x128xf32>
    %c6_145 = arith.constant 6 : index
    %c1_146 = arith.constant 1 : index
    %c0_147 = arith.constant 0 : index
    %c0_148 = arith.constant 0 : index
    %163 = vector.load %arg3[%c6_145, %c1_146, %c0_147, %c0_148] : memref<8x3x128x128xf32, #tpu.memory_space<vmem>>, vector<1x1x128x128xf32>
    %164 = vector.shape_cast %163 : vector<1x1x128x128xf32> to vector<128x128xf32>
    %cst_149 = arith.constant dense<0.000000e+00> : vector<8x128xf32>
    %165 = tpu.matmul %153, %164, %cst_149 {dimension_numbers = #tpu.dot_dimension_numbers<[1], [0], [0], [1], [0, 0, 1, 1], [], []>} : vector<8x128xf32>, vector<128x128xf32>, vector<8x128xf32> -> vector<8x128xf32>
    %166 = arith.addf %162, %165 : vector<8x128xf32>
    %c6_150 = arith.constant 6 : index
    %c2_151 = arith.constant 2 : index
    %c0_152 = arith.constant 0 : index
    %c0_153 = arith.constant 0 : index
    %167 = vector.load %arg3[%c6_150, %c2_151, %c0_152, %c0_153] : memref<8x3x128x128xf32, #tpu.memory_space<vmem>>, vector<1x1x128x128xf32>
    %168 = vector.shape_cast %167 : vector<1x1x128x128xf32> to vector<128x128xf32>
    %cst_154 = arith.constant dense<0.000000e+00> : vector<8x128xf32>
    %169 = tpu.matmul %159, %168, %cst_154 {dimension_numbers = #tpu.dot_dimension_numbers<[1], [0], [0], [1], [0, 0, 1, 1], [], []>} : vector<8x128xf32>, vector<128x128xf32>, vector<8x128xf32> -> vector<8x128xf32>
    %170 = arith.addf %166, %169 : vector<8x128xf32>
    %c6_155 = arith.constant 6 : index
    %c0_156 = arith.constant 0 : index
    %c0_157 = arith.constant 0 : index
    %171 = vector.load %arg4[%c6_155, %c0_156, %c0_157] : memref<8x1x128xf32, #tpu.memory_space<vmem>>, vector<1x1x128xf32>
    %172 = vector.shape_cast %171 : vector<1x1x128xf32> to vector<1x128xf32>
    %173 = vector.broadcast %172 : vector<1x128xf32> to vector<8x128xf32>
    %174 = arith.addf %170, %173 : vector<8x128xf32>
    %cst_158 = arith.constant 0.000000e+00 : f32
    %175 = vector.broadcast %cst_158 : f32 to vector<8x128xf32>
    %176 = arith.maximumf %174, %175 : vector<8x128xf32>
    %c1_i32_159 = arith.constant 1 : i32
    %177 = tpu.dynamic_rotate %176 by %c1_i32_159 dim 0 : vector<8x128xf32>, i32 -> vector<8x128xf32>
    %cst_160 = arith.constant 0.000000e+00 : f32
    %178 = vector.broadcast %cst_160 : f32 to vector<8x128xf32>
    %179 = arith.select %10, %178, %177 : vector<8x128xi1>, vector<8x128xf32>
    %c7_i32_161 = arith.constant 7 : i32
    %180 = tpu.dynamic_rotate %176 by %c7_i32_161 dim 0 : vector<8x128xf32>, i32 -> vector<8x128xf32>
    %cst_162 = arith.constant 0.000000e+00 : f32
    %181 = vector.broadcast %cst_162 : f32 to vector<8x128xf32>
    %182 = arith.select %12, %181, %180 : vector<8x128xi1>, vector<8x128xf32>
    %c7 = arith.constant 7 : index
    %c0_163 = arith.constant 0 : index
    %c0_164 = arith.constant 0 : index
    %c0_165 = arith.constant 0 : index
    %183 = vector.load %arg3[%c7, %c0_163, %c0_164, %c0_165] : memref<8x3x128x128xf32, #tpu.memory_space<vmem>>, vector<1x1x128x128xf32>
    %184 = vector.shape_cast %183 : vector<1x1x128x128xf32> to vector<128x128xf32>
    %cst_166 = arith.constant dense<0.000000e+00> : vector<8x128xf32>
    %185 = tpu.matmul %179, %184, %cst_166 {dimension_numbers = #tpu.dot_dimension_numbers<[1], [0], [0], [1], [0, 0, 1, 1], [], []>} : vector<8x128xf32>, vector<128x128xf32>, vector<8x128xf32> -> vector<8x128xf32>
    %c7_167 = arith.constant 7 : index
    %c1_168 = arith.constant 1 : index
    %c0_169 = arith.constant 0 : index
    %c0_170 = arith.constant 0 : index
    %186 = vector.load %arg3[%c7_167, %c1_168, %c0_169, %c0_170] : memref<8x3x128x128xf32, #tpu.memory_space<vmem>>, vector<1x1x128x128xf32>
    %187 = vector.shape_cast %186 : vector<1x1x128x128xf32> to vector<128x128xf32>
    %cst_171 = arith.constant dense<0.000000e+00> : vector<8x128xf32>
    %188 = tpu.matmul %176, %187, %cst_171 {dimension_numbers = #tpu.dot_dimension_numbers<[1], [0], [0], [1], [0, 0, 1, 1], [], []>} : vector<8x128xf32>, vector<128x128xf32>, vector<8x128xf32> -> vector<8x128xf32>
    %189 = arith.addf %185, %188 : vector<8x128xf32>
    %c7_172 = arith.constant 7 : index
    %c2_173 = arith.constant 2 : index
    %c0_174 = arith.constant 0 : index
    %c0_175 = arith.constant 0 : index
    %190 = vector.load %arg3[%c7_172, %c2_173, %c0_174, %c0_175] : memref<8x3x128x128xf32, #tpu.memory_space<vmem>>, vector<1x1x128x128xf32>
    %191 = vector.shape_cast %190 : vector<1x1x128x128xf32> to vector<128x128xf32>
    %cst_176 = arith.constant dense<0.000000e+00> : vector<8x128xf32>
    %192 = tpu.matmul %182, %191, %cst_176 {dimension_numbers = #tpu.dot_dimension_numbers<[1], [0], [0], [1], [0, 0, 1, 1], [], []>} : vector<8x128xf32>, vector<128x128xf32>, vector<8x128xf32> -> vector<8x128xf32>
    %193 = arith.addf %189, %192 : vector<8x128xf32>
    %c7_177 = arith.constant 7 : index
    %c0_178 = arith.constant 0 : index
    %c0_179 = arith.constant 0 : index
    %194 = vector.load %arg4[%c7_177, %c0_178, %c0_179] : memref<8x1x128xf32, #tpu.memory_space<vmem>>, vector<1x1x128xf32>
    %195 = vector.shape_cast %194 : vector<1x1x128xf32> to vector<1x128xf32>
    %196 = vector.broadcast %195 : vector<1x128xf32> to vector<8x128xf32>
    %197 = arith.addf %193, %196 : vector<8x128xf32>
    %198 = arith.addf %197, %153 : vector<8x128xf32>
    %cst_180 = arith.constant 0.000000e+00 : f32
    %199 = vector.broadcast %cst_180 : f32 to vector<8x128xf32>
    %200 = arith.maximumf %198, %199 : vector<8x128xf32>
    %cst_181 = arith.constant dense<0xFF800000> : vector<128xf32>
    %201 = vector.multi_reduction <maximumf>, %200, %cst_181 [0] : vector<8x128xf32> to vector<128xf32>
    %202 = vector.shape_cast %201 : vector<128xf32> to vector<1x128xf32>
    %203 = vector.extract_strided_slice %202 {offsets = [0, 0], sizes = [1, 32], strides = [1, 1]} : vector<1x128xf32> to vector<1x32xf32>
    %204 = vector.extract_strided_slice %202 {offsets = [0, 32], sizes = [1, 32], strides = [1, 1]} : vector<1x128xf32> to vector<1x32xf32>
    %205 = vector.extract_strided_slice %202 {offsets = [0, 64], sizes = [1, 32], strides = [1, 1]} : vector<1x128xf32> to vector<1x32xf32>
    %206 = vector.extract_strided_slice %202 {offsets = [0, 96], sizes = [1, 32], strides = [1, 1]} : vector<1x128xf32> to vector<1x32xf32>
    %207 = tpu.concatenate %203, %204, %205, %206 in 0 : vector<1x32xf32>, vector<1x32xf32>, vector<1x32xf32>, vector<1x32xf32> -> vector<4x32xf32>
    %c0_182 = arith.constant 0 : index
    %c0_183 = arith.constant 0 : index
    %208 = vector.load %arg6[%c0_182, %c0_183] : memref<48x256xf32, #tpu.memory_space<vmem>>, vector<32x256xf32>
    %cst_184 = arith.constant dense<0.000000e+00> : vector<4x256xf32>
    %209 = tpu.matmul %207, %208, %cst_184 {dimension_numbers = #tpu.dot_dimension_numbers<[1], [0], [0], [1], [0, 0, 1, 1], [], []>} : vector<4x32xf32>, vector<32x256xf32>, vector<4x256xf32> -> vector<4x256xf32>
    %c0_185 = arith.constant 0 : index
    %c0_186 = arith.constant 0 : index
    %210 = vector.load %arg5[%c0_185, %c0_186] : memref<4x16xf32, #tpu.memory_space<vmem>>, vector<4x16xf32>
    %c32 = arith.constant 32 : index
    %c0_187 = arith.constant 0 : index
    %211 = vector.load %arg6[%c32, %c0_187] : memref<48x256xf32, #tpu.memory_space<vmem>>, vector<16x256xf32>
    %cst_188 = arith.constant dense<0.000000e+00> : vector<4x256xf32>
    %212 = tpu.matmul %210, %211, %cst_188 {dimension_numbers = #tpu.dot_dimension_numbers<[1], [0], [0], [1], [0, 0, 1, 1], [], []>} : vector<4x16xf32>, vector<16x256xf32>, vector<4x256xf32> -> vector<4x256xf32>
    %213 = arith.addf %209, %212 : vector<4x256xf32>
    %c0_189 = arith.constant 0 : index
    %c0_190 = arith.constant 0 : index
    %214 = vector.load %arg7[%c0_189, %c0_190] : memref<1x256xf32, #tpu.memory_space<vmem>>, vector<1x256xf32>
    %215 = vector.broadcast %214 : vector<1x256xf32> to vector<4x256xf32>
    %216 = arith.addf %213, %215 : vector<4x256xf32>
    %cst_191 = arith.constant 0.000000e+00 : f32
    %217 = vector.broadcast %cst_191 : f32 to vector<4x256xf32>
    %218 = arith.maximumf %216, %217 : vector<4x256xf32>
    %c0_192 = arith.constant 0 : index
    %c0_193 = arith.constant 0 : index
    %219 = vector.load %arg8[%c0_192, %c0_193] : memref<256x32xf32, #tpu.memory_space<vmem>>, vector<256x32xf32>
    %cst_194 = arith.constant dense<0.000000e+00> : vector<4x32xf32>
    %220 = tpu.matmul %218, %219, %cst_194 {dimension_numbers = #tpu.dot_dimension_numbers<[1], [0], [0], [1], [0, 0, 1, 1], [], []>} : vector<4x256xf32>, vector<256x32xf32>, vector<4x32xf32> -> vector<4x32xf32>
    %c0_195 = arith.constant 0 : index
    %c0_196 = arith.constant 0 : index
    %221 = vector.load %arg9[%c0_195, %c0_196] : memref<1x32xf32, #tpu.memory_space<vmem>>, vector<1x32xf32>
    %222 = vector.broadcast %221 : vector<1x32xf32> to vector<4x32xf32>
    %223 = arith.addf %220, %222 : vector<4x32xf32>
    %cst_197 = arith.constant dense<0.000000e+00> : vector<32xf32>
    %224 = vector.multi_reduction <add>, %223, %cst_197 [0] : vector<4x32xf32> to vector<32xf32>
    %225 = vector.shape_cast %224 : vector<32xf32> to vector<1x32xf32>
    %cst_198 = arith.constant 4.000000e+00 : f32
    %226 = vector.broadcast %cst_198 : f32 to vector<1x32xf32>
    %227 = arith.divf %225, %226 : vector<1x32xf32>
    %228 = vector.broadcast %227 : vector<1x32xf32> to vector<4x32xf32>
    %229 = arith.subf %223, %228 : vector<4x32xf32>
    %230 = arith.mulf %229, %229 : vector<4x32xf32>
    %cst_199 = arith.constant dense<0.000000e+00> : vector<32xf32>
    %231 = vector.multi_reduction <add>, %230, %cst_199 [0] : vector<4x32xf32> to vector<32xf32>
    %232 = vector.shape_cast %231 : vector<32xf32> to vector<1x32xf32>
    %cst_200 = arith.constant 4.000000e+00 : f32
    %233 = vector.broadcast %cst_200 : f32 to vector<1x32xf32>
    %234 = arith.divf %232, %233 : vector<1x32xf32>
    %235 = vector.broadcast %227 : vector<1x32xf32> to vector<4x32xf32>
    %236 = arith.subf %223, %235 : vector<4x32xf32>
    %cst_201 = arith.constant 9.99999974E-6 : f32
    %237 = vector.broadcast %cst_201 : f32 to vector<1x32xf32>
    %238 = arith.addf %234, %237 : vector<1x32xf32>
    %239 = math.rsqrt %238 : vector<1x32xf32>
    %240 = vector.broadcast %239 : vector<1x32xf32> to vector<4x32xf32>
    %241 = arith.mulf %236, %240 : vector<4x32xf32>
    %c0_202 = arith.constant 0 : index
    %c0_203 = arith.constant 0 : index
    %242 = vector.load %arg10[%c0_202, %c0_203] : memref<1x32xf32, #tpu.memory_space<vmem>>, vector<1x32xf32>
    %243 = vector.broadcast %242 : vector<1x32xf32> to vector<4x32xf32>
    %244 = arith.mulf %241, %243 : vector<4x32xf32>
    %c0_204 = arith.constant 0 : index
    %c0_205 = arith.constant 0 : index
    %245 = vector.load %arg11[%c0_204, %c0_205] : memref<1x32xf32, #tpu.memory_space<vmem>>, vector<1x32xf32>
    %246 = vector.broadcast %245 : vector<1x32xf32> to vector<4x32xf32>
    %247 = arith.addf %244, %246 : vector<4x32xf32>
    %cst_206 = arith.constant 0.000000e+00 : f32
    %248 = vector.broadcast %cst_206 : f32 to vector<4x32xf32>
    %249 = arith.maximumf %247, %248 : vector<4x32xf32>
    %c0_207 = arith.constant 0 : index
    %c0_208 = arith.constant 0 : index
    %250 = vector.load %arg12[%c0_207, %c0_208] : memref<32x5xf32, #tpu.memory_space<vmem>>, vector<32x5xf32>
    %cst_209 = arith.constant dense<0.000000e+00> : vector<4x5xf32>
    %251 = tpu.matmul %249, %250, %cst_209 {dimension_numbers = #tpu.dot_dimension_numbers<[1], [0], [0], [1], [0, 0, 1, 1], [], []>} : vector<4x32xf32>, vector<32x5xf32>, vector<4x5xf32> -> vector<4x5xf32>
    %c0_210 = arith.constant 0 : index
    %c0_211 = arith.constant 0 : index
    %252 = vector.load %arg13[%c0_210, %c0_211] : memref<1x5xf32, #tpu.memory_space<vmem>>, vector<1x5xf32>
    %253 = vector.broadcast %252 : vector<1x5xf32> to vector<4x5xf32>
    %254 = arith.addf %251, %253 : vector<4x5xf32>
    %cst_212 = arith.constant 0.000000e+00 : f32
    %255 = vector.broadcast %cst_212 : f32 to vector<4x91xf32>
    %256 = tpu.concatenate %249, %254, %255 in 1 : vector<4x32xf32>, vector<4x5xf32>, vector<4x91xf32> -> vector<4x128xf32>
    %c0_213 = arith.constant 0 : index
    %c0_214 = arith.constant 0 : index
    %257 = vector.load %arg14[%c0_213, %c0_214] : memref<4x128xf32, #tpu.memory_space<vmem>>, vector<4x128xf32>
    tpu.vector_store %arg14[%c0_213, %c0_214], %256 {strides = array<i32>} : memref<4x128xf32, #tpu.memory_space<vmem>>, vector<4x128xf32>,
    return
  }
}

</mosaic_0001>

<llo_original>
// kernel: tile.19
$region0: #{tile.19}
  %s0 = inlined_call_operand.vmem [shape: s32[4,50], index: 0, kind: input, shape index: {}]
  %s1 = inlined_call_operand.vmem [shape: s32[1,200], index: 1, kind: output, shape index: {}]
  $region1: #{tile.19} parent=0
    #allocation0 [shape = 'u8[8192]{0}', space=vmem, size = 0x2000, scoped, tag = 'scoped mem for output reshape']
    #allocation1 [shape = 'u8[4096]{0}', space=vmem, size = 0x1000, scoped, tag = 'scoped mem for input reshape']
    %s3 = sshll.u32 1, 4
    %s4 = ssub.s32 %s3, 1
    %v5 = vld [vmem:[%s0] sm:%s4]
    %6 = vst [vmem:[#allocation1] sm:%s4] %v5
    %v7 = vld [vmem:[#allocation1] sm:$0x1]
    %vm8 = vcmask 408576
    %9 = vst.msk [vmem:[#allocation0] sm:$0x1] %vm8, %v7
    %s10 = scalar_lea.vmem [#allocation1], 2
    %v11 = vld [vmem:[%s10] sm:$0x1]
    %s12 = scalar_lea.vmem [#allocation1], 2
    %v13 = vld [vmem:[%s12] sm:$0x1]
    %vm14 = vcmask 228352
    %v15 = vsel %vm14, %v13, %v11
    %16 = vrot.lane.b32.xlu0 %v15, 100
    %v17 = vpop.permute.xlu0 %16
    %vm18 = vcmask 179200
    %s19 = scalar_lea.vmem [#allocation0], 8
    %20 = vst.msk [vmem:[%s19] sm:$0x1] %vm18, %v17
    %vm21 = vcmask 1048352
    %22 = vst.msk [vmem:[#allocation0] sm:$0x1] %vm21, %v17
    %s23 = scalar_lea.vmem [#allocation1], 1
    %v24 = vld [vmem:[%s23] sm:$0x1]
    %25 = vrot.lane.b32.xlu0 %v24, 50
    %v26 = vpop.permute.xlu0 %25
    %vm27 = vcmask 818576
    %28 = vst.msk [vmem:[#allocation0] sm:$0x1] %vm27, %v26
    %s29 = scalar_lea.vmem [#allocation1], 3
    %v30 = vld [vmem:[%s29] sm:$0x1]
    %31 = vrot.lane.b32.xlu0 %v30, 22
    %v32 = vpop.permute.xlu0 %31
    %vm33 = vcmask 588976
    %s34 = scalar_lea.vmem [#allocation0], 8
    %35 = vst.msk [vmem:[%s34] sm:$0x1] %vm33, %v32
    %s37 = sshll.u32 1, 1
    %s38 = ssub.s32 %s37, 1
    %v40 = vld [vmem:[#allocation0] sm:%s38]
    %s41 = sshll.u32 1, 1
    %s42 = ssub.s32 %s41, 1
    %43 = vst [vmem:[%s1] sm:%s42] %v40
    %s44 = scalar_lea.vmem [#allocation0], 8
    %v45 = vld [vmem:[%s44] sm:%s38]
    %s46 = sshll.u32 1, 1
    %s47 = ssub.s32 %s46, 1
    %s48 = scalar_lea.vmem %s1, 1
    %49 = vst [vmem:[%s48] sm:%s47] %v45

// kernel: cluster_forward.1
$region0: #{cluster_forward.1}
  #allocation0 [shape = 'u32[]', space=smem, size = 0x4, offset = 0x4, fixed_abs, tag = 'smem constant byte address 0x4 - core index']
  #allocation1 [shape = 'u32[144,128]{1,0:T(1,128)}', space=vmem, size = 0x12000, scoped, tag = 'internal scratch']
  %s0 = inlined_call_operand.vmem [shape: s32[8,200], index: 0, kind: input, shape index: {}]
  %s1 = inlined_call_operand.vmem [shape: s32[1,200], index: 1, kind: input, shape index: {}]
  %s2 = inlined_call_operand.vmem [shape: f32[200,128], index: 2, kind: input, shape index: {}]
  %s3 = inlined_call_operand.vmem [shape: f32[8,3,128,128], index: 3, kind: input, shape index: {}]
  %s4 = inlined_call_operand.vmem [shape: f32[8,1,128], index: 4, kind: input, shape index: {}]
  %s5 = inlined_call_operand.vmem [shape: f32[4,16], index: 5, kind: input, shape index: {}]
  %s6 = inlined_call_operand.vmem [shape: f32[48,256], index: 6, kind: input, shape index: {}]
  %s7 = inlined_call_operand.vmem [shape: f32[1,256], index: 7, kind: input, shape index: {}]
  %s8 = inlined_call_operand.vmem [shape: f32[256,32], index: 8, kind: input, shape index: {}]
  %s9 = inlined_call_operand.vmem [shape: f32[1,32], index: 9, kind: input, shape index: {}]
  %s10 = inlined_call_operand.vmem [shape: f32[1,32], index: 10, kind: input, shape index: {}]
  %s11 = inlined_call_operand.vmem [shape: f32[1,32], index: 11, kind: input, shape index: {}]
  %s12 = inlined_call_operand.vmem [shape: f32[32,5], index: 12, kind: input, shape index: {}]
  %s13 = inlined_call_operand.vmem [shape: f32[1,5], index: 13, kind: input, shape index: {}]
  %s14 = inlined_call_operand.vmem [shape: f32[4,128], index: 14, kind: output, shape index: {}]
  %s15 = sld [smem:[#allocation0]]
  $region66: #{cluster_forward.1} parent=0
    _
  %s17 = ssub.s32 1, %s15
  %s18 = scalar_select 0, %s17, %s15
  // Predicated region
  $region2: #{cluster_forward.1} parent=0 // pred_check
    _
  $region3: #{cluster_forward.1} parent=0 // pred_check_branch
    %20 = sbr.rel (0) target = $region5
  $region4: #{cluster_forward.1} parent=0 // pred_region
    _
  $region5: #{cluster_forward.1} parent=0 // pred_fallthru
    _
  // Predicated region
  $region6: #{cluster_forward.1} parent=0 // pred_check
    _
  $region7: #{cluster_forward.1} parent=0 // pred_check_branch
    %22 = sbr.rel (0) target = $region9
  $region8: #{cluster_forward.1} parent=0 // pred_region
    _
  $region9: #{cluster_forward.1} parent=0 // pred_fallthru
    _
  // Predicated region
  $region10: #{cluster_forward.1} parent=0 // pred_check
    _
  $region11: #{cluster_forward.1} parent=0 // pred_check_branch
    %24 = sbr.rel (0) target = $region13
  $region12: #{cluster_forward.1} parent=0 // pred_region
    _
  $region13: #{cluster_forward.1} parent=0 // pred_fallthru
    _
  // Predicated region
  $region14: #{cluster_forward.1} parent=0 // pred_check
    _
  $region15: #{cluster_forward.1} parent=0 // pred_check_branch
    %26 = sbr.rel (0) target = $region17
  $region16: #{cluster_forward.1} parent=0 // pred_region
    _
  $region17: #{cluster_forward.1} parent=0 // pred_fallthru
    _
  // Predicated region
  $region18: #{cluster_forward.1} parent=0 // pred_check
    _
  $region19: #{cluster_forward.1} parent=0 // pred_check_branch
    %28 = sbr.rel (0) target = $region21
  $region20: #{cluster_forward.1} parent=0 // pred_region
    _
  $region21: #{cluster_forward.1} parent=0 // pred_fallthru
    _
  // Predicated region
  $region22: #{cluster_forward.1} parent=0 // pred_check
    _
  $region23: #{cluster_forward.1} parent=0 // pred_check_branch
    %30 = sbr.rel (0) target = $region25
  $region24: #{cluster_forward.1} parent=0 // pred_region
    _
  $region25: #{cluster_forward.1} parent=0 // pred_fallthru
    _
  // Predicated region
  $region26: #{cluster_forward.1} parent=0 // pred_check
    _
  $region27: #{cluster_forward.1} parent=0 // pred_check_branch
    %32 = sbr.rel (0) target = $region29
  $region28: #{cluster_forward.1} parent=0 // pred_region
    _
  $region29: #{cluster_forward.1} parent=0 // pred_fallthru
    _
  // Predicated region
  $region30: #{cluster_forward.1} parent=0 // pred_check
    _
  $region31: #{cluster_forward.1} parent=0 // pred_check_branch
    %34 = sbr.rel (0) target = $region33
  $region32: #{cluster_forward.1} parent=0 // pred_region
    _
  $region33: #{cluster_forward.1} parent=0 // pred_fallthru
    _
  // Predicated region
  $region34: #{cluster_forward.1} parent=0 // pred_check
    _
  $region35: #{cluster_forward.1} parent=0 // pred_check_branch
    %36 = sbr.rel (0) target = $region37
  $region36: #{cluster_forward.1} parent=0 // pred_region
    _
  $region37: #{cluster_forward.1} parent=0 // pred_fallthru
    _
  // Predicated region
  $region38: #{cluster_forward.1} parent=0 // pred_check
    _
  $region39: #{cluster_forward.1} parent=0 // pred_check_branch
    %38 = sbr.rel (0) target = $region41
  $region40: #{cluster_forward.1} parent=0 // pred_region
    _
  $region41: #{cluster_forward.1} parent=0 // pred_fallthru
    _
  // Predicated region
  $region42: #{cluster_forward.1} parent=0 // pred_check
    _
  $region43: #{cluster_forward.1} parent=0 // pred_check_branch
    %40 = sbr.rel (0) target = $region45
  $region44: #{cluster_forward.1} parent=0 // pred_region
    _
  $region45: #{cluster_forward.1} parent=0 // pred_fallthru
    _
  // Predicated region
  $region46: #{cluster_forward.1} parent=0 // pred_check
    _
  $region47: #{cluster_forward.1} parent=0 // pred_check_branch
    %42 = sbr.rel (0) target = $region49
  $region48: #{cluster_forward.1} parent=0 // pred_region
    _
  $region49: #{cluster_forward.1} parent=0 // pred_fallthru
    _
  // Predicated region
  $region50: #{cluster_forward.1} parent=0 // pred_check
    _
  $region51: #{cluster_forward.1} parent=0 // pred_check_branch
    %44 = sbr.rel (0) target = $region53
  $region52: #{cluster_forward.1} parent=0 // pred_region
    _
  $region53: #{cluster_forward.1} parent=0 // pred_fallthru
    _
  // Predicated region
  $region54: #{cluster_forward.1} parent=0 // pred_check
    _
  $region55: #{cluster_forward.1} parent=0 // pred_check_branch
    %46 = sbr.rel (0) target = $region57
  $region56: #{cluster_forward.1} parent=0 // pred_region
    _
  $region57: #{cluster_forward.1} parent=0 // pred_fallthru
    _
  %v47 = vld [vmem:[%s0] sm:$0xff]
  %v48 = vld [vmem:[%s0 + $0x8] sm:$0xff]
  %v49 = vld [vmem:[%s1] sm:$0x3]
  %v50 = vlaneseq
  %v51 = vshrl.u32 %v50, 7
  %v52 = vsub.s32 0, %v51
  %v53 = vrot.slane %v49, %v52
  %v54 = vlaneseq
  %v55 = vshrl.u32 %v54, 7
  %v56 = vsub.s32 1, %v55
  %v57 = vrot.slane %v49, %v56
  %vm58 = vcmp.eq.s32.totalorder %v47, %v53
  %vm59 = vcmp.eq.s32.totalorder %v48, %v57
  %v60 = vsel %vm58, 1, 0
  %v61 = vsel %vm59, 1, 0
  %v62 = vcvt.s32.f32 %v60
  %v63 = vcvt.s32.f32 %v61
  %v64 = vld [vmem:[%s2] sm:$0xff]
  %v65 = vld [vmem:[%s2 + $0x8] sm:$0xff]
  %v66 = vld [vmem:[%s2 + $0x10] sm:$0xff]
  %v67 = vld [vmem:[%s2 + $0x18] sm:$0xff]
  %v68 = vld [vmem:[%s2 + $0x20] sm:$0xff]
  %v69 = vld [vmem:[%s2 + $0x28] sm:$0xff]
  %v70 = vld [vmem:[%s2 + $0x30] sm:$0xff]
  %v71 = vld [vmem:[%s2 + $0x38] sm:$0xff]
  %v72 = vld [vmem:[%s2 + $0x40] sm:$0xff]
  %v73 = vld [vmem:[%s2 + $0x48] sm:$0xff]
  %v74 = vld [vmem:[%s2 + $0x50] sm:$0xff]
  %v75 = vld [vmem:[%s2 + $0x58] sm:$0xff]
  %v76 = vld [vmem:[%s2 + $0x60] sm:$0xff]
  %v77 = vld [vmem:[%s2 + $0x68] sm:$0xff]
  %v78 = vld [vmem:[%s2 + $0x70] sm:$0xff]
  %v79 = vld [vmem:[%s2 + $0x78] sm:$0xff]
  %v80 = vld [vmem:[%s2 + $0x80] sm:$0xff]
  %v81 = vld [vmem:[%s2 + $0x88] sm:$0xff]
  %v82 = vld [vmem:[%s2 + $0x90] sm:$0xff]
  %v83 = vld [vmem:[%s2 + $0x98] sm:$0xff]
  %v84 = vld [vmem:[%s2 + $0xa0] sm:$0xff]
  %v85 = vld [vmem:[%s2 + $0xa8] sm:$0xff]
  %v86 = vld [vmem:[%s2 + $0xb0] sm:$0xff]
  %v87 = vld [vmem:[%s2 + $0xb8] sm:$0xff]
  %v88 = vld [vmem:[%s2 + $0xc0] sm:$0xff]
  %vm89 = vcmask 588800
  %v91 = vsel %vm89, %v63, 0
  %93 = vmatprep.subr.mxu0 0.0
  %94 = vmatpush1.msra.mxu0 %v79
  %95 = vmatprep.subr.mxu0 0.0
  %96 = vmatpush1.msra.mxu0 %v78
  %97 = vmatprep.subr.mxu0 0.0
  %98 = vmatpush1.msra.mxu0 %v77
  %99 = vmatprep.subr.mxu0 0.0
  %100 = vmatpush1.msra.mxu0 %v76
  %101 = vmatprep.subr.mxu0 0.0
  %102 = vmatpush1.msra.mxu0 %v75
  %103 = vmatprep.subr.mxu0 0.0
  %104 = vmatpush1.msra.mxu0 %v74
  %105 = vmatprep.subr.mxu0 0.0
  %106 = vmatpush1.msra.mxu0 %v73
  %107 = vmatprep.subr.mxu0 0.0
  %108 = vmatpush1.msra.mxu0 %v72
  %109 = vmatprep.subr.mxu0 0.0
  %110 = vmatpush1.msra.mxu0 %v71
  %111 = vmatprep.subr.mxu0 0.0
  %112 = vmatpush1.msra.mxu0 %v70
  %113 = vmatprep.subr.mxu0 0.0
  %114 = vmatpush1.msra.mxu0 %v69
  %115 = vmatprep.subr.mxu0 0.0
  %116 = vmatpush1.msra.mxu0 %v68
  %117 = vmatprep.subr.mxu0 0.0
  %118 = vmatpush1.msra.mxu0 %v67
  %119 = vmatprep.subr.mxu0 0.0
  %120 = vmatpush1.msra.mxu0 %v66
  %121 = vmatprep.subr.mxu0 0.0
  %122 = vmatpush1.msra.mxu0 %v65
  %123 = vmatprep.subr.mxu0 0.0
  %124 = vmatpush1.msra.mxu0 %v64
  %125 = vmatprep.subr.mxu0 0.0
  %126 = vmatpush2.msra.mxu0 0.0
  %127 = vmatprep.subr.mxu0 0.0
  %128 = vmatpush2.msra.mxu0 0.0
  %129 = vmatprep.subr.mxu0 0.0
  %130 = vmatpush2.msra.mxu0 0.0
  %131 = vmatprep.subr.mxu0 0.0
  %132 = vmatpush2.msra.mxu0 0.0
  %133 = vmatprep.subr.mxu0 0.0
  %134 = vmatpush2.msra.mxu0 0.0
  %135 = vmatprep.subr.mxu0 0.0
  %136 = vmatpush2.msra.mxu0 0.0
  %137 = vmatprep.subr.mxu0 0.0
  %138 = vmatpush2.msra.mxu0 0.0
  %139 = vmatprep.subr.mxu0 0.0
  %140 = vmatpush2.msra.mxu0 %v88
  %141 = vmatprep.subr.mxu0 0.0
  %142 = vmatpush2.msra.mxu0 %v87
  %143 = vmatprep.subr.mxu0 0.0
  %144 = vmatpush2.msra.mxu0 %v86
  %145 = vmatprep.subr.mxu0 0.0
  %146 = vmatpush2.msra.mxu0 %v85
  %147 = vmatprep.subr.mxu0 0.0
  %148 = vmatpush2.msra.mxu0 %v84
  %149 = vmatprep.subr.mxu0 0.0
  %150 = vmatpush2.msra.mxu0 %v83
  %151 = vmatprep.subr.mxu0 0.0
  %152 = vmatpush2.msra.mxu0 %v82
  %153 = vmatprep.subr.mxu0 0.0
  %154 = vmatpush2.msra.mxu0 %v81
  %155 = vmatprep.subr.mxu0 0.0
  %156 = vmatpush2.msra.mxu0 %v80
  %157 = vmatprep.mubr.f32.mxu0 %v91
  %158 = vmatmul.mubr.f32.gmra.mxu0 %v62
  %v159 = vpop.f32.mrf.mxu0
  %v160 = vadd.f32 0.0, %v159
  %v161 = vpop.f32.mrf.mxu0
  %162 = vdwg.mxu0
  %v163 = vlaneseq
  %v164 = vshrl.u32 %v163, 7
  %vm165 = vcmp.eq.s32.totalorder %v164, 0
  %vm166 = vcmp.eq.s32.totalorder %v164, 7
  %v167 = vrot.slane %v160, 7
  %v168 = vsel %vm165, 0.0, %v167
  %v169 = vrot.slane %v160, 1
  %v170 = vsel %vm166, 0.0, %v169
  %v171 = vld [vmem:[%s3] sm:$0xff]
  %v172 = vld [vmem:[%s3 + $0x8] sm:$0xff]
  %v173 = vld [vmem:[%s3 + $0x10] sm:$0xff]
  %v174 = vld [vmem:[%s3 + $0x18] sm:$0xff]
  %v175 = vld [vmem:[%s3 + $0x20] sm:$0xff]
  %v176 = vld [vmem:[%s3 + $0x28] sm:$0xff]
  %v177 = vld [vmem:[%s3 + $0x30] sm:$0xff]
  %v178 = vld [vmem:[%s3 + $0x38] sm:$0xff]
  %v179 = vld [vmem:[%s3 + $0x40] sm:$0xff]
  %v180 = vld [vmem:[%s3 + $0x48] sm:$0xff]
  %v181 = vld [vmem:[%s3 + $0x50] sm:$0xff]
  %v182 = vld [vmem:[%s3 + $0x58] sm:$0xff]
  %v183 = vld [vmem:[%s3 + $0x60] sm:$0xff]
  %v184 = vld [vmem:[%s3 + $0x68] sm:$0xff]
  %v185 = vld [vmem:[%s3 + $0x70] sm:$0xff]
  %v186 = vld [vmem:[%s3 + $0x78] sm:$0xff]
  %s187 = scalar_lea.vmem %s3, 128
  %v188 = vld [vmem:[%s187] sm:$0xff]
  %v189 = vld [vmem:[%s187 + $0x8] sm:$0xff]
  %v190 = vld [vmem:[%s187 + $0x10] sm:$0xff]
  %v191 = vld [vmem:[%s187 + $0x18] sm:$0xff]
  %v192 = vld [vmem:[%s187 + $0x20] sm:$0xff]
  %v193 = vld [vmem:[%s187 + $0x28] sm:$0xff]
  %v194 = vld [vmem:[%s187 + $0x30] sm:$0xff]
  %v195 = vld [vmem:[%s187 + $0x38] sm:$0xff]
  %v196 = vld [vmem:[%s187 + $0x40] sm:$0xff]
  %v197 = vld [vmem:[%s187 + $0x48] sm:$0xff]
  %v198 = vld [vmem:[%s187 + $0x50] sm:$0xff]
  %v199 = vld [vmem:[%s187 + $0x58] sm:$0xff]
  %v200 = vld [vmem:[%s187 + $0x60] sm:$0xff]
  %v201 = vld [vmem:[%s187 + $0x68] sm:$0xff]
  %v202 = vld [vmem:[%s187 + $0x70] sm:$0xff]
  %v203 = vld [vmem:[%s187 + $0x78] sm:$0xff]
  %204 = vmatprep.subr.mxu0 0.0
  %205 = vmatpush1.msra.mxu0 %v203
  %206 = vmatprep.subr.mxu0 0.0
  %207 = vmatpush1.msra.mxu0 %v202
  %208 = vmatprep.subr.mxu0 0.0
  %209 = vmatpush1.msra.mxu0 %v201
  %210 = vmatprep.subr.mxu0 0.0
  %211 = vmatpush1.msra.mxu0 %v200
  %212 = vmatprep.subr.mxu0 0.0
  %213 = vmatpush1.msra.mxu0 %v199
  %214 = vmatprep.subr.mxu0 0.0
  %215 = vmatpush1.msra.mxu0 %v198
  %216 = vmatprep.subr.mxu0 0.0
  %217 = vmatpush1.msra.mxu0 %v197
  %218 = vmatprep.subr.mxu0 0.0
  %219 = vmatpush1.msra.mxu0 %v196
  %220 = vmatprep.subr.mxu0 0.0
  %221 = vmatpush1.msra.mxu0 %v195
  %222 = vmatprep.subr.mxu0 0.0
  %223 = vmatpush1.msra.mxu0 %v194
  %224 = vmatprep.subr.mxu0 0.0
  %225 = vmatpush1.msra.mxu0 %v193
  %226 = vmatprep.subr.mxu0 0.0
  %227 = vmatpush1.msra.mxu0 %v192
  %228 = vmatprep.subr.mxu0 0.0
  %229 = vmatpush1.msra.mxu0 %v191
  %230 = vmatprep.subr.mxu0 0.0
  %231 = vmatpush1.msra.mxu0 %v190
  %232 = vmatprep.subr.mxu0 0.0
  %233 = vmatpush1.msra.mxu0 %v189
  %234 = vmatprep.subr.mxu0 0.0
  %235 = vmatpush1.msra.mxu0 %v188
  %236 = vmatprep.subr.mxu0 0.0
  %237 = vmatpush2.msra.mxu0 0.0
  %238 = vmatprep.subr.mxu0 0.0
  %239 = vmatpush2.msra.mxu0 0.0
  %240 = vmatprep.subr.mxu0 0.0
  %241 = vmatpush2.msra.mxu0 0.0
  %242 = vmatprep.subr.mxu0 0.0
  %243 = vmatpush2.msra.mxu0 0.0
  %244 = vmatprep.subr.mxu0 0.0
  %245 = vmatpush2.msra.mxu0 0.0
  %246 = vmatprep.subr.mxu0 0.0
  %247 = vmatpush2.msra.mxu0 0.0
  %248 = vmatprep.subr.mxu0 0.0
  %249 = vmatpush2.msra.mxu0 0.0
  %250 = vmatprep.subr.mxu0 0.0
  %251 = vmatpush2.msra.mxu0 0.0
  %252 = vmatprep.subr.mxu0 0.0
  %253 = vmatpush2.msra.mxu0 0.0
  %254 = vmatprep.subr.mxu0 0.0
  %255 = vmatpush2.msra.mxu0 0.0
  %256 = vmatprep.subr.mxu0 0.0
  %257 = vmatpush2.msra.mxu0 0.0
  %258 = vmatprep.subr.mxu0 0.0
  %259 = vmatpush2.msra.mxu0 0.0
  %260 = vmatprep.subr.mxu0 0.0
  %261 = vmatpush2.msra.mxu0 0.0
  %262 = vmatprep.subr.mxu0 0.0
  %263 = vmatpush2.msra.mxu0 0.0
  %264 = vmatprep.subr.mxu0 0.0
  %265 = vmatpush2.msra.mxu0 0.0
  %266 = vmatprep.subr.mxu0 0.0
  %267 = vmatpush2.msra.mxu0 0.0
  %268 = vmatprep.mubr.f32.mxu0 0.0
  %269 = vmatmul.mubr.f32.gmra.mxu0 %v160
  %v270 = vpop.f32.mrf.mxu0
  %v271 = vadd.f32 0.0, %v270
  %v272 = vpop.f32.mrf.mxu0
  %273 = vdwg.mxu0
  %274 = vmatprep.subr.mxu0 0.0
  %275 = vmatpush1.msra.mxu0 %v186
  %276 = vmatprep.subr.mxu0 0.0
  %277 = vmatpush1.msra.mxu0 %v185
  %278 = vmatprep.subr.mxu0 0.0
  %279 = vmatpush1.msra.mxu0 %v184
  %280 = vmatprep.subr.mxu0 0.0
  %281 = vmatpush1.msra.mxu0 %v183
  %282 = vmatprep.subr.mxu0 0.0
  %283 = vmatpush1.msra.mxu0 %v182
  %284 = vmatprep.subr.mxu0 0.0
  %285 = vmatpush1.msra.mxu0 %v181
  %286 = vmatprep.subr.mxu0 0.0
  %287 = vmatpush1.msra.mxu0 %v180
  %288 = vmatprep.subr.mxu0 0.0
  %289 = vmatpush1.msra.mxu0 %v179
  %290 = vmatprep.subr.mxu0 0.0
  %291 = vmatpush1.msra.mxu0 %v178
  %292 = vmatprep.subr.mxu0 0.0
  %293 = vmatpush1.msra.mxu0 %v177
  %294 = vmatprep.subr.mxu0 0.0
  %295 = vmatpush1.msra.mxu0 %v176
  %296 = vmatprep.subr.mxu0 0.0
  %297 = vmatpush1.msra.mxu0 %v175
  %298 = vmatprep.subr.mxu0 0.0
  %299 = vmatpush1.msra.mxu0 %v174
  %300 = vmatprep.subr.mxu0 0.0
  %301 = vmatpush1.msra.mxu0 %v173
  %302 = vmatprep.subr.mxu0 0.0
  %303 = vmatpush1.msra.mxu0 %v172
  %304 = vmatprep.subr.mxu0 0.0
  %305 = vmatpush1.msra.mxu0 %v171
  %306 = vmatprep.subr.mxu0 0.0
  %307 = vmatpush2.msra.mxu0 0.0
  %308 = vmatprep.subr.mxu0 0.0
  %309 = vmatpush2.msra.mxu0 0.0
  %310 = vmatprep.subr.mxu0 0.0
  %311 = vmatpush2.msra.mxu0 0.0
  %312 = vmatprep.subr.mxu0 0.0
  %313 = vmatpush2.msra.mxu0 0.0
  %314 = vmatprep.subr.mxu0 0.0
  %315 = vmatpush2.msra.mxu0 0.0
  %316 = vmatprep.subr.mxu0 0.0
  %317 = vmatpush2.msra.mxu0 0.0
  %318 = vmatprep.subr.mxu0 0.0
  %319 = vmatpush2.msra.mxu0 0.0
  %320 = vmatprep.subr.mxu0 0.0
  %321 = vmatpush2.msra.mxu0 0.0
  %322 = vmatprep.subr.mxu0 0.0
  %323 = vmatpush2.msra.mxu0 0.0
  %324 = vmatprep.subr.mxu0 0.0
  %325 = vmatpush2.msra.mxu0 0.0
  %326 = vmatprep.subr.mxu0 0.0
  %327 = vmatpush2.msra.mxu0 0.0
  %328 = vmatprep.subr.mxu0 0.0
  %329 = vmatpush2.msra.mxu0 0.0
  %330 = vmatprep.subr.mxu0 0.0
  %331 = vmatpush2.msra.mxu0 0.0
  %332 = vmatprep.subr.mxu0 0.0
  %333 = vmatpush2.msra.mxu0 0.0
  %334 = vmatprep.subr.mxu0 0.0
  %335 = vmatpush2.msra.mxu0 0.0
  %336 = vmatprep.subr.mxu0 0.0
  %337 = vmatpush2.msra.mxu0 0.0
  %338 = vmatprep.mubr.f32.mxu0 0.0
  %339 = vmatmul.mubr.f32.gmra.mxu0 %v168
  %v340 = vpop.f32.mrf.mxu0
  %v341 = vadd.f32 %v271, %v340
  %v342 = vpop.f32.mrf.mxu0
  %343 = vdwg.mxu0
  %s344 = scalar_lea.vmem %s3, 256
  %v345 = vld [vmem:[%s344] sm:$0xff]
  %v346 = vld [vmem:[%s344 + $0x8] sm:$0xff]
  %v347 = vld [vmem:[%s344 + $0x10] sm:$0xff]
  %v348 = vld [vmem:[%s344 + $0x18] sm:$0xff]
  %v349 = vld [vmem:[%s344 + $0x20] sm:$0xff]
  %v350 = vld [vmem:[%s344 + $0x28] sm:$0xff]
  %v351 = vld [vmem:[%s344 + $0x30] sm:$0xff]
  %v352 = vld [vmem:[%s344 + $0x38] sm:$0xff]
  %v353 = vld [vmem:[%s344 + $0x40] sm:$0xff]
  %v354 = vld [vmem:[%s344 + $0x48] sm:$0xff]
  %v355 = vld [vmem:[%s344 + $0x50] sm:$0xff]
  %v356 = vld [vmem:[%s344 + $0x58] sm:$0xff]
  %v357 = vld [vmem:[%s344 + $0x60] sm:$0xff]
  %v358 = vld [vmem:[%s344 + $0x68] sm:$0xff]
  %v359 = vld [vmem:[%s344 + $0x70] sm:$0xff]
  %v360 = vld [vmem:[%s344 + $0x78] sm:$0xff]
  %361 = vmatprep.subr.mxu0 0.0
  %362 = vmatpush1.msra.mxu0 %v360
  %363 = vmatprep.subr.mxu0 0.0
  %364 = vmatpush1.msra.mxu0 %v359
  %365 = vmatprep.subr.mxu0 0.0
  %366 = vmatpush1.msra.mxu0 %v358
  %367 = vmatprep.subr.mxu0 0.0
  %368 = vmatpush1.msra.mxu0 %v357
  %369 = vmatprep.subr.mxu0 0.0
  %370 = vmatpush1.msra.mxu0 %v356
  %371 = vmatprep.subr.mxu0 0.0
  %372 = vmatpush1.msra.mxu0 %v355
  %373 = vmatprep.subr.mxu0 0.0
  %374 = vmatpush1.msra.mxu0 %v354
  %375 = vmatprep.subr.mxu0 0.0
  %376 = vmatpush1.msra.mxu0 %v353
  %377 = vmatprep.subr.mxu0 0.0
  %378 = vmatpush1.msra.mxu0 %v352
  %379 = vmatprep.subr.mxu0 0.0
  %380 = vmatpush1.msra.mxu0 %v351
  %381 = vmatprep.subr.mxu0 0.0
  %382 = vmatpush1.msra.mxu0 %v350
  %383 = vmatprep.subr.mxu0 0.0
  %384 = vmatpush1.msra.mxu0 %v349
  %385 = vmatprep.subr.mxu0 0.0
  %386 = vmatpush1.msra.mxu0 %v348
  %387 = vmatprep.subr.mxu0 0.0
  %388 = vmatpush1.msra.mxu0 %v347
  %389 = vmatprep.subr.mxu0 0.0
  %390 = vmatpush1.msra.mxu0 %v346
  %391 = vmatprep.subr.mxu0 0.0
  %392 = vmatpush1.msra.mxu0 %v345
  %393 = vmatprep.subr.mxu0 0.0
  %394 = vmatpush2.msra.mxu0 0.0
  %395 = vmatprep.subr.mxu0 0.0
  %396 = vmatpush2.msra.mxu0 0.0
  %397 = vmatprep.subr.mxu0 0.0
  %398 = vmatpush2.msra.mxu0 0.0
  %399 = vmatprep.subr.mxu0 0.0
  %400 = vmatpush2.msra.mxu0 0.0
  %401 = vmatprep.subr.mxu0 0.0
  %402 = vmatpush2.msra.mxu0 0.0
  %403 = vmatprep.subr.mxu0 0.0
  %404 = vmatpush2.msra.mxu0 0.0
  %405 = vmatprep.subr.mxu0 0.0
  %406 = vmatpush2.msra.mxu0 0.0
  %407 = vmatprep.subr.mxu0 0.0
  %408 = vmatpush2.msra.mxu0 0.0
  %409 = vmatprep.subr.mxu0 0.0
  %410 = vmatpush2.msra.mxu0 0.0
  %411 = vmatprep.subr.mxu0 0.0
  %412 = vmatpush2.msra.mxu0 0.0
  %413 = vmatprep.subr.mxu0 0.0
  %414 = vmatpush2.msra.mxu0 0.0
  %415 = vmatprep.subr.mxu0 0.0
  %416 = vmatpush2.msra.mxu0 0.0
  %417 = vmatprep.subr.mxu0 0.0
  %418 = vmatpush2.msra.mxu0 0.0
  %419 = vmatprep.subr.mxu0 0.0
  %420 = vmatpush2.msra.mxu0 0.0
  %421 = vmatprep.subr.mxu0 0.0
  %422 = vmatpush2.msra.mxu0 0.0
  %423 = vmatprep.subr.mxu0 0.0
  %424 = vmatpush2.msra.mxu0 0.0
  %425 = vmatprep.mubr.f32.mxu0 0.0
  %426 = vmatmul.mubr.f32.gmra.mxu0 %v170
  %v427 = vpop.f32.mrf.mxu0
  %v428 = vadd.f32 0.0, %v427
  %v429 = vpop.f32.mrf.mxu0
  %430 = vdwg.mxu0
  %v431 = vadd.f32 %v341, %v428
  %v432 = vld [vmem:[%s4] sm:$0x1]
  %v434 = vlaneseq
  %v435 = vshrl.u32 %v434, 7
  %v436 = vsub.s32 0, %v435
  %v437 = vrot.slane %v432, %v436
  %v439 = vadd.f32 %v431, %v437
  %v440 = vmax.f32 %v439, 0.0
  %v441 = vrot.slane %v440, 7
  %v442 = vsel %vm165, 0.0, %v441
  %v443 = vrot.slane %v440, 1
  %v444 = vsel %vm166, 0.0, %v443
  %s445 = scalar_lea.vmem %s3, 384
  %v446 = vld [vmem:[%s445] sm:$0xff]
  %v447 = vld [vmem:[%s445 + $0x8] sm:$0xff]
  %v448 = vld [vmem:[%s445 + $0x10] sm:$0xff]
  %v449 = vld [vmem:[%s445 + $0x18] sm:$0xff]
  %v450 = vld [vmem:[%s445 + $0x20] sm:$0xff]
  %v451 = vld [vmem:[%s445 + $0x28] sm:$0xff]
  %v452 = vld [vmem:[%s445 + $0x30] sm:$0xff]
  %v453 = vld [vmem:[%s445 + $0x38] sm:$0xff]
  %v454 = vld [vmem:[%s445 + $0x40] sm:$0xff]
  %v455 = vld [vmem:[%s445 + $0x48] sm:$0xff]
  %v456 = vld [vmem:[%s445 + $0x50] sm:$0xff]
  %v457 = vld [vmem:[%s445 + $0x58] sm:$0xff]
  %v458 = vld [vmem:[%s445 + $0x60] sm:$0xff]
  %v459 = vld [vmem:[%s445 + $0x68] sm:$0xff]
  %v460 = vld [vmem:[%s445 + $0x70] sm:$0xff]
  %v461 = vld [vmem:[%s445 + $0x78] sm:$0xff]
  %s462 = scalar_lea.vmem %s3, 512
  %v463 = vld [vmem:[%s462] sm:$0xff]
  %v464 = vld [vmem:[%s462 + $0x8] sm:$0xff]
  %v465 = vld [vmem:[%s462 + $0x10] sm:$0xff]
  %v466 = vld [vmem:[%s462 + $0x18] sm:$0xff]
  %v467 = vld [vmem:[%s462 + $0x20] sm:$0xff]
  %v468 = vld [vmem:[%s462 + $0x28] sm:$0xff]
  %v469 = vld [vmem:[%s462 + $0x30] sm:$0xff]
  %v470 = vld [vmem:[%s462 + $0x38] sm:$0xff]
  %v471 = vld [vmem:[%s462 + $0x40] sm:$0xff]
  %v472 = vld [vmem:[%s462 + $0x48] sm:$0xff]
  %v473 = vld [vmem:[%s462 + $0x50] sm:$0xff]
  %v474 = vld [vmem:[%s462 + $0x58] sm:$0xff]
  %v475 = vld [vmem:[%s462 + $0x60] sm:$0xff]
  %v476 = vld [vmem:[%s462 + $0x68] sm:$0xff]
  %v477 = vld [vmem:[%s462 + $0x70] sm:$0xff]
  %v478 = vld [vmem:[%s462 + $0x78] sm:$0xff]
  %479 = vmatprep.subr.mxu0 0.0
  %480 = vmatpush1.msra.mxu0 %v478
  %481 = vmatprep.subr.mxu0 0.0
  %482 = vmatpush1.msra.mxu0 %v477
  %483 = vmatprep.subr.mxu0 0.0
  %484 = vmatpush1.msra.mxu0 %v476
  %485 = vmatprep.subr.mxu0 0.0
  %486 = vmatpush1.msra.mxu0 %v475
  %487 = vmatprep.subr.mxu0 0.0
  %488 = vmatpush1.msra.mxu0 %v474
  %489 = vmatprep.subr.mxu0 0.0
  %490 = vmatpush1.msra.mxu0 %v473
  %491 = vmatprep.subr.mxu0 0.0
  %492 = vmatpush1.msra.mxu0 %v472
  %493 = vmatprep.subr.mxu0 0.0
  %494 = vmatpush1.msra.mxu0 %v471
  %495 = vmatprep.subr.mxu0 0.0
  %496 = vmatpush1.msra.mxu0 %v470
  %497 = vmatprep.subr.mxu0 0.0
  %498 = vmatpush1.msra.mxu0 %v469
  %499 = vmatprep.subr.mxu0 0.0
  %500 = vmatpush1.msra.mxu0 %v468
  %501 = vmatprep.subr.mxu0 0.0
  %502 = vmatpush1.msra.mxu0 %v467
  %503 = vmatprep.subr.mxu0 0.0
  %504 = vmatpush1.msra.mxu0 %v466
  %505 = vmatprep.subr.mxu0 0.0
  %506 = vmatpush1.msra.mxu0 %v465
  %507 = vmatprep.subr.mxu0 0.0
  %508 = vmatpush1.msra.mxu0 %v464
  %509 = vmatprep.subr.mxu0 0.0
  %510 = vmatpush1.msra.mxu0 %v463
  %511 = vmatprep.subr.mxu0 0.0
  %512 = vmatpush2.msra.mxu0 0.0
  %513 = vmatprep.subr.mxu0 0.0
  %514 = vmatpush2.msra.mxu0 0.0
  %515 = vmatprep.subr.mxu0 0.0
  %516 = vmatpush2.msra.mxu0 0.0
  %517 = vmatprep.subr.mxu0 0.0
  %518 = vmatpush2.msra.mxu0 0.0
  %519 = vmatprep.subr.mxu0 0.0
  %520 = vmatpush2.msra.mxu0 0.0
  %521 = vmatprep.subr.mxu0 0.0
  %522 = vmatpush2.msra.mxu0 0.0
  %523 = vmatprep.subr.mxu0 0.0
  %524 = vmatpush2.msra.mxu0 0.0
  %525 = vmatprep.subr.mxu0 0.0
  %526 = vmatpush2.msra.mxu0 0.0
  %527 = vmatprep.subr.mxu0 0.0
  %528 = vmatpush2.msra.mxu0 0.0
  %529 = vmatprep.subr.mxu0 0.0
  %530 = vmatpush2.msra.mxu0 0.0
  %531 = vmatprep.subr.mxu0 0.0
  %532 = vmatpush2.msra.mxu0 0.0
  %533 = vmatprep.subr.mxu0 0.0
  %534 = vmatpush2.msra.mxu0 0.0
  %535 = vmatprep.subr.mxu0 0.0
  %536 = vmatpush2.msra.mxu0 0.0
  %537 = vmatprep.subr.mxu0 0.0
  %538 = vmatpush2.msra.mxu0 0.0
  %539 = vmatprep.subr.mxu0 0.0
  %540 = vmatpush2.msra.mxu0 0.0
  %541 = vmatprep.subr.mxu0 0.0
  %542 = vmatpush2.msra.mxu0 0.0
  %543 = vmatprep.mubr.f32.mxu0 0.0
  %544 = vmatmul.mubr.f32.gmra.mxu0 %v440
  %v545 = vpop.f32.mrf.mxu0
  %v546 = vadd.f32 0.0, %v545
  %v547 = vpop.f32.mrf.mxu0
  %548 = vdwg.mxu0
  %549 = vmatprep.subr.mxu0 0.0
  %550 = vmatpush1.msra.mxu0 %v461
  %551 = vmatprep.subr.mxu0 0.0
  %552 = vmatpush1.msra.mxu0 %v460
  %553 = vmatprep.subr.mxu0 0.0
  %554 = vmatpush1.msra.mxu0 %v459
  %555 = vmatprep.subr.mxu0 0.0
  %556 = vmatpush1.msra.mxu0 %v458
  %557 = vmatprep.subr.mxu0 0.0
  %558 = vmatpush1.msra.mxu0 %v457
  %559 = vmatprep.subr.mxu0 0.0
  %560 = vmatpush1.msra.mxu0 %v456
  %561 = vmatprep.subr.mxu0 0.0
  %562 = vmatpush1.msra.mxu0 %v455
  %563 = vmatprep.subr.mxu0 0.0
  %564 = vmatpush1.msra.mxu0 %v454
  %565 = vmatprep.subr.mxu0 0.0
  %566 = vmatpush1.msra.mxu0 %v453
  %567 = vmatprep.subr.mxu0 0.0
  %568 = vmatpush1.msra.mxu0 %v452
  %569 = vmatprep.subr.mxu0 0.0
  %570 = vmatpush1.msra.mxu0 %v451
  %571 = vmatprep.subr.mxu0 0.0
  %572 = vmatpush1.msra.mxu0 %v450
  %573 = vmatprep.subr.mxu0 0.0
  %574 = vmatpush1.msra.mxu0 %v449
  %575 = vmatprep.subr.mxu0 0.0
  %576 = vmatpush1.msra.mxu0 %v448
  %577 = vmatprep.subr.mxu0 0.0
  %578 = vmatpush1.msra.mxu0 %v447
  %579 = vmatprep.subr.mxu0 0.0
  %580 = vmatpush1.msra.mxu0 %v446
  %581 = vmatprep.subr.mxu0 0.0
  %582 = vmatpush2.msra.mxu0 0.0
  %583 = vmatprep.subr.mxu0 0.0
  %584 = vmatpush2.msra.mxu0 0.0
  %585 = vmatprep.subr.mxu0 0.0
  %586 = vmatpush2.msra.mxu0 0.0
  %587 = vmatprep.subr.mxu0 0.0
  %588 = vmatpush2.msra.mxu0 0.0
  %589 = vmatprep.subr.mxu0 0.0
  %590 = vmatpush2.msra.mxu0 0.0
  %591 = vmatprep.subr.mxu0 0.0
  %592 = vmatpush2.msra.mxu0 0.0
  %593 = vmatprep.subr.mxu0 0.0
  %594 = vmatpush2.msra.mxu0 0.0
  %595 = vmatprep.subr.mxu0 0.0
  %596 = vmatpush2.msra.mxu0 0.0
  %597 = vmatprep.subr.mxu0 0.0
  %598 = vmatpush2.msra.mxu0 0.0
  %599 = vmatprep.subr.mxu0 0.0
  %600 = vmatpush2.msra.mxu0 0.0
  %601 = vmatprep.subr.mxu0 0.0
  %602 = vmatpush2.msra.mxu0 0.0
  %603 = vmatprep.subr.mxu0 0.0
  %604 = vmatpush2.msra.mxu0 0.0
  %605 = vmatprep.subr.mxu0 0.0
  %606 = vmatpush2.msra.mxu0 0.0
  %607 = vmatprep.subr.mxu0 0.0
  %608 = vmatpush2.msra.mxu0 0.0
  %609 = vmatprep.subr.mxu0 0.0
  %610 = vmatpush2.msra.mxu0 0.0
  %611 = vmatprep.subr.mxu0 0.0
  %612 = vmatpush2.msra.mxu0 0.0
  %613 = vmatprep.mubr.f32.mxu0 0.0
  %614 = vmatmul.mubr.f32.gmra.mxu0 %v442
  %v615 = vpop.f32.mrf.mxu0
  %v616 = vadd.f32 %v546, %v615
  %v617 = vpop.f32.mrf.mxu0
  %618 = vdwg.mxu0
  %s619 = scalar_lea.vmem %s3, 640
  %v620 = vld [vmem:[%s619] sm:$0xff]
  %v621 = vld [vmem:[%s619 + $0x8] sm:$0xff]
  %v622 = vld [vmem:[%s619 + $0x10] sm:$0xff]
  %v623 = vld [vmem:[%s619 + $0x18] sm:$0xff]
  %v624 = vld [vmem:[%s619 + $0x20] sm:$0xff]
  %v625 = vld [vmem:[%s619 + $0x28] sm:$0xff]
  %v626 = vld [vmem:[%s619 + $0x30] sm:$0xff]
  %v627 = vld [vmem:[%s619 + $0x38] sm:$0xff]
  %v628 = vld [vmem:[%s619 + $0x40] sm:$0xff]
  %v629 = vld [vmem:[%s619 + $0x48] sm:$0xff]
  %v630 = vld [vmem:[%s619 + $0x50] sm:$0xff]
  %v631 = vld [vmem:[%s619 + $0x58] sm:$0xff]
  %v632 = vld [vmem:[%s619 + $0x60] sm:$0xff]
  %v633 = vld [vmem:[%s619 + $0x68] sm:$0xff]
  %v634 = vld [vmem:[%s619 + $0x70] sm:$0xff]
  %v635 = vld [vmem:[%s619 + $0x78] sm:$0xff]
  %636 = vmatprep.subr.mxu0 0.0
  %637 = vmatpush1.msra.mxu0 %v635
  %638 = vmatprep.subr.mxu0 0.0
  %639 = vmatpush1.msra.mxu0 %v634
  %640 = vmatprep.subr.mxu0 0.0
  %641 = vmatpush1.msra.mxu0 %v633
  %642 = vmatprep.subr.mxu0 0.0
  %643 = vmatpush1.msra.mxu0 %v632
  %644 = vmatprep.subr.mxu0 0.0
  %645 = vmatpush1.msra.mxu0 %v631
  %646 = vmatprep.subr.mxu0 0.0
  %647 = vmatpush1.msra.mxu0 %v630
  %648 = vmatprep.subr.mxu0 0.0
  %649 = vmatpush1.msra.mxu0 %v629
  %650 = vmatprep.subr.mxu0 0.0
  %651 = vmatpush1.msra.mxu0 %v628
  %652 = vmatprep.subr.mxu0 0.0
  %653 = vmatpush1.msra.mxu0 %v627
  %654 = vmatprep.subr.mxu0 0.0
  %655 = vmatpush1.msra.mxu0 %v626
  %656 = vmatprep.subr.mxu0 0.0
  %657 = vmatpush1.msra.mxu0 %v625
  %658 = vmatprep.subr.mxu0 0.0
  %659 = vmatpush1.msra.mxu0 %v624
  %660 = vmatprep.subr.mxu0 0.0
  %661 = vmatpush1.msra.mxu0 %v623
  %662 = vmatprep.subr.mxu0 0.0
  %663 = vmatpush1.msra.mxu0 %v622
  %664 = vmatprep.subr.mxu0 0.0
  %665 = vmatpush1.msra.mxu0 %v621
  %666 = vmatprep.subr.mxu0 0.0
  %667 = vmatpush1.msra.mxu0 %v620
  %668 = vmatprep.subr.mxu0 0.0
  %669 = vmatpush2.msra.mxu0 0.0
  %670 = vmatprep.subr.mxu0 0.0
  %671 = vmatpush2.msra.mxu0 0.0
  %672 = vmatprep.subr.mxu0 0.0
  %673 = vmatpush2.msra.mxu0 0.0
  %674 = vmatprep.subr.mxu0 0.0
  %675 = vmatpush2.msra.mxu0 0.0
  %676 = vmatprep.subr.mxu0 0.0
  %677 = vmatpush2.msra.mxu0 0.0
  %678 = vmatprep.subr.mxu0 0.0
  %679 = vmatpush2.msra.mxu0 0.0
  %680 = vmatprep.subr.mxu0 0.0
  %681 = vmatpush2.msra.mxu0 0.0
  %682 = vmatprep.subr.mxu0 0.0
  %683 = vmatpush2.msra.mxu0 0.0
  %684 = vmatprep.subr.mxu0 0.0
  %685 = vmatpush2.msra.mxu0 0.0
  %686 = vmatprep.subr.mxu0 0.0
  %687 = vmatpush2.msra.mxu0 0.0
  %688 = vmatprep.subr.mxu0 0.0
  %689 = vmatpush2.msra.mxu0 0.0
  %690 = vmatprep.subr.mxu0 0.0
  %691 = vmatpush2.msra.mxu0 0.0
  %692 = vmatprep.subr.mxu0 0.0
  %693 = vmatpush2.msra.mxu0 0.0
  %694 = vmatprep.subr.mxu0 0.0
  %695 = vmatpush2.msra.mxu0 0.0
  %696 = vmatprep.subr.mxu0 0.0
  %697 = vmatpush2.msra.mxu0 0.0
  %698 = vmatprep.subr.mxu0 0.0
  %699 = vmatpush2.msra.mxu0 0.0
  %700 = vmatprep.mubr.f32.mxu0 0.0
  %701 = vmatmul.mubr.f32.gmra.mxu0 %v444
  %v702 = vpop.f32.mrf.mxu0
  %v703 = vadd.f32 0.0, %v702
  %v704 = vpop.f32.mrf.mxu0
  %705 = vdwg.mxu0
  %v706 = vadd.f32 %v616, %v703
  %s707 = scalar_lea.vmem %s4, 1
  %v708 = vld [vmem:[%s707] sm:$0x1]
  %v710 = vlaneseq
  %v711 = vshrl.u32 %v710, 7
  %v712 = vsub.s32 0, %v711
  %v713 = vrot.slane %v708, %v712
  %v715 = vadd.f32 %v706, %v713
  %v716 = vadd.f32 %v715, %v160
  %v717 = vmax.f32 %v716, 0.0
  %v718 = vrot.slane %v717, 7
  %v719 = vsel %vm165, 0.0, %v718
  %v720 = vrot.slane %v717, 1
  %v721 = vsel %vm166, 0.0, %v720
  %s722 = scalar_lea.vmem %s3, 768
  %v723 = vld [vmem:[%s722] sm:$0xff]
  %v724 = vld [vmem:[%s722 + $0x8] sm:$0xff]
  %v725 = vld [vmem:[%s722 + $0x10] sm:$0xff]
  %v726 = vld [vmem:[%s722 + $0x18] sm:$0xff]
  %v727 = vld [vmem:[%s722 + $0x20] sm:$0xff]
  %v728 = vld [vmem:[%s722 + $0x28] sm:$0xff]
  %v729 = vld [vmem:[%s722 + $0x30] sm:$0xff]
  %v730 = vld [vmem:[%s722 + $0x38] sm:$0xff]
  %v731 = vld [vmem:[%s722 + $0x40] sm:$0xff]
  %v732 = vld [vmem:[%s722 + $0x48] sm:$0xff]
  %v733 = vld [vmem:[%s722 + $0x50] sm:$0xff]
  %v734 = vld [vmem:[%s722 + $0x58] sm:$0xff]
  %v735 = vld [vmem:[%s722 + $0x60] sm:$0xff]
  %v736 = vld [vmem:[%s722 + $0x68] sm:$0xff]
  %v737 = vld [vmem:[%s722 + $0x70] sm:$0xff]
  %v738 = vld [vmem:[%s722 + $0x78] sm:$0xff]
  %s739 = scalar_lea.vmem %s3, 896
  %v740 = vld [vmem:[%s739] sm:$0xff]
  %v741 = vld [vmem:[%s739 + $0x8] sm:$0xff]
  %v742 = vld [vmem:[%s739 + $0x10] sm:$0xff]
  %v743 = vld [vmem:[%s739 + $0x18] sm:$0xff]
  %v744 = vld [vmem:[%s739 + $0x20] sm:$0xff]
  %v745 = vld [vmem:[%s739 + $0x28] sm:$0xff]
  %v746 = vld [vmem:[%s739 + $0x30] sm:$0xff]
  %v747 = vld [vmem:[%s739 + $0x38] sm:$0xff]
  %v748 = vld [vmem:[%s739 + $0x40] sm:$0xff]
  %v749 = vld [vmem:[%s739 + $0x48] sm:$0xff]
  %v750 = vld [vmem:[%s739 + $0x50] sm:$0xff]
  %v751 = vld [vmem:[%s739 + $0x58] sm:$0xff]
  %v752 = vld [vmem:[%s739 + $0x60] sm:$0xff]
  %v753 = vld [vmem:[%s739 + $0x68] sm:$0xff]
  %v754 = vld [vmem:[%s739 + $0x70] sm:$0xff]
  %v755 = vld [vmem:[%s739 + $0x78] sm:$0xff]
  %756 = vmatprep.subr.mxu0 0.0
  %757 = vmatpush1.msra.mxu0 %v755
  %758 = vmatprep.subr.mxu0 0.0
  %759 = vmatpush1.msra.mxu0 %v754
  %760 = vmatprep.subr.mxu0 0.0
  %761 = vmatpush1.msra.mxu0 %v753
  %762 = vmatprep.subr.mxu0 0.0
  %763 = vmatpush1.msra.mxu0 %v752
  %764 = vmatprep.subr.mxu0 0.0
  %765 = vmatpush1.msra.mxu0 %v751
  %766 = vmatprep.subr.mxu0 0.0
  %767 = vmatpush1.msra.mxu0 %v750
  %768 = vmatprep.subr.mxu0 0.0
  %769 = vmatpush1.msra.mxu0 %v749
  %770 = vmatprep.subr.mxu0 0.0
  %771 = vmatpush1.msra.mxu0 %v748
  %772 = vmatprep.subr.mxu0 0.0
  %773 = vmatpush1.msra.mxu0 %v747
  %774 = vmatprep.subr.mxu0 0.0
  %775 = vmatpush1.msra.mxu0 %v746
  %776 = vmatprep.subr.mxu0 0.0
  %777 = vmatpush1.msra.mxu0 %v745
  %778 = vmatprep.subr.mxu0 0.0
  %779 = vmatpush1.msra.mxu0 %v744
  %780 = vmatprep.subr.mxu0 0.0
  %781 = vmatpush1.msra.mxu0 %v743
  %782 = vmatprep.subr.mxu0 0.0
  %783 = vmatpush1.msra.mxu0 %v742
  %784 = vmatprep.subr.mxu0 0.0
  %785 = vmatpush1.msra.mxu0 %v741
  %786 = vmatprep.subr.mxu0 0.0
  %787 = vmatpush1.msra.mxu0 %v740
  %788 = vmatprep.subr.mxu0 0.0
  %789 = vmatpush2.msra.mxu0 0.0
  %790 = vmatprep.subr.mxu0 0.0
  %791 = vmatpush2.msra.mxu0 0.0
  %792 = vmatprep.subr.mxu0 0.0
  %793 = vmatpush2.msra.mxu0 0.0
  %794 = vmatprep.subr.mxu0 0.0
  %795 = vmatpush2.msra.mxu0 0.0
  %796 = vmatprep.subr.mxu0 0.0
  %797 = vmatpush2.msra.mxu0 0.0
  %798 = vmatprep.subr.mxu0 0.0
  %799 = vmatpush2.msra.mxu0 0.0
  %800 = vmatprep.subr.mxu0 0.0
  %801 = vmatpush2.msra.mxu0 0.0
  %802 = vmatprep.subr.mxu0 0.0
  %803 = vmatpush2.msra.mxu0 0.0
  %804 = vmatprep.subr.mxu0 0.0
  %805 = vmatpush2.msra.mxu0 0.0
  %806 = vmatprep.subr.mxu0 0.0
  %807 = vmatpush2.msra.mxu0 0.0
  %808 = vmatprep.subr.mxu0 0.0
  %809 = vmatpush2.msra.mxu0 0.0
  %810 = vmatprep.subr.mxu0 0.0
  %811 = vmatpush2.msra.mxu0 0.0
  %812 = vmatprep.subr.mxu0 0.0
  %813 = vmatpush2.msra.mxu0 0.0
  %814 = vmatprep.subr.mxu0 0.0
  %815 = vmatpush2.msra.mxu0 0.0
  %816 = vmatprep.subr.mxu0 0.0
  %817 = vmatpush2.msra.mxu0 0.0
  %818 = vmatprep.subr.mxu0 0.0
  %819 = vmatpush2.msra.mxu0 0.0
  %820 = vmatprep.mubr.f32.mxu0 0.0
  %821 = vmatmul.mubr.f32.gmra.mxu0 %v717
  %v822 = vpop.f32.mrf.mxu0
  %v823 = vadd.f32 0.0, %v822
  %v824 = vpop.f32.mrf.mxu0
  %825 = vdwg.mxu0
  %826 = vmatprep.subr.mxu0 0.0
  %827 = vmatpush1.msra.mxu0 %v738
  %828 = vmatprep.subr.mxu0 0.0
  %829 = vmatpush1.msra.mxu0 %v737
  %830 = vmatprep.subr.mxu0 0.0
  %831 = vmatpush1.msra.mxu0 %v736
  %832 = vmatprep.subr.mxu0 0.0
  %833 = vmatpush1.msra.mxu0 %v735
  %834 = vmatprep.subr.mxu0 0.0
  %835 = vmatpush1.msra.mxu0 %v734
  %836 = vmatprep.subr.mxu0 0.0
  %837 = vmatpush1.msra.mxu0 %v733
  %838 = vmatprep.subr.mxu0 0.0
  %839 = vmatpush1.msra.mxu0 %v732
  %840 = vmatprep.subr.mxu0 0.0
  %841 = vmatpush1.msra.mxu0 %v731
  %842 = vmatprep.subr.mxu0 0.0
  %843 = vmatpush1.msra.mxu0 %v730
  %844 = vmatprep.subr.mxu0 0.0
  %845 = vmatpush1.msra.mxu0 %v729
  %846 = vmatprep.subr.mxu0 0.0
  %847 = vmatpush1.msra.mxu0 %v728
  %848 = vmatprep.subr.mxu0 0.0
  %849 = vmatpush1.msra.mxu0 %v727
  %850 = vmatprep.subr.mxu0 0.0
  %851 = vmatpush1.msra.mxu0 %v726
  %852 = vmatprep.subr.mxu0 0.0
  %853 = vmatpush1.msra.mxu0 %v725
  %854 = vmatprep.subr.mxu0 0.0
  %855 = vmatpush1.msra.mxu0 %v724
  %856 = vmatprep.subr.mxu0 0.0
  %857 = vmatpush1.msra.mxu0 %v723
  %858 = vmatprep.subr.mxu0 0.0
  %859 = vmatpush2.msra.mxu0 0.0
  %860 = vmatprep.subr.mxu0 0.0
  %861 = vmatpush2.msra.mxu0 0.0
  %862 = vmatprep.subr.mxu0 0.0
  %863 = vmatpush2.msra.mxu0 0.0
  %864 = vmatprep.subr.mxu0 0.0
  %865 = vmatpush2.msra.mxu0 0.0
  %866 = vmatprep.subr.mxu0 0.0
  %867 = vmatpush2.msra.mxu0 0.0
  %868 = vmatprep.subr.mxu0 0.0
  %869 = vmatpush2.msra.mxu0 0.0
  %870 = vmatprep.subr.mxu0 0.0
  %871 = vmatpush2.msra.mxu0 0.0
  %872 = vmatprep.subr.mxu0 0.0
  %873 = vmatpush2.msra.mxu0 0.0
  %874 = vmatprep.subr.mxu0 0.0
  %875 = vmatpush2.msra.mxu0 0.0
  %876 = vmatprep.subr.mxu0 0.0
  %877 = vmatpush2.msra.mxu0 0.0
  %878 = vmatprep.subr.mxu0 0.0
  %879 = vmatpush2.msra.mxu0 0.0
  %880 = vmatprep.subr.mxu0 0.0
  %881 = vmatpush2.msra.mxu0 0.0
  %882 = vmatprep.subr.mxu0 0.0
  %883 = vmatpush2.msra.mxu0 0.0
  %884 = vmatprep.subr.mxu0 0.0
  %885 = vmatpush2.msra.mxu0 0.0
  %886 = vmatprep.subr.mxu0 0.0
  %887 = vmatpush2.msra.mxu0 0.0
  %888 = vmatprep.subr.mxu0 0.0
  %889 = vmatpush2.msra.mxu0 0.0
  %890 = vmatprep.mubr.f32.mxu0 0.0
  %891 = vmatmul.mubr.f32.gmra.mxu0 %v719
  %v892 = vpop.f32.mrf.mxu0
  %v893 = vadd.f32 %v823, %v892
  %v894 = vpop.f32.mrf.mxu0
  %895 = vdwg.mxu0
  %s896 = scalar_lea.vmem %s3, 1024
  %v897 = vld [vmem:[%s896] sm:$0xff]
  %v898 = vld [vmem:[%s896 + $0x8] sm:$0xff]
  %v899 = vld [vmem:[%s896 + $0x10] sm:$0xff]
  %v900 = vld [vmem:[%s896 + $0x18] sm:$0xff]
  %v901 = vld [vmem:[%s896 + $0x20] sm:$0xff]
  %v902 = vld [vmem:[%s896 + $0x28] sm:$0xff]
  %v903 = vld [vmem:[%s896 + $0x30] sm:$0xff]
  %v904 = vld [vmem:[%s896 + $0x38] sm:$0xff]
  %v905 = vld [vmem:[%s896 + $0x40] sm:$0xff]
  %v906 = vld [vmem:[%s896 + $0x48] sm:$0xff]
  %v907 = vld [vmem:[%s896 + $0x50] sm:$0xff]
  %v908 = vld [vmem:[%s896 + $0x58] sm:$0xff]
  %v909 = vld [vmem:[%s896 + $0x60] sm:$0xff]
  %v910 = vld [vmem:[%s896 + $0x68] sm:$0xff]
  %v911 = vld [vmem:[%s896 + $0x70] sm:$0xff]
  %v912 = vld [vmem:[%s896 + $0x78] sm:$0xff]
  %913 = vmatprep.subr.mxu0 0.0
  %914 = vmatpush1.msra.mxu0 %v912
  %915 = vmatprep.subr.mxu0 0.0
  %916 = vmatpush1.msra.mxu0 %v911
  %917 = vmatprep.subr.mxu0 0.0
  %918 = vmatpush1.msra.mxu0 %v910
  %919 = vmatprep.subr.mxu0 0.0
  %920 = vmatpush1.msra.mxu0 %v909
  %921 = vmatprep.subr.mxu0 0.0
  %922 = vmatpush1.msra.mxu0 %v908
  %923 = vmatprep.subr.mxu0 0.0
  %924 = vmatpush1.msra.mxu0 %v907
  %925 = vmatprep.subr.mxu0 0.0
  %926 = vmatpush1.msra.mxu0 %v906
  %927 = vmatprep.subr.mxu0 0.0
  %928 = vmatpush1.msra.mxu0 %v905
  %929 = vmatprep.subr.mxu0 0.0
  %930 = vmatpush1.msra.mxu0 %v904
  %931 = vmatprep.subr.mxu0 0.0
  %932 = vmatpush1.msra.mxu0 %v903
  %933 = vmatprep.subr.mxu0 0.0
  %934 = vmatpush1.msra.mxu0 %v902
  %935 = vmatprep.subr.mxu0 0.0
  %936 = vmatpush1.msra.mxu0 %v901
  %937 = vmatprep.subr.mxu0 0.0
  %938 = vmatpush1.msra.mxu0 %v900
  %939 = vmatprep.subr.mxu0 0.0
  %940 = vmatpush1.msra.mxu0 %v899
  %941 = vmatprep.subr.mxu0 0.0
  %942 = vmatpush1.msra.mxu0 %v898
  %943 = vmatprep.subr.mxu0 0.0
  %944 = vmatpush1.msra.mxu0 %v897
  %945 = vmatprep.subr.mxu0 0.0
  %946 = vmatpush2.msra.mxu0 0.0
  %947 = vmatprep.subr.mxu0 0.0
  %948 = vmatpush2.msra.mxu0 0.0
  %949 = vmatprep.subr.mxu0 0.0
  %950 = vmatpush2.msra.mxu0 0.0
  %951 = vmatprep.subr.mxu0 0.0
  %952 = vmatpush2.msra.mxu0 0.0
  %953 = vmatprep.subr.mxu0 0.0
  %954 = vmatpush2.msra.mxu0 0.0
  %955 = vmatprep.subr.mxu0 0.0
  %956 = vmatpush2.msra.mxu0 0.0
  %957 = vmatprep.subr.mxu0 0.0
  %958 = vmatpush2.msra.mxu0 0.0
  %959 = vmatprep.subr.mxu0 0.0
  %960 = vmatpush2.msra.mxu0 0.0
  %961 = vmatprep.subr.mxu0 0.0
  %962 = vmatpush2.msra.mxu0 0.0
  %963 = vmatprep.subr.mxu0 0.0
  %964 = vmatpush2.msra.mxu0 0.0
  %965 = vmatprep.subr.mxu0 0.0
  %966 = vmatpush2.msra.mxu0 0.0
  %967 = vmatprep.subr.mxu0 0.0
  %968 = vmatpush2.msra.mxu0 0.0
  %969 = vmatprep.subr.mxu0 0.0
  %970 = vmatpush2.msra.mxu0 0.0
  %971 = vmatprep.subr.mxu0 0.0
  %972 = vmatpush2.msra.mxu0 0.0
  %973 = vmatprep.subr.mxu0 0.0
  %974 = vmatpush2.msra.mxu0 0.0
  %975 = vmatprep.subr.mxu0 0.0
  %976 = vmatpush2.msra.mxu0 0.0
  %977 = vmatprep.mubr.f32.mxu0 0.0
  %978 = vmatmul.mubr.f32.gmra.mxu0 %v721
  %v979 = vpop.f32.mrf.mxu0
  %v980 = vadd.f32 0.0, %v979
  %v981 = vpop.f32.mrf.mxu0
  %982 = vdwg.mxu0
  %v983 = vadd.f32 %v893, %v980
  %s984 = scalar_lea.vmem %s4, 2
  %v985 = vld [vmem:[%s984] sm:$0x1]
  %v987 = vlaneseq
  %v988 = vshrl.u32 %v987, 7
  %v989 = vsub.s32 0, %v988
  %v990 = vrot.slane %v985, %v989
  %v992 = vadd.f32 %v983, %v990
  %v993 = vmax.f32 %v992, 0.0
  %v994 = vrot.slane %v993, 7
  %v995 = vsel %vm165, 0.0, %v994
  %v996 = vrot.slane %v993, 1
  %v997 = vsel %vm166, 0.0, %v996
  %s998 = scalar_lea.vmem %s3, 1152
  %v999 = vld [vmem:[%s998] sm:$0xff]
  %v1000 = vld [vmem:[%s998 + $0x8] sm:$0xff]
  %v1001 = vld [vmem:[%s998 + $0x10] sm:$0xff]
  %v1002 = vld [vmem:[%s998 + $0x18] sm:$0xff]
  %v1003 = vld [vmem:[%s998 + $0x20] sm:$0xff]
  %v1004 = vld [vmem:[%s998 + $0x28] sm:$0xff]
  %v1005 = vld [vmem:[%s998 + $0x30] sm:$0xff]
  %v1006 = vld [vmem:[%s998 + $0x38] sm:$0xff]
  %v1007 = vld [vmem:[%s998 + $0x40] sm:$0xff]
  %v1008 = vld [vmem:[%s998 + $0x48] sm:$0xff]
  %v1009 = vld [vmem:[%s998 + $0x50] sm:$0xff]
  %v1010 = vld [vmem:[%s998 + $0x58] sm:$0xff]
  %v1011 = vld [vmem:[%s998 + $0x60] sm:$0xff]
  %v1012 = vld [vmem:[%s998 + $0x68] sm:$0xff]
  %v1013 = vld [vmem:[%s998 + $0x70] sm:$0xff]
  %v1014 = vld [vmem:[%s998 + $0x78] sm:$0xff]
  %s1015 = scalar_lea.vmem %s3, 1280
  %v1016 = vld [vmem:[%s1015] sm:$0xff]
  %v1017 = vld [vmem:[%s1015 + $0x8] sm:$0xff]
  %v1018 = vld [vmem:[%s1015 + $0x10] sm:$0xff]
  %v1019 = vld [vmem:[%s1015 + $0x18] sm:$0xff]
  %v1020 = vld [vmem:[%s1015 + $0x20] sm:$0xff]
  %v1021 = vld [vmem:[%s1015 + $0x28] sm:$0xff]
  %v1022 = vld [vmem:[%s1015 + $0x30] sm:$0xff]
  %v1023 = vld [vmem:[%s1015 + $0x38] sm:$0xff]
  %v1024 = vld [vmem:[%s1015 + $0x40] sm:$0xff]
  %v1025 = vld [vmem:[%s1015 + $0x48] sm:$0xff]
  %v1026 = vld [vmem:[%s1015 + $0x50] sm:$0xff]
  %v1027 = vld [vmem:[%s1015 + $0x58] sm:$0xff]
  %v1028 = vld [vmem:[%s1015 + $0x60] sm:$0xff]
  %v1029 = vld [vmem:[%s1015 + $0x68] sm:$0xff]
  %v1030 = vld [vmem:[%s1015 + $0x70] sm:$0xff]
  %v1031 = vld [vmem:[%s1015 + $0x78] sm:$0xff]
  %1032 = vmatprep.subr.mxu0 0.0
  %1033 = vmatpush1.msra.mxu0 %v1031
  %1034 = vmatprep.subr.mxu0 0.0
  %1035 = vmatpush1.msra.mxu0 %v1030
  %1036 = vmatprep.subr.mxu0 0.0
  %1037 = vmatpush1.msra.mxu0 %v1029
  %1038 = vmatprep.subr.mxu0 0.0
  %1039 = vmatpush1.msra.mxu0 %v1028
  %1040 = vmatprep.subr.mxu0 0.0
  %1041 = vmatpush1.msra.mxu0 %v1027
  %1042 = vmatprep.subr.mxu0 0.0
  %1043 = vmatpush1.msra.mxu0 %v1026
  %1044 = vmatprep.subr.mxu0 0.0
  %1045 = vmatpush1.msra.mxu0 %v1025
  %1046 = vmatprep.subr.mxu0 0.0
  %1047 = vmatpush1.msra.mxu0 %v1024
  %1048 = vmatprep.subr.mxu0 0.0
  %1049 = vmatpush1.msra.mxu0 %v1023
  %1050 = vmatprep.subr.mxu0 0.0
  %1051 = vmatpush1.msra.mxu0 %v1022
  %1052 = vmatprep.subr.mxu0 0.0
  %1053 = vmatpush1.msra.mxu0 %v1021
  %1054 = vmatprep.subr.mxu0 0.0
  %1055 = vmatpush1.msra.mxu0 %v1020
  %1056 = vmatprep.subr.mxu0 0.0
  %1057 = vmatpush1.msra.mxu0 %v1019
  %1058 = vmatprep.subr.mxu0 0.0
  %1059 = vmatpush1.msra.mxu0 %v1018
  %1060 = vmatprep.subr.mxu0 0.0
  %1061 = vmatpush1.msra.mxu0 %v1017
  %1062 = vmatprep.subr.mxu0 0.0
  %1063 = vmatpush1.msra.mxu0 %v1016
  %1064 = vmatprep.subr.mxu0 0.0
  %1065 = vmatpush2.msra.mxu0 0.0
  %1066 = vmatprep.subr.mxu0 0.0
  %1067 = vmatpush2.msra.mxu0 0.0
  %1068 = vmatprep.subr.mxu0 0.0
  %1069 = vmatpush2.msra.mxu0 0.0
  %1070 = vmatprep.subr.mxu0 0.0
  %1071 = vmatpush2.msra.mxu0 0.0
  %1072 = vmatprep.subr.mxu0 0.0
  %1073 = vmatpush2.msra.mxu0 0.0
  %1074 = vmatprep.subr.mxu0 0.0
  %1075 = vmatpush2.msra.mxu0 0.0
  %1076 = vmatprep.subr.mxu0 0.0
  %1077 = vmatpush2.msra.mxu0 0.0
  %1078 = vmatprep.subr.mxu0 0.0
  %1079 = vmatpush2.msra.mxu0 0.0
  %1080 = vmatprep.subr.mxu0 0.0
  %1081 = vmatpush2.msra.mxu0 0.0
  %1082 = vmatprep.subr.mxu0 0.0
  %1083 = vmatpush2.msra.mxu0 0.0
  %1084 = vmatprep.subr.mxu0 0.0
  %1085 = vmatpush2.msra.mxu0 0.0
  %1086 = vmatprep.subr.mxu0 0.0
  %1087 = vmatpush2.msra.mxu0 0.0
  %1088 = vmatprep.subr.mxu0 0.0
  %1089 = vmatpush2.msra.mxu0 0.0
  %1090 = vmatprep.subr.mxu0 0.0
  %1091 = vmatpush2.msra.mxu0 0.0
  %1092 = vmatprep.subr.mxu0 0.0
  %1093 = vmatpush2.msra.mxu0 0.0
  %1094 = vmatprep.subr.mxu0 0.0
  %1095 = vmatpush2.msra.mxu0 0.0
  %1096 = vmatprep.mubr.f32.mxu0 0.0
  %1097 = vmatmul.mubr.f32.gmra.mxu0 %v993
  %v1098 = vpop.f32.mrf.mxu0
  %v1099 = vadd.f32 0.0, %v1098
  %v1100 = vpop.f32.mrf.mxu0
  %1101 = vdwg.mxu0
  %1102 = vmatprep.subr.mxu0 0.0
  %1103 = vmatpush1.msra.mxu0 %v1014
  %1104 = vmatprep.subr.mxu0 0.0
  %1105 = vmatpush1.msra.mxu0 %v1013
  %1106 = vmatprep.subr.mxu0 0.0
  %1107 = vmatpush1.msra.mxu0 %v1012
  %1108 = vmatprep.subr.mxu0 0.0
  %1109 = vmatpush1.msra.mxu0 %v1011
  %1110 = vmatprep.subr.mxu0 0.0
  %1111 = vmatpush1.msra.mxu0 %v1010
  %1112 = vmatprep.subr.mxu0 0.0
  %1113 = vmatpush1.msra.mxu0 %v1009
  %1114 = vmatprep.subr.mxu0 0.0
  %1115 = vmatpush1.msra.mxu0 %v1008
  %1116 = vmatprep.subr.mxu0 0.0
  %1117 = vmatpush1.msra.mxu0 %v1007
  %1118 = vmatprep.subr.mxu0 0.0
  %1119 = vmatpush1.msra.mxu0 %v1006
  %1120 = vmatprep.subr.mxu0 0.0
  %1121 = vmatpush1.msra.mxu0 %v1005
  %1122 = vmatprep.subr.mxu0 0.0
  %1123 = vmatpush1.msra.mxu0 %v1004
  %1124 = vmatprep.subr.mxu0 0.0
  %1125 = vmatpush1.msra.mxu0 %v1003
  %1126 = vmatprep.subr.mxu0 0.0
  %1127 = vmatpush1.msra.mxu0 %v1002
  %1128 = vmatprep.subr.mxu0 0.0
  %1129 = vmatpush1.msra.mxu0 %v1001
  %1130 = vmatprep.subr.mxu0 0.0
  %1131 = vmatpush1.msra.mxu0 %v1000
  %1132 = vmatprep.subr.mxu0 0.0
  %1133 = vmatpush1.msra.mxu0 %v999
  %1134 = vmatprep.subr.mxu0 0.0
  %1135 = vmatpush2.msra.mxu0 0.0
  %1136 = vmatprep.subr.mxu0 0.0
  %1137 = vmatpush2.msra.mxu0 0.0
  %1138 = vmatprep.subr.mxu0 0.0
  %1139 = vmatpush2.msra.mxu0 0.0
  %1140 = vmatprep.subr.mxu0 0.0
  %1141 = vmatpush2.msra.mxu0 0.0
  %1142 = vmatprep.subr.mxu0 0.0
  %1143 = vmatpush2.msra.mxu0 0.0
  %1144 = vmatprep.subr.mxu0 0.0
  %1145 = vmatpush2.msra.mxu0 0.0
  %1146 = vmatprep.subr.mxu0 0.0
  %1147 = vmatpush2.msra.mxu0 0.0
  %1148 = vmatprep.subr.mxu0 0.0
  %1149 = vmatpush2.msra.mxu0 0.0
  %1150 = vmatprep.subr.mxu0 0.0
  %1151 = vmatpush2.msra.mxu0 0.0
  %1152 = vmatprep.subr.mxu0 0.0
  %1153 = vmatpush2.msra.mxu0 0.0
  %1154 = vmatprep.subr.mxu0 0.0
  %1155 = vmatpush2.msra.mxu0 0.0
  %1156 = vmatprep.subr.mxu0 0.0
  %1157 = vmatpush2.msra.mxu0 0.0
  %1158 = vmatprep.subr.mxu0 0.0
  %1159 = vmatpush2.msra.mxu0 0.0
  %1160 = vmatprep.subr.mxu0 0.0
  %1161 = vmatpush2.msra.mxu0 0.0
  %1162 = vmatprep.subr.mxu0 0.0
  %1163 = vmatpush2.msra.mxu0 0.0
  %1164 = vmatprep.subr.mxu0 0.0
  %1165 = vmatpush2.msra.mxu0 0.0
  %1166 = vmatprep.mubr.f32.mxu0 0.0
  %1167 = vmatmul.mubr.f32.gmra.mxu0 %v995
  %v1168 = vpop.f32.mrf.mxu0
  %v1169 = vadd.f32 %v1099, %v1168
  %v1170 = vpop.f32.mrf.mxu0
  %1171 = vdwg.mxu0
  %s1172 = scalar_lea.vmem %s3, 1408
  %v1173 = vld [vmem:[%s1172] sm:$0xff]
  %v1174 = vld [vmem:[%s1172 + $0x8] sm:$0xff]
  %v1175 = vld [vmem:[%s1172 + $0x10] sm:$0xff]
  %v1176 = vld [vmem:[%s1172 + $0x18] sm:$0xff]
  %v1177 = vld [vmem:[%s1172 + $0x20] sm:$0xff]
  %v1178 = vld [vmem:[%s1172 + $0x28] sm:$0xff]
  %v1179 = vld [vmem:[%s1172 + $0x30] sm:$0xff]
  %v1180 = vld [vmem:[%s1172 + $0x38] sm:$0xff]
  %v1181 = vld [vmem:[%s1172 + $0x40] sm:$0xff]
  %v1182 = vld [vmem:[%s1172 + $0x48] sm:$0xff]
  %v1183 = vld [vmem:[%s1172 + $0x50] sm:$0xff]
  %v1184 = vld [vmem:[%s1172 + $0x58] sm:$0xff]
  %v1185 = vld [vmem:[%s1172 + $0x60] sm:$0xff]
  %v1186 = vld [vmem:[%s1172 + $0x68] sm:$0xff]
  %v1187 = vld [vmem:[%s1172 + $0x70] sm:$0xff]
  %v1188 = vld [vmem:[%s1172 + $0x78] sm:$0xff]
  %1189 = vmatprep.subr.mxu0 0.0
  %1190 = vmatpush1.msra.mxu0 %v1188
  %1191 = vmatprep.subr.mxu0 0.0
  %1192 = vmatpush1.msra.mxu0 %v1187
  %1193 = vmatprep.subr.mxu0 0.0
  %1194 = vmatpush1.msra.mxu0 %v1186
  %1195 = vmatprep.subr.mxu0 0.0
  %1196 = vmatpush1.msra.mxu0 %v1185
  %1197 = vmatprep.subr.mxu0 0.0
  %1198 = vmatpush1.msra.mxu0 %v1184
  %1199 = vmatprep.subr.mxu0 0.0
  %1200 = vmatpush1.msra.mxu0 %v1183
  %1201 = vmatprep.subr.mxu0 0.0
  %1202 = vmatpush1.msra.mxu0 %v1182
  %1203 = vmatprep.subr.mxu0 0.0
  %1204 = vmatpush1.msra.mxu0 %v1181
  %1205 = vmatprep.subr.mxu0 0.0
  %1206 = vmatpush1.msra.mxu0 %v1180
  %1207 = vmatprep.subr.mxu0 0.0
  %1208 = vmatpush1.msra.mxu0 %v1179
  %1209 = vmatprep.subr.mxu0 0.0
  %1210 = vmatpush1.msra.mxu0 %v1178
  %1211 = vmatprep.subr.mxu0 0.0
  %1212 = vmatpush1.msra.mxu0 %v1177
  %1213 = vmatprep.subr.mxu0 0.0
  %1214 = vmatpush1.msra.mxu0 %v1176
  %1215 = vmatprep.subr.mxu0 0.0
  %1216 = vmatpush1.msra.mxu0 %v1175
  %1217 = vmatprep.subr.mxu0 0.0
  %1218 = vmatpush1.msra.mxu0 %v1174
  %1219 = vmatprep.subr.mxu0 0.0
  %1220 = vmatpush1.msra.mxu0 %v1173
  %1221 = vmatprep.subr.mxu0 0.0
  %1222 = vmatpush2.msra.mxu0 0.0
  %1223 = vmatprep.subr.mxu0 0.0
  %1224 = vmatpush2.msra.mxu0 0.0
  %1225 = vmatprep.subr.mxu0 0.0
  %1226 = vmatpush2.msra.mxu0 0.0
  %1227 = vmatprep.subr.mxu0 0.0
  %1228 = vmatpush2.msra.mxu0 0.0
  %1229 = vmatprep.subr.mxu0 0.0
  %1230 = vmatpush2.msra.mxu0 0.0
  %1231 = vmatprep.subr.mxu0 0.0
  %1232 = vmatpush2.msra.mxu0 0.0
  %1233 = vmatprep.subr.mxu0 0.0
  %1234 = vmatpush2.msra.mxu0 0.0
  %1235 = vmatprep.subr.mxu0 0.0
  %1236 = vmatpush2.msra.mxu0 0.0
  %1237 = vmatprep.subr.mxu0 0.0
  %1238 = vmatpush2.msra.mxu0 0.0
  %1239 = vmatprep.subr.mxu0 0.0
  %1240 = vmatpush2.msra.mxu0 0.0
  %1241 = vmatprep.subr.mxu0 0.0
  %1242 = vmatpush2.msra.mxu0 0.0
  %1243 = vmatprep.subr.mxu0 0.0
  %1244 = vmatpush2.msra.mxu0 0.0
  %1245 = vmatprep.subr.mxu0 0.0
  %1246 = vmatpush2.msra.mxu0 0.0
  %1247 = vmatprep.subr.mxu0 0.0
  %1248 = vmatpush2.msra.mxu0 0.0
  %1249 = vmatprep.subr.mxu0 0.0
  %1250 = vmatpush2.msra.mxu0 0.0
  %1251 = vmatprep.subr.mxu0 0.0
  %1252 = vmatpush2.msra.mxu0 0.0
  %1253 = vmatprep.mubr.f32.mxu0 0.0
  %1254 = vmatmul.mubr.f32.gmra.mxu0 %v997
  %v1255 = vpop.f32.mrf.mxu0
  %v1256 = vadd.f32 0.0, %v1255
  %v1257 = vpop.f32.mrf.mxu0
  %1258 = vdwg.mxu0
  %v1259 = vadd.f32 %v1169, %v1256
  %s1260 = scalar_lea.vmem %s4, 3
  %v1261 = vld [vmem:[%s1260] sm:$0x1]
  %v1263 = vlaneseq
  %v1264 = vshrl.u32 %v1263, 7
  %v1265 = vsub.s32 0, %v1264
  %v1266 = vrot.slane %v1261, %v1265
  %v1268 = vadd.f32 %v1259, %v1266
  %v1269 = vadd.f32 %v1268, %v717
  %v1270 = vmax.f32 %v1269, 0.0
  %v1271 = vrot.slane %v1270, 7
  %v1272 = vsel %vm165, 0.0, %v1271
  %v1273 = vrot.slane %v1270, 1
  %v1274 = vsel %vm166, 0.0, %v1273
  %s1275 = scalar_lea.vmem %s3, 1536
  %v1276 = vld [vmem:[%s1275] sm:$0xff]
  %v1277 = vld [vmem:[%s1275 + $0x8] sm:$0xff]
  %v1278 = vld [vmem:[%s1275 + $0x10] sm:$0xff]
  %v1279 = vld [vmem:[%s1275 + $0x18] sm:$0xff]
  %v1280 = vld [vmem:[%s1275 + $0x20] sm:$0xff]
  %v1281 = vld [vmem:[%s1275 + $0x28] sm:$0xff]
  %v1282 = vld [vmem:[%s1275 + $0x30] sm:$0xff]
  %v1283 = vld [vmem:[%s1275 + $0x38] sm:$0xff]
  %v1284 = vld [vmem:[%s1275 + $0x40] sm:$0xff]
  %v1285 = vld [vmem:[%s1275 + $0x48] sm:$0xff]
  %v1286 = vld [vmem:[%s1275 + $0x50] sm:$0xff]
  %v1287 = vld [vmem:[%s1275 + $0x58] sm:$0xff]
  %v1288 = vld [vmem:[%s1275 + $0x60] sm:$0xff]
  %v1289 = vld [vmem:[%s1275 + $0x68] sm:$0xff]
  %v1290 = vld [vmem:[%s1275 + $0x70] sm:$0xff]
  %v1291 = vld [vmem:[%s1275 + $0x78] sm:$0xff]
  %s1292 = scalar_lea.vmem %s3, 1664
  %v1293 = vld [vmem:[%s1292] sm:$0xff]
  %v1294 = vld [vmem:[%s1292 + $0x8] sm:$0xff]
  %v1295 = vld [vmem:[%s1292 + $0x10] sm:$0xff]
  %v1296 = vld [vmem:[%s1292 + $0x18] sm:$0xff]
  %v1297 = vld [vmem:[%s1292 + $0x20] sm:$0xff]
  %v1298 = vld [vmem:[%s1292 + $0x28] sm:$0xff]
  %v1299 = vld [vmem:[%s1292 + $0x30] sm:$0xff]
  %v1300 = vld [vmem:[%s1292 + $0x38] sm:$0xff]
  %v1301 = vld [vmem:[%s1292 + $0x40] sm:$0xff]
  %v1302 = vld [vmem:[%s1292 + $0x48] sm:$0xff]
  %v1303 = vld [vmem:[%s1292 + $0x50] sm:$0xff]
  %v1304 = vld [vmem:[%s1292 + $0x58] sm:$0xff]
  %v1305 = vld [vmem:[%s1292 + $0x60] sm:$0xff]
  %v1306 = vld [vmem:[%s1292 + $0x68] sm:$0xff]
  %v1307 = vld [vmem:[%s1292 + $0x70] sm:$0xff]
  %v1308 = vld [vmem:[%s1292 + $0x78] sm:$0xff]
  %1309 = vmatprep.subr.mxu0 0.0
  %1310 = vmatpush1.msra.mxu0 %v1308
  %1311 = vmatprep.subr.mxu0 0.0
  %1312 = vmatpush1.msra.mxu0 %v1307
  %1313 = vmatprep.subr.mxu0 0.0
  %1314 = vmatpush1.msra.mxu0 %v1306
  %1315 = vmatprep.subr.mxu0 0.0
  %1316 = vmatpush1.msra.mxu0 %v1305
  %1317 = vmatprep.subr.mxu0 0.0
  %1318 = vmatpush1.msra.mxu0 %v1304
  %1319 = vmatprep.subr.mxu0 0.0
  %1320 = vmatpush1.msra.mxu0 %v1303
  %1321 = vmatprep.subr.mxu0 0.0
  %1322 = vmatpush1.msra.mxu0 %v1302
  %1323 = vmatprep.subr.mxu0 0.0
  %1324 = vmatpush1.msra.mxu0 %v1301
  %1325 = vmatprep.subr.mxu0 0.0
  %1326 = vmatpush1.msra.mxu0 %v1300
  %1327 = vmatprep.subr.mxu0 0.0
  %1328 = vmatpush1.msra.mxu0 %v1299
  %1329 = vmatprep.subr.mxu0 0.0
  %1330 = vmatpush1.msra.mxu0 %v1298
  %1331 = vmatprep.subr.mxu0 0.0
  %1332 = vmatpush1.msra.mxu0 %v1297
  %1333 = vmatprep.subr.mxu0 0.0
  %1334 = vmatpush1.msra.mxu0 %v1296
  %1335 = vmatprep.subr.mxu0 0.0
  %1336 = vmatpush1.msra.mxu0 %v1295
  %1337 = vmatprep.subr.mxu0 0.0
  %1338 = vmatpush1.msra.mxu0 %v1294
  %1339 = vmatprep.subr.mxu0 0.0
  %1340 = vmatpush1.msra.mxu0 %v1293
  %1341 = vmatprep.subr.mxu0 0.0
  %1342 = vmatpush2.msra.mxu0 0.0
  %1343 = vmatprep.subr.mxu0 0.0
  %1344 = vmatpush2.msra.mxu0 0.0
  %1345 = vmatprep.subr.mxu0 0.0
  %1346 = vmatpush2.msra.mxu0 0.0
  %1347 = vmatprep.subr.mxu0 0.0
  %1348 = vmatpush2.msra.mxu0 0.0
  %1349 = vmatprep.subr.mxu0 0.0
  %1350 = vmatpush2.msra.mxu0 0.0
  %1351 = vmatprep.subr.mxu0 0.0
  %1352 = vmatpush2.msra.mxu0 0.0
  %1353 = vmatprep.subr.mxu0 0.0
  %1354 = vmatpush2.msra.mxu0 0.0
  %1355 = vmatprep.subr.mxu0 0.0
  %1356 = vmatpush2.msra.mxu0 0.0
  %1357 = vmatprep.subr.mxu0 0.0
  %1358 = vmatpush2.msra.mxu0 0.0
  %1359 = vmatprep.subr.mxu0 0.0
  %1360 = vmatpush2.msra.mxu0 0.0
  %1361 = vmatprep.subr.mxu0 0.0
  %1362 = vmatpush2.msra.mxu0 0.0
  %1363 = vmatprep.subr.mxu0 0.0
  %1364 = vmatpush2.msra.mxu0 0.0
  %1365 = vmatprep.subr.mxu0 0.0
  %1366 = vmatpush2.msra.mxu0 0.0
  %1367 = vmatprep.subr.mxu0 0.0
  %1368 = vmatpush2.msra.mxu0 0.0
  %1369 = vmatprep.subr.mxu0 0.0
  %1370 = vmatpush2.msra.mxu0 0.0
  %1371 = vmatprep.subr.mxu0 0.0
  %1372 = vmatpush2.msra.mxu0 0.0
  %1373 = vmatprep.mubr.f32.mxu0 0.0
  %1374 = vmatmul.mubr.f32.gmra.mxu0 %v1270
  %v1375 = vpop.f32.mrf.mxu0
  %v1376 = vadd.f32 0.0, %v1375
  %v1377 = vpop.f32.mrf.mxu0
  %1378 = vdwg.mxu0
  %1379 = vmatprep.subr.mxu0 0.0
  %1380 = vmatpush1.msra.mxu0 %v1291
  %1381 = vmatprep.subr.mxu0 0.0
  %1382 = vmatpush1.msra.mxu0 %v1290
  %1383 = vmatprep.subr.mxu0 0.0
  %1384 = vmatpush1.msra.mxu0 %v1289
  %1385 = vmatprep.subr.mxu0 0.0
  %1386 = vmatpush1.msra.mxu0 %v1288
  %1387 = vmatprep.subr.mxu0 0.0
  %1388 = vmatpush1.msra.mxu0 %v1287
  %1389 = vmatprep.subr.mxu0 0.0
  %1390 = vmatpush1.msra.mxu0 %v1286
  %1391 = vmatprep.subr.mxu0 0.0
  %1392 = vmatpush1.msra.mxu0 %v1285
  %1393 = vmatprep.subr.mxu0 0.0
  %1394 = vmatpush1.msra.mxu0 %v1284
  %1395 = vmatprep.subr.mxu0 0.0
  %1396 = vmatpush1.msra.mxu0 %v1283
  %1397 = vmatprep.subr.mxu0 0.0
  %1398 = vmatpush1.msra.mxu0 %v1282
  %1399 = vmatprep.subr.mxu0 0.0
  %1400 = vmatpush1.msra.mxu0 %v1281
  %1401 = vmatprep.subr.mxu0 0.0
  %1402 = vmatpush1.msra.mxu0 %v1280
  %1403 = vmatprep.subr.mxu0 0.0
  %1404 = vmatpush1.msra.mxu0 %v1279
  %1405 = vmatprep.subr.mxu0 0.0
  %1406 = vmatpush1.msra.mxu0 %v1278
  %1407 = vmatprep.subr.mxu0 0.0
  %1408 = vmatpush1.msra.mxu0 %v1277
  %1409 = vmatprep.subr.mxu0 0.0
  %1410 = vmatpush1.msra.mxu0 %v1276
  %1411 = vmatprep.subr.mxu0 0.0
  %1412 = vmatpush2.msra.mxu0 0.0
  %1413 = vmatprep.subr.mxu0 0.0
  %1414 = vmatpush2.msra.mxu0 0.0
  %1415 = vmatprep.subr.mxu0 0.0
  %1416 = vmatpush2.msra.mxu0 0.0
  %1417 = vmatprep.subr.mxu0 0.0
  %1418 = vmatpush2.msra.mxu0 0.0
  %1419 = vmatprep.subr.mxu0 0.0
  %1420 = vmatpush2.msra.mxu0 0.0
  %1421 = vmatprep.subr.mxu0 0.0
  %1422 = vmatpush2.msra.mxu0 0.0
  %1423 = vmatprep.subr.mxu0 0.0
  %1424 = vmatpush2.msra.mxu0 0.0
  %1425 = vmatprep.subr.mxu0 0.0
  %1426 = vmatpush2.msra.mxu0 0.0
  %1427 = vmatprep.subr.mxu0 0.0
  %1428 = vmatpush2.msra.mxu0 0.0
  %1429 = vmatprep.subr.mxu0 0.0
  %1430 = vmatpush2.msra.mxu0 0.0
  %1431 = vmatprep.subr.mxu0 0.0
  %1432 = vmatpush2.msra.mxu0 0.0
  %1433 = vmatprep.subr.mxu0 0.0
  %1434 = vmatpush2.msra.mxu0 0.0
  %1435 = vmatprep.subr.mxu0 0.0
  %1436 = vmatpush2.msra.mxu0 0.0
  %1437 = vmatprep.subr.mxu0 0.0
  %1438 = vmatpush2.msra.mxu0 0.0
  %1439 = vmatprep.subr.mxu0 0.0
  %1440 = vmatpush2.msra.mxu0 0.0
  %1441 = vmatprep.subr.mxu0 0.0
  %1442 = vmatpush2.msra.mxu0 0.0
  %1443 = vmatprep.mubr.f32.mxu0 0.0
  %1444 = vmatmul.mubr.f32.gmra.mxu0 %v1272
  %v1445 = vpop.f32.mrf.mxu0
  %v1446 = vadd.f32 %v1376, %v1445
  %v1447 = vpop.f32.mrf.mxu0
  %1448 = vdwg.mxu0
  %s1449 = scalar_lea.vmem %s3, 1792
  %v1450 = vld [vmem:[%s1449] sm:$0xff]
  %v1451 = vld [vmem:[%s1449 + $0x8] sm:$0xff]
  %v1452 = vld [vmem:[%s1449 + $0x10] sm:$0xff]
  %v1453 = vld [vmem:[%s1449 + $0x18] sm:$0xff]
  %v1454 = vld [vmem:[%s1449 + $0x20] sm:$0xff]
  %v1455 = vld [vmem:[%s1449 + $0x28] sm:$0xff]
  %v1456 = vld [vmem:[%s1449 + $0x30] sm:$0xff]
  %v1457 = vld [vmem:[%s1449 + $0x38] sm:$0xff]
  %v1458 = vld [vmem:[%s1449 + $0x40] sm:$0xff]
  %v1459 = vld [vmem:[%s1449 + $0x48] sm:$0xff]
  %v1460 = vld [vmem:[%s1449 + $0x50] sm:$0xff]
  %v1461 = vld [vmem:[%s1449 + $0x58] sm:$0xff]
  %v1462 = vld [vmem:[%s1449 + $0x60] sm:$0xff]
  %v1463 = vld [vmem:[%s1449 + $0x68] sm:$0xff]
  %v1464 = vld [vmem:[%s1449 + $0x70] sm:$0xff]
  %v1465 = vld [vmem:[%s1449 + $0x78] sm:$0xff]
  %1466 = vmatprep.subr.mxu0 0.0
  %1467 = vmatpush1.msra.mxu0 %v1465
  %1468 = vmatprep.subr.mxu0 0.0
  %1469 = vmatpush1.msra.mxu0 %v1464
  %1470 = vmatprep.subr.mxu0 0.0
  %1471 = vmatpush1.msra.mxu0 %v1463
  %1472 = vmatprep.subr.mxu0 0.0
  %1473 = vmatpush1.msra.mxu0 %v1462
  %1474 = vmatprep.subr.mxu0 0.0
  %1475 = vmatpush1.msra.mxu0 %v1461
  %1476 = vmatprep.subr.mxu0 0.0
  %1477 = vmatpush1.msra.mxu0 %v1460
  %1478 = vmatprep.subr.mxu0 0.0
  %1479 = vmatpush1.msra.mxu0 %v1459
  %1480 = vmatprep.subr.mxu0 0.0
  %1481 = vmatpush1.msra.mxu0 %v1458
  %1482 = vmatprep.subr.mxu0 0.0
  %1483 = vmatpush1.msra.mxu0 %v1457
  %1484 = vmatprep.subr.mxu0 0.0
  %1485 = vmatpush1.msra.mxu0 %v1456
  %1486 = vmatprep.subr.mxu0 0.0
  %1487 = vmatpush1.msra.mxu0 %v1455
  %1488 = vmatprep.subr.mxu0 0.0
  %1489 = vmatpush1.msra.mxu0 %v1454
  %1490 = vmatprep.subr.mxu0 0.0
  %1491 = vmatpush1.msra.mxu0 %v1453
  %1492 = vmatprep.subr.mxu0 0.0
  %1493 = vmatpush1.msra.mxu0 %v1452
  %1494 = vmatprep.subr.mxu0 0.0
  %1495 = vmatpush1.msra.mxu0 %v1451
  %1496 = vmatprep.subr.mxu0 0.0
  %1497 = vmatpush1.msra.mxu0 %v1450
  %1498 = vmatprep.subr.mxu0 0.0
  %1499 = vmatpush2.msra.mxu0 0.0
  %1500 = vmatprep.subr.mxu0 0.0
  %1501 = vmatpush2.msra.mxu0 0.0
  %1502 = vmatprep.subr.mxu0 0.0
  %1503 = vmatpush2.msra.mxu0 0.0
  %1504 = vmatprep.subr.mxu0 0.0
  %1505 = vmatpush2.msra.mxu0 0.0
  %1506 = vmatprep.subr.mxu0 0.0
  %1507 = vmatpush2.msra.mxu0 0.0
  %1508 = vmatprep.subr.mxu0 0.0
  %1509 = vmatpush2.msra.mxu0 0.0
  %1510 = vmatprep.subr.mxu0 0.0
  %1511 = vmatpush2.msra.mxu0 0.0
  %1512 = vmatprep.subr.mxu0 0.0
  %1513 = vmatpush2.msra.mxu0 0.0
  %1514 = vmatprep.subr.mxu0 0.0
  %1515 = vmatpush2.msra.mxu0 0.0
  %1516 = vmatprep.subr.mxu0 0.0
  %1517 = vmatpush2.msra.mxu0 0.0
  %1518 = vmatprep.subr.mxu0 0.0
  %1519 = vmatpush2.msra.mxu0 0.0
  %1520 = vmatprep.subr.mxu0 0.0
  %1521 = vmatpush2.msra.mxu0 0.0
  %1522 = vmatprep.subr.mxu0 0.0
  %1523 = vmatpush2.msra.mxu0 0.0
  %1524 = vmatprep.subr.mxu0 0.0
  %1525 = vmatpush2.msra.mxu0 0.0
  %1526 = vmatprep.subr.mxu0 0.0
  %1527 = vmatpush2.msra.mxu0 0.0
  %1528 = vmatprep.subr.mxu0 0.0
  %1529 = vmatpush2.msra.mxu0 0.0
  %1530 = vmatprep.mubr.f32.mxu0 0.0
  %1531 = vmatmul.mubr.f32.gmra.mxu0 %v1274
  %v1532 = vpop.f32.mrf.mxu0
  %v1533 = vadd.f32 0.0, %v1532
  %v1534 = vpop.f32.mrf.mxu0
  %1535 = vdwg.mxu0
  %v1536 = vadd.f32 %v1446, %v1533
  %s1537 = scalar_lea.vmem %s4, 4
  %v1538 = vld [vmem:[%s1537] sm:$0x1]
  %v1540 = vlaneseq
  %v1541 = vshrl.u32 %v1540, 7
  %v1542 = vsub.s32 0, %v1541
  %v1543 = vrot.slane %v1538, %v1542
  %v1545 = vadd.f32 %v1536, %v1543
  %v1546 = vmax.f32 %v1545, 0.0
  %v1547 = vrot.slane %v1546, 7
  %v1548 = vsel %vm165, 0.0, %v1547
  %v1549 = vrot.slane %v1546, 1
  %v1550 = vsel %vm166, 0.0, %v1549
  %s1551 = scalar_lea.vmem %s3, 1920
  %v1552 = vld [vmem:[%s1551] sm:$0xff]
  %v1553 = vld [vmem:[%s1551 + $0x8] sm:$0xff]
  %v1554 = vld [vmem:[%s1551 + $0x10] sm:$0xff]
  %v1555 = vld [vmem:[%s1551 + $0x18] sm:$0xff]
  %v1556 = vld [vmem:[%s1551 + $0x20] sm:$0xff]
  %v1557 = vld [vmem:[%s1551 + $0x28] sm:$0xff]
  %v1558 = vld [vmem:[%s1551 + $0x30] sm:$0xff]
  %v1559 = vld [vmem:[%s1551 + $0x38] sm:$0xff]
  %v1560 = vld [vmem:[%s1551 + $0x40] sm:$0xff]
  %v1561 = vld [vmem:[%s1551 + $0x48] sm:$0xff]
  %v1562 = vld [vmem:[%s1551 + $0x50] sm:$0xff]
  %v1563 = vld [vmem:[%s1551 + $0x58] sm:$0xff]
  %v1564 = vld [vmem:[%s1551 + $0x60] sm:$0xff]
  %v1565 = vld [vmem:[%s1551 + $0x68] sm:$0xff]
  %v1566 = vld [vmem:[%s1551 + $0x70] sm:$0xff]
  %v1567 = vld [vmem:[%s1551 + $0x78] sm:$0xff]
  %s1568 = scalar_lea.vmem %s3, 2048
  %v1569 = vld [vmem:[%s1568] sm:$0xff]
  %v1570 = vld [vmem:[%s1568 + $0x8] sm:$0xff]
  %v1571 = vld [vmem:[%s1568 + $0x10] sm:$0xff]
  %v1572 = vld [vmem:[%s1568 + $0x18] sm:$0xff]
  %v1573 = vld [vmem:[%s1568 + $0x20] sm:$0xff]
  %v1574 = vld [vmem:[%s1568 + $0x28] sm:$0xff]
  %v1575 = vld [vmem:[%s1568 + $0x30] sm:$0xff]
  %v1576 = vld [vmem:[%s1568 + $0x38] sm:$0xff]
  %v1577 = vld [vmem:[%s1568 + $0x40] sm:$0xff]
  %v1578 = vld [vmem:[%s1568 + $0x48] sm:$0xff]
  %v1579 = vld [vmem:[%s1568 + $0x50] sm:$0xff]
  %v1580 = vld [vmem:[%s1568 + $0x58] sm:$0xff]
  %v1581 = vld [vmem:[%s1568 + $0x60] sm:$0xff]
  %v1582 = vld [vmem:[%s1568 + $0x68] sm:$0xff]
  %v1583 = vld [vmem:[%s1568 + $0x70] sm:$0xff]
  %v1584 = vld [vmem:[%s1568 + $0x78] sm:$0xff]
  %1585 = vmatprep.subr.mxu0 0.0
  %1586 = vmatpush1.msra.mxu0 %v1584
  %1587 = vmatprep.subr.mxu0 0.0
  %1588 = vmatpush1.msra.mxu0 %v1583
  %1589 = vmatprep.subr.mxu0 0.0
  %1590 = vmatpush1.msra.mxu0 %v1582
  %1591 = vmatprep.subr.mxu0 0.0
  %1592 = vmatpush1.msra.mxu0 %v1581
  %1593 = vmatprep.subr.mxu0 0.0
  %1594 = vmatpush1.msra.mxu0 %v1580
  %1595 = vmatprep.subr.mxu0 0.0
  %1596 = vmatpush1.msra.mxu0 %v1579
  %1597 = vmatprep.subr.mxu0 0.0
  %1598 = vmatpush1.msra.mxu0 %v1578
  %1599 = vmatprep.subr.mxu0 0.0
  %1600 = vmatpush1.msra.mxu0 %v1577
  %1601 = vmatprep.subr.mxu0 0.0
  %1602 = vmatpush1.msra.mxu0 %v1576
  %1603 = vmatprep.subr.mxu0 0.0
  %1604 = vmatpush1.msra.mxu0 %v1575
  %1605 = vmatprep.subr.mxu0 0.0
  %1606 = vmatpush1.msra.mxu0 %v1574
  %1607 = vmatprep.subr.mxu0 0.0
  %1608 = vmatpush1.msra.mxu0 %v1573
  %1609 = vmatprep.subr.mxu0 0.0
  %1610 = vmatpush1.msra.mxu0 %v1572
  %1611 = vmatprep.subr.mxu0 0.0
  %1612 = vmatpush1.msra.mxu0 %v1571
  %1613 = vmatprep.subr.mxu0 0.0
  %1614 = vmatpush1.msra.mxu0 %v1570
  %1615 = vmatprep.subr.mxu0 0.0
  %1616 = vmatpush1.msra.mxu0 %v1569
  %1617 = vmatprep.subr.mxu0 0.0
  %1618 = vmatpush2.msra.mxu0 0.0
  %1619 = vmatprep.subr.mxu0 0.0
  %1620 = vmatpush2.msra.mxu0 0.0
  %1621 = vmatprep.subr.mxu0 0.0
  %1622 = vmatpush2.msra.mxu0 0.0
  %1623 = vmatprep.subr.mxu0 0.0
  %1624 = vmatpush2.msra.mxu0 0.0
  %1625 = vmatprep.subr.mxu0 0.0
  %1626 = vmatpush2.msra.mxu0 0.0
  %1627 = vmatprep.subr.mxu0 0.0
  %1628 = vmatpush2.msra.mxu0 0.0
  %1629 = vmatprep.subr.mxu0 0.0
  %1630 = vmatpush2.msra.mxu0 0.0
  %1631 = vmatprep.subr.mxu0 0.0
  %1632 = vmatpush2.msra.mxu0 0.0
  %1633 = vmatprep.subr.mxu0 0.0
  %1634 = vmatpush2.msra.mxu0 0.0
  %1635 = vmatprep.subr.mxu0 0.0
  %1636 = vmatpush2.msra.mxu0 0.0
  %1637 = vmatprep.subr.mxu0 0.0
  %1638 = vmatpush2.msra.mxu0 0.0
  %1639 = vmatprep.subr.mxu0 0.0
  %1640 = vmatpush2.msra.mxu0 0.0
  %1641 = vmatprep.subr.mxu0 0.0
  %1642 = vmatpush2.msra.mxu0 0.0
  %1643 = vmatprep.subr.mxu0 0.0
  %1644 = vmatpush2.msra.mxu0 0.0
  %1645 = vmatprep.subr.mxu0 0.0
  %1646 = vmatpush2.msra.mxu0 0.0
  %1647 = vmatprep.subr.mxu0 0.0
  %1648 = vmatpush2.msra.mxu0 0.0
  %1649 = vmatprep.mubr.f32.mxu0 0.0
  %1650 = vmatmul.mubr.f32.gmra.mxu0 %v1546
  %v1651 = vpop.f32.mrf.mxu0
  %v1652 = vadd.f32 0.0, %v1651
  %v1653 = vpop.f32.mrf.mxu0
  %1654 = vdwg.mxu0
  %1655 = vmatprep.subr.mxu0 0.0
  %1656 = vmatpush1.msra.mxu0 %v1567
  %1657 = vmatprep.subr.mxu0 0.0
  %1658 = vmatpush1.msra.mxu0 %v1566
  %1659 = vmatprep.subr.mxu0 0.0
  %1660 = vmatpush1.msra.mxu0 %v1565
  %1661 = vmatprep.subr.mxu0 0.0
  %1662 = vmatpush1.msra.mxu0 %v1564
  %1663 = vmatprep.subr.mxu0 0.0
  %1664 = vmatpush1.msra.mxu0 %v1563
  %1665 = vmatprep.subr.mxu0 0.0
  %1666 = vmatpush1.msra.mxu0 %v1562
  %1667 = vmatprep.subr.mxu0 0.0
  %1668 = vmatpush1.msra.mxu0 %v1561
  %1669 = vmatprep.subr.mxu0 0.0
  %1670 = vmatpush1.msra.mxu0 %v1560
  %1671 = vmatprep.subr.mxu0 0.0
  %1672 = vmatpush1.msra.mxu0 %v1559
  %1673 = vmatprep.subr.mxu0 0.0
  %1674 = vmatpush1.msra.mxu0 %v1558
  %1675 = vmatprep.subr.mxu0 0.0
  %1676 = vmatpush1.msra.mxu0 %v1557
  %1677 = vmatprep.subr.mxu0 0.0
  %1678 = vmatpush1.msra.mxu0 %v1556
  %1679 = vmatprep.subr.mxu0 0.0
  %1680 = vmatpush1.msra.mxu0 %v1555
  %1681 = vmatprep.subr.mxu0 0.0
  %1682 = vmatpush1.msra.mxu0 %v1554
  %1683 = vmatprep.subr.mxu0 0.0
  %1684 = vmatpush1.msra.mxu0 %v1553
  %1685 = vmatprep.subr.mxu0 0.0
  %1686 = vmatpush1.msra.mxu0 %v1552
  %1687 = vmatprep.subr.mxu0 0.0
  %1688 = vmatpush2.msra.mxu0 0.0
  %1689 = vmatprep.subr.mxu0 0.0
  %1690 = vmatpush2.msra.mxu0 0.0
  %1691 = vmatprep.subr.mxu0 0.0
  %1692 = vmatpush2.msra.mxu0 0.0
  %1693 = vmatprep.subr.mxu0 0.0
  %1694 = vmatpush2.msra.mxu0 0.0
  %1695 = vmatprep.subr.mxu0 0.0
  %1696 = vmatpush2.msra.mxu0 0.0
  %1697 = vmatprep.subr.mxu0 0.0
  %1698 = vmatpush2.msra.mxu0 0.0
  %1699 = vmatprep.subr.mxu0 0.0
  %1700 = vmatpush2.msra.mxu0 0.0
  %1701 = vmatprep.subr.mxu0 0.0
  %1702 = vmatpush2.msra.mxu0 0.0
  %1703 = vmatprep.subr.mxu0 0.0
  %1704 = vmatpush2.msra.mxu0 0.0
  %1705 = vmatprep.subr.mxu0 0.0
  %1706 = vmatpush2.msra.mxu0 0.0
  %1707 = vmatprep.subr.mxu0 0.0
  %1708 = vmatpush2.msra.mxu0 0.0
  %1709 = vmatprep.subr.mxu0 0.0
  %1710 = vmatpush2.msra.mxu0 0.0
  %1711 = vmatprep.subr.mxu0 0.0
  %1712 = vmatpush2.msra.mxu0 0.0
  %1713 = vmatprep.subr.mxu0 0.0
  %1714 = vmatpush2.msra.mxu0 0.0
  %1715 = vmatprep.subr.mxu0 0.0
  %1716 = vmatpush2.msra.mxu0 0.0
  %1717 = vmatprep.subr.mxu0 0.0
  %1718 = vmatpush2.msra.mxu0 0.0
  %1719 = vmatprep.mubr.f32.mxu0 0.0
  %1720 = vmatmul.mubr.f32.gmra.mxu0 %v1548
  %v1721 = vpop.f32.mrf.mxu0
  %v1722 = vadd.f32 %v1652, %v1721
  %v1723 = vpop.f32.mrf.mxu0
  %1724 = vdwg.mxu0
  %s1725 = scalar_lea.vmem %s3, 2176
  %v1726 = vld [vmem:[%s1725] sm:$0xff]
  %v1727 = vld [vmem:[%s1725 + $0x8] sm:$0xff]
  %v1728 = vld [vmem:[%s1725 + $0x10] sm:$0xff]
  %v1729 = vld [vmem:[%s1725 + $0x18] sm:$0xff]
  %v1730 = vld [vmem:[%s1725 + $0x20] sm:$0xff]
  %v1731 = vld [vmem:[%s1725 + $0x28] sm:$0xff]
  %v1732 = vld [vmem:[%s1725 + $0x30] sm:$0xff]
  %v1733 = vld [vmem:[%s1725 + $0x38] sm:$0xff]
  %v1734 = vld [vmem:[%s1725 + $0x40] sm:$0xff]
  %v1735 = vld [vmem:[%s1725 + $0x48] sm:$0xff]
  %v1736 = vld [vmem:[%s1725 + $0x50] sm:$0xff]
  %v1737 = vld [vmem:[%s1725 + $0x58] sm:$0xff]
  %v1738 = vld [vmem:[%s1725 + $0x60] sm:$0xff]
  %v1739 = vld [vmem:[%s1725 + $0x68] sm:$0xff]
  %v1740 = vld [vmem:[%s1725 + $0x70] sm:$0xff]
  %v1741 = vld [vmem:[%s1725 + $0x78] sm:$0xff]
  %1742 = vmatprep.subr.mxu0 0.0
  %1743 = vmatpush1.msra.mxu0 %v1741
  %1744 = vmatprep.subr.mxu0 0.0
  %1745 = vmatpush1.msra.mxu0 %v1740
  %1746 = vmatprep.subr.mxu0 0.0
  %1747 = vmatpush1.msra.mxu0 %v1739
  %1748 = vmatprep.subr.mxu0 0.0
  %1749 = vmatpush1.msra.mxu0 %v1738
  %1750 = vmatprep.subr.mxu0 0.0
  %1751 = vmatpush1.msra.mxu0 %v1737
  %1752 = vmatprep.subr.mxu0 0.0
  %1753 = vmatpush1.msra.mxu0 %v1736
  %1754 = vmatprep.subr.mxu0 0.0
  %1755 = vmatpush1.msra.mxu0 %v1735
  %1756 = vmatprep.subr.mxu0 0.0
  %1757 = vmatpush1.msra.mxu0 %v1734
  %1758 = vmatprep.subr.mxu0 0.0
  %1759 = vmatpush1.msra.mxu0 %v1733
  %1760 = vmatprep.subr.mxu0 0.0
  %1761 = vmatpush1.msra.mxu0 %v1732
  %1762 = vmatprep.subr.mxu0 0.0
  %1763 = vmatpush1.msra.mxu0 %v1731
  %1764 = vmatprep.subr.mxu0 0.0
  %1765 = vmatpush1.msra.mxu0 %v1730
  %1766 = vmatprep.subr.mxu0 0.0
  %1767 = vmatpush1.msra.mxu0 %v1729
  %1768 = vmatprep.subr.mxu0 0.0
  %1769 = vmatpush1.msra.mxu0 %v1728
  %1770 = vmatprep.subr.mxu0 0.0
  %1771 = vmatpush1.msra.mxu0 %v1727
  %1772 = vmatprep.subr.mxu0 0.0
  %1773 = vmatpush1.msra.mxu0 %v1726
  %1774 = vmatprep.subr.mxu0 0.0
  %1775 = vmatpush2.msra.mxu0 0.0
  %1776 = vmatprep.subr.mxu0 0.0
  %1777 = vmatpush2.msra.mxu0 0.0
  %1778 = vmatprep.subr.mxu0 0.0
  %1779 = vmatpush2.msra.mxu0 0.0
  %1780 = vmatprep.subr.mxu0 0.0
  %1781 = vmatpush2.msra.mxu0 0.0
  %1782 = vmatprep.subr.mxu0 0.0
  %1783 = vmatpush2.msra.mxu0 0.0
  %1784 = vmatprep.subr.mxu0 0.0
  %1785 = vmatpush2.msra.mxu0 0.0
  %1786 = vmatprep.subr.mxu0 0.0
  %1787 = vmatpush2.msra.mxu0 0.0
  %1788 = vmatprep.subr.mxu0 0.0
  %1789 = vmatpush2.msra.mxu0 0.0
  %1790 = vmatprep.subr.mxu0 0.0
  %1791 = vmatpush2.msra.mxu0 0.0
  %1792 = vmatprep.subr.mxu0 0.0
  %1793 = vmatpush2.msra.mxu0 0.0
  %1794 = vmatprep.subr.mxu0 0.0
  %1795 = vmatpush2.msra.mxu0 0.0
  %1796 = vmatprep.subr.mxu0 0.0
  %1797 = vmatpush2.msra.mxu0 0.0
  %1798 = vmatprep.subr.mxu0 0.0
  %1799 = vmatpush2.msra.mxu0 0.0
  %1800 = vmatprep.subr.mxu0 0.0
  %1801 = vmatpush2.msra.mxu0 0.0
  %1802 = vmatprep.subr.mxu0 0.0
  %1803 = vmatpush2.msra.mxu0 0.0
  %1804 = vmatprep.subr.mxu0 0.0
  %1805 = vmatpush2.msra.mxu0 0.0
  %1806 = vmatprep.mubr.f32.mxu0 0.0
  %1807 = vmatmul.mubr.f32.gmra.mxu0 %v1550
  %v1808 = vpop.f32.mrf.mxu0
  %v1809 = vadd.f32 0.0, %v1808
  %v1810 = vpop.f32.mrf.mxu0
  %1811 = vdwg.mxu0
  %v1812 = vadd.f32 %v1722, %v1809
  %s1813 = scalar_lea.vmem %s4, 5
  %v1814 = vld [vmem:[%s1813] sm:$0x1]
  %v1816 = vlaneseq
  %v1817 = vshrl.u32 %v1816, 7
  %v1818 = vsub.s32 0, %v1817
  %v1819 = vrot.slane %v1814, %v1818
  %v1821 = vadd.f32 %v1812, %v1819
  %v1822 = vadd.f32 %v1821, %v1270
  %v1823 = vmax.f32 %v1822, 0.0
  %v1824 = vrot.slane %v1823, 7
  %v1825 = vsel %vm165, 0.0, %v1824
  %v1826 = vrot.slane %v1823, 1
  %v1827 = vsel %vm166, 0.0, %v1826
  %s1828 = scalar_lea.vmem %s3, 2304
  %v1829 = vld [vmem:[%s1828] sm:$0xff]
  %v1830 = vld [vmem:[%s1828 + $0x8] sm:$0xff]
  %v1831 = vld [vmem:[%s1828 + $0x10] sm:$0xff]
  %v1832 = vld [vmem:[%s1828 + $0x18] sm:$0xff]
  %v1833 = vld [vmem:[%s1828 + $0x20] sm:$0xff]
  %v1834 = vld [vmem:[%s1828 + $0x28] sm:$0xff]
  %v1835 = vld [vmem:[%s1828 + $0x30] sm:$0xff]
  %v1836 = vld [vmem:[%s1828 + $0x38] sm:$0xff]
  %v1837 = vld [vmem:[%s1828 + $0x40] sm:$0xff]
  %v1838 = vld [vmem:[%s1828 + $0x48] sm:$0xff]
  %v1839 = vld [vmem:[%s1828 + $0x50] sm:$0xff]
  %v1840 = vld [vmem:[%s1828 + $0x58] sm:$0xff]
  %v1841 = vld [vmem:[%s1828 + $0x60] sm:$0xff]
  %v1842 = vld [vmem:[%s1828 + $0x68] sm:$0xff]
  %v1843 = vld [vmem:[%s1828 + $0x70] sm:$0xff]
  %v1844 = vld [vmem:[%s1828 + $0x78] sm:$0xff]
  %s1845 = scalar_lea.vmem %s3, 2432
  %v1846 = vld [vmem:[%s1845] sm:$0xff]
  %v1847 = vld [vmem:[%s1845 + $0x8] sm:$0xff]
  %v1848 = vld [vmem:[%s1845 + $0x10] sm:$0xff]
  %v1849 = vld [vmem:[%s1845 + $0x18] sm:$0xff]
  %v1850 = vld [vmem:[%s1845 + $0x20] sm:$0xff]
  %v1851 = vld [vmem:[%s1845 + $0x28] sm:$0xff]
  %v1852 = vld [vmem:[%s1845 + $0x30] sm:$0xff]
  %v1853 = vld [vmem:[%s1845 + $0x38] sm:$0xff]
  %v1854 = vld [vmem:[%s1845 + $0x40] sm:$0xff]
  %v1855 = vld [vmem:[%s1845 + $0x48] sm:$0xff]
  %v1856 = vld [vmem:[%s1845 + $0x50] sm:$0xff]
  %v1857 = vld [vmem:[%s1845 + $0x58] sm:$0xff]
  %v1858 = vld [vmem:[%s1845 + $0x60] sm:$0xff]
  %v1859 = vld [vmem:[%s1845 + $0x68] sm:$0xff]
  %v1860 = vld [vmem:[%s1845 + $0x70] sm:$0xff]
  %v1861 = vld [vmem:[%s1845 + $0x78] sm:$0xff]
  %1862 = vmatprep.subr.mxu0 0.0
  %1863 = vmatpush1.msra.mxu0 %v1861
  %1864 = vmatprep.subr.mxu0 0.0
  %1865 = vmatpush1.msra.mxu0 %v1860
  %1866 = vmatprep.subr.mxu0 0.0
  %1867 = vmatpush1.msra.mxu0 %v1859
  %1868 = vmatprep.subr.mxu0 0.0
  %1869 = vmatpush1.msra.mxu0 %v1858
  %1870 = vmatprep.subr.mxu0 0.0
  %1871 = vmatpush1.msra.mxu0 %v1857
  %1872 = vmatprep.subr.mxu0 0.0
  %1873 = vmatpush1.msra.mxu0 %v1856
  %1874 = vmatprep.subr.mxu0 0.0
  %1875 = vmatpush1.msra.mxu0 %v1855
  %1876 = vmatprep.subr.mxu0 0.0
  %1877 = vmatpush1.msra.mxu0 %v1854
  %1878 = vmatprep.subr.mxu0 0.0
  %1879 = vmatpush1.msra.mxu0 %v1853
  %1880 = vmatprep.subr.mxu0 0.0
  %1881 = vmatpush1.msra.mxu0 %v1852
  %1882 = vmatprep.subr.mxu0 0.0
  %1883 = vmatpush1.msra.mxu0 %v1851
  %1884 = vmatprep.subr.mxu0 0.0
  %1885 = vmatpush1.msra.mxu0 %v1850
  %1886 = vmatprep.subr.mxu0 0.0
  %1887 = vmatpush1.msra.mxu0 %v1849
  %1888 = vmatprep.subr.mxu0 0.0
  %1889 = vmatpush1.msra.mxu0 %v1848
  %1890 = vmatprep.subr.mxu0 0.0
  %1891 = vmatpush1.msra.mxu0 %v1847
  %1892 = vmatprep.subr.mxu0 0.0
  %1893 = vmatpush1.msra.mxu0 %v1846
  %1894 = vmatprep.subr.mxu0 0.0
  %1895 = vmatpush2.msra.mxu0 0.0
  %1896 = vmatprep.subr.mxu0 0.0
  %1897 = vmatpush2.msra.mxu0 0.0
  %1898 = vmatprep.subr.mxu0 0.0
  %1899 = vmatpush2.msra.mxu0 0.0
  %1900 = vmatprep.subr.mxu0 0.0
  %1901 = vmatpush2.msra.mxu0 0.0
  %1902 = vmatprep.subr.mxu0 0.0
  %1903 = vmatpush2.msra.mxu0 0.0
  %1904 = vmatprep.subr.mxu0 0.0
  %1905 = vmatpush2.msra.mxu0 0.0
  %1906 = vmatprep.subr.mxu0 0.0
  %1907 = vmatpush2.msra.mxu0 0.0
  %1908 = vmatprep.subr.mxu0 0.0
  %1909 = vmatpush2.msra.mxu0 0.0
  %1910 = vmatprep.subr.mxu0 0.0
  %1911 = vmatpush2.msra.mxu0 0.0
  %1912 = vmatprep.subr.mxu0 0.0
  %1913 = vmatpush2.msra.mxu0 0.0
  %1914 = vmatprep.subr.mxu0 0.0
  %1915 = vmatpush2.msra.mxu0 0.0
  %1916 = vmatprep.subr.mxu0 0.0
  %1917 = vmatpush2.msra.mxu0 0.0
  %1918 = vmatprep.subr.mxu0 0.0
  %1919 = vmatpush2.msra.mxu0 0.0
  %1920 = vmatprep.subr.mxu0 0.0
  %1921 = vmatpush2.msra.mxu0 0.0
  %1922 = vmatprep.subr.mxu0 0.0
  %1923 = vmatpush2.msra.mxu0 0.0
  %1924 = vmatprep.subr.mxu0 0.0
  %1925 = vmatpush2.msra.mxu0 0.0
  %1926 = vmatprep.mubr.f32.mxu0 0.0
  %1927 = vmatmul.mubr.f32.gmra.mxu0 %v1823
  %v1928 = vpop.f32.mrf.mxu0
  %v1929 = vadd.f32 0.0, %v1928
  %v1930 = vpop.f32.mrf.mxu0
  %1931 = vdwg.mxu0
  %1932 = vmatprep.subr.mxu0 0.0
  %1933 = vmatpush1.msra.mxu0 %v1844
  %1934 = vmatprep.subr.mxu0 0.0
  %1935 = vmatpush1.msra.mxu0 %v1843
  %1936 = vmatprep.subr.mxu0 0.0
  %1937 = vmatpush1.msra.mxu0 %v1842
  %1938 = vmatprep.subr.mxu0 0.0
  %1939 = vmatpush1.msra.mxu0 %v1841
  %1940 = vmatprep.subr.mxu0 0.0
  %1941 = vmatpush1.msra.mxu0 %v1840
  %1942 = vmatprep.subr.mxu0 0.0
  %1943 = vmatpush1.msra.mxu0 %v1839
  %1944 = vmatprep.subr.mxu0 0.0
  %1945 = vmatpush1.msra.mxu0 %v1838
  %1946 = vmatprep.subr.mxu0 0.0
  %1947 = vmatpush1.msra.mxu0 %v1837
  %1948 = vmatprep.subr.mxu0 0.0
  %1949 = vmatpush1.msra.mxu0 %v1836
  %1950 = vmatprep.subr.mxu0 0.0
  %1951 = vmatpush1.msra.mxu0 %v1835
  %1952 = vmatprep.subr.mxu0 0.0
  %1953 = vmatpush1.msra.mxu0 %v1834
  %1954 = vmatprep.subr.mxu0 0.0
  %1955 = vmatpush1.msra.mxu0 %v1833
  %1956 = vmatprep.subr.mxu0 0.0
  %1957 = vmatpush1.msra.mxu0 %v1832
  %1958 = vmatprep.subr.mxu0 0.0
  %1959 = vmatpush1.msra.mxu0 %v1831
  %1960 = vmatprep.subr.mxu0 0.0
  %1961 = vmatpush1.msra.mxu0 %v1830
  %1962 = vmatprep.subr.mxu0 0.0
  %1963 = vmatpush1.msra.mxu0 %v1829
  %1964 = vmatprep.subr.mxu0 0.0
  %1965 = vmatpush2.msra.mxu0 0.0
  %1966 = vmatprep.subr.mxu0 0.0
  %1967 = vmatpush2.msra.mxu0 0.0
  %1968 = vmatprep.subr.mxu0 0.0
  %1969 = vmatpush2.msra.mxu0 0.0
  %1970 = vmatprep.subr.mxu0 0.0
  %1971 = vmatpush2.msra.mxu0 0.0
  %1972 = vmatprep.subr.mxu0 0.0
  %1973 = vmatpush2.msra.mxu0 0.0
  %1974 = vmatprep.subr.mxu0 0.0
  %1975 = vmatpush2.msra.mxu0 0.0
  %1976 = vmatprep.subr.mxu0 0.0
  %1977 = vmatpush2.msra.mxu0 0.0
  %1978 = vmatprep.subr.mxu0 0.0
  %1979 = vmatpush2.msra.mxu0 0.0
  %1980 = vmatprep.subr.mxu0 0.0
  %1981 = vmatpush2.msra.mxu0 0.0
  %1982 = vmatprep.subr.mxu0 0.0
  %1983 = vmatpush2.msra.mxu0 0.0
  %1984 = vmatprep.subr.mxu0 0.0
  %1985 = vmatpush2.msra.mxu0 0.0
  %1986 = vmatprep.subr.mxu0 0.0
  %1987 = vmatpush2.msra.mxu0 0.0
  %1988 = vmatprep.subr.mxu0 0.0
  %1989 = vmatpush2.msra.mxu0 0.0
  %1990 = vmatprep.subr.mxu0 0.0
  %1991 = vmatpush2.msra.mxu0 0.0
  %1992 = vmatprep.subr.mxu0 0.0
  %1993 = vmatpush2.msra.mxu0 0.0
  %1994 = vmatprep.subr.mxu0 0.0
  %1995 = vmatpush2.msra.mxu0 0.0
  %1996 = vmatprep.mubr.f32.mxu0 0.0
  %1997 = vmatmul.mubr.f32.gmra.mxu0 %v1825
  %v1998 = vpop.f32.mrf.mxu0
  %v1999 = vadd.f32 %v1929, %v1998
  %v2000 = vpop.f32.mrf.mxu0
  %2001 = vdwg.mxu0
  %s2002 = scalar_lea.vmem %s3, 2560
  %v2003 = vld [vmem:[%s2002] sm:$0xff]
  %v2004 = vld [vmem:[%s2002 + $0x8] sm:$0xff]
  %v2005 = vld [vmem:[%s2002 + $0x10] sm:$0xff]
  %v2006 = vld [vmem:[%s2002 + $0x18] sm:$0xff]
  %v2007 = vld [vmem:[%s2002 + $0x20] sm:$0xff]
  %v2008 = vld [vmem:[%s2002 + $0x28] sm:$0xff]
  %v2009 = vld [vmem:[%s2002 + $0x30] sm:$0xff]
  %v2010 = vld [vmem:[%s2002 + $0x38] sm:$0xff]
  %v2011 = vld [vmem:[%s2002 + $0x40] sm:$0xff]
  %v2012 = vld [vmem:[%s2002 + $0x48] sm:$0xff]
  %v2013 = vld [vmem:[%s2002 + $0x50] sm:$0xff]
  %v2014 = vld [vmem:[%s2002 + $0x58] sm:$0xff]
  %v2015 = vld [vmem:[%s2002 + $0x60] sm:$0xff]
  %v2016 = vld [vmem:[%s2002 + $0x68] sm:$0xff]
  %v2017 = vld [vmem:[%s2002 + $0x70] sm:$0xff]
  %v2018 = vld [vmem:[%s2002 + $0x78] sm:$0xff]
  %2019 = vmatprep.subr.mxu0 0.0
  %2020 = vmatpush1.msra.mxu0 %v2018
  %2021 = vmatprep.subr.mxu0 0.0
  %2022 = vmatpush1.msra.mxu0 %v2017
  %2023 = vmatprep.subr.mxu0 0.0
  %2024 = vmatpush1.msra.mxu0 %v2016
  %2025 = vmatprep.subr.mxu0 0.0
  %2026 = vmatpush1.msra.mxu0 %v2015
  %2027 = vmatprep.subr.mxu0 0.0
  %2028 = vmatpush1.msra.mxu0 %v2014
  %2029 = vmatprep.subr.mxu0 0.0
  %2030 = vmatpush1.msra.mxu0 %v2013
  %2031 = vmatprep.subr.mxu0 0.0
  %2032 = vmatpush1.msra.mxu0 %v2012
  %2033 = vmatprep.subr.mxu0 0.0
  %2034 = vmatpush1.msra.mxu0 %v2011
  %2035 = vmatprep.subr.mxu0 0.0
  %2036 = vmatpush1.msra.mxu0 %v2010
  %2037 = vmatprep.subr.mxu0 0.0
  %2038 = vmatpush1.msra.mxu0 %v2009
  %2039 = vmatprep.subr.mxu0 0.0
  %2040 = vmatpush1.msra.mxu0 %v2008
  %2041 = vmatprep.subr.mxu0 0.0
  %2042 = vmatpush1.msra.mxu0 %v2007
  %2043 = vmatprep.subr.mxu0 0.0
  %2044 = vmatpush1.msra.mxu0 %v2006
  %2045 = vmatprep.subr.mxu0 0.0
  %2046 = vmatpush1.msra.mxu0 %v2005
  %2047 = vmatprep.subr.mxu0 0.0
  %2048 = vmatpush1.msra.mxu0 %v2004
  %2049 = vmatprep.subr.mxu0 0.0
  %2050 = vmatpush1.msra.mxu0 %v2003
  %2051 = vmatprep.subr.mxu0 0.0
  %2052 = vmatpush2.msra.mxu0 0.0
  %2053 = vmatprep.subr.mxu0 0.0
  %2054 = vmatpush2.msra.mxu0 0.0
  %2055 = vmatprep.subr.mxu0 0.0
  %2056 = vmatpush2.msra.mxu0 0.0
  %2057 = vmatprep.subr.mxu0 0.0
  %2058 = vmatpush2.msra.mxu0 0.0
  %2059 = vmatprep.subr.mxu0 0.0
  %2060 = vmatpush2.msra.mxu0 0.0
  %2061 = vmatprep.subr.mxu0 0.0
  %2062 = vmatpush2.msra.mxu0 0.0
  %2063 = vmatprep.subr.mxu0 0.0
  %2064 = vmatpush2.msra.mxu0 0.0
  %2065 = vmatprep.subr.mxu0 0.0
  %2066 = vmatpush2.msra.mxu0 0.0
  %2067 = vmatprep.subr.mxu0 0.0
  %2068 = vmatpush2.msra.mxu0 0.0
  %2069 = vmatprep.subr.mxu0 0.0
  %2070 = vmatpush2.msra.mxu0 0.0
  %2071 = vmatprep.subr.mxu0 0.0
  %2072 = vmatpush2.msra.mxu0 0.0
  %2073 = vmatprep.subr.mxu0 0.0
  %2074 = vmatpush2.msra.mxu0 0.0
  %2075 = vmatprep.subr.mxu0 0.0
  %2076 = vmatpush2.msra.mxu0 0.0
  %2077 = vmatprep.subr.mxu0 0.0
  %2078 = vmatpush2.msra.mxu0 0.0
  %2079 = vmatprep.subr.mxu0 0.0
  %2080 = vmatpush2.msra.mxu0 0.0
  %2081 = vmatprep.subr.mxu0 0.0
  %2082 = vmatpush2.msra.mxu0 0.0
  %2083 = vmatprep.mubr.f32.mxu0 0.0
  %2084 = vmatmul.mubr.f32.gmra.mxu0 %v1827
  %v2085 = vpop.f32.mrf.mxu0
  %v2086 = vadd.f32 0.0, %v2085
  %v2087 = vpop.f32.mrf.mxu0
  %2088 = vdwg.mxu0
  %v2089 = vadd.f32 %v1999, %v2086
  %s2090 = scalar_lea.vmem %s4, 6
  %v2091 = vld [vmem:[%s2090] sm:$0x1]
  %v2093 = vlaneseq
  %v2094 = vshrl.u32 %v2093, 7
  %v2095 = vsub.s32 0, %v2094
  %v2096 = vrot.slane %v2091, %v2095
  %v2098 = vadd.f32 %v2089, %v2096
  %v2099 = vmax.f32 %v2098, 0.0
  %v2100 = vrot.slane %v2099, 7
  %v2101 = vsel %vm165, 0.0, %v2100
  %v2102 = vrot.slane %v2099, 1
  %v2103 = vsel %vm166, 0.0, %v2102
  %s2104 = scalar_lea.vmem %s3, 2688
  %v2105 = vld [vmem:[%s2104] sm:$0xff]
  %v2106 = vld [vmem:[%s2104 + $0x8] sm:$0xff]
  %v2107 = vld [vmem:[%s2104 + $0x10] sm:$0xff]
  %v2108 = vld [vmem:[%s2104 + $0x18] sm:$0xff]
  %v2109 = vld [vmem:[%s2104 + $0x20] sm:$0xff]
  %v2110 = vld [vmem:[%s2104 + $0x28] sm:$0xff]
  %v2111 = vld [vmem:[%s2104 + $0x30] sm:$0xff]
  %v2112 = vld [vmem:[%s2104 + $0x38] sm:$0xff]
  %v2113 = vld [vmem:[%s2104 + $0x40] sm:$0xff]
  %v2114 = vld [vmem:[%s2104 + $0x48] sm:$0xff]
  %v2115 = vld [vmem:[%s2104 + $0x50] sm:$0xff]
  %v2116 = vld [vmem:[%s2104 + $0x58] sm:$0xff]
  %v2117 = vld [vmem:[%s2104 + $0x60] sm:$0xff]
  %v2118 = vld [vmem:[%s2104 + $0x68] sm:$0xff]
  %v2119 = vld [vmem:[%s2104 + $0x70] sm:$0xff]
  %v2120 = vld [vmem:[%s2104 + $0x78] sm:$0xff]
  %s2121 = scalar_lea.vmem %s3, 2816
  %v2122 = vld [vmem:[%s2121] sm:$0xff]
  %v2123 = vld [vmem:[%s2121 + $0x8] sm:$0xff]
  %v2124 = vld [vmem:[%s2121 + $0x10] sm:$0xff]
  %v2125 = vld [vmem:[%s2121 + $0x18] sm:$0xff]
  %v2126 = vld [vmem:[%s2121 + $0x20] sm:$0xff]
  %v2127 = vld [vmem:[%s2121 + $0x28] sm:$0xff]
  %v2128 = vld [vmem:[%s2121 + $0x30] sm:$0xff]
  %v2129 = vld [vmem:[%s2121 + $0x38] sm:$0xff]
  %v2130 = vld [vmem:[%s2121 + $0x40] sm:$0xff]
  %v2131 = vld [vmem:[%s2121 + $0x48] sm:$0xff]
  %v2132 = vld [vmem:[%s2121 + $0x50] sm:$0xff]
  %v2133 = vld [vmem:[%s2121 + $0x58] sm:$0xff]
  %v2134 = vld [vmem:[%s2121 + $0x60] sm:$0xff]
  %v2135 = vld [vmem:[%s2121 + $0x68] sm:$0xff]
  %v2136 = vld [vmem:[%s2121 + $0x70] sm:$0xff]
  %v2137 = vld [vmem:[%s2121 + $0x78] sm:$0xff]
  %2138 = vmatprep.subr.mxu0 0.0
  %2139 = vmatpush1.msra.mxu0 %v2137
  %2140 = vmatprep.subr.mxu0 0.0
  %2141 = vmatpush1.msra.mxu0 %v2136
  %2142 = vmatprep.subr.mxu0 0.0
  %2143 = vmatpush1.msra.mxu0 %v2135
  %2144 = vmatprep.subr.mxu0 0.0
  %2145 = vmatpush1.msra.mxu0 %v2134
  %2146 = vmatprep.subr.mxu0 0.0
  %2147 = vmatpush1.msra.mxu0 %v2133
  %2148 = vmatprep.subr.mxu0 0.0
  %2149 = vmatpush1.msra.mxu0 %v2132
  %2150 = vmatprep.subr.mxu0 0.0
  %2151 = vmatpush1.msra.mxu0 %v2131
  %2152 = vmatprep.subr.mxu0 0.0
  %2153 = vmatpush1.msra.mxu0 %v2130
  %2154 = vmatprep.subr.mxu0 0.0
  %2155 = vmatpush1.msra.mxu0 %v2129
  %2156 = vmatprep.subr.mxu0 0.0
  %2157 = vmatpush1.msra.mxu0 %v2128
  %2158 = vmatprep.subr.mxu0 0.0
  %2159 = vmatpush1.msra.mxu0 %v2127
  %2160 = vmatprep.subr.mxu0 0.0
  %2161 = vmatpush1.msra.mxu0 %v2126
  %2162 = vmatprep.subr.mxu0 0.0
  %2163 = vmatpush1.msra.mxu0 %v2125
  %2164 = vmatprep.subr.mxu0 0.0
  %2165 = vmatpush1.msra.mxu0 %v2124
  %2166 = vmatprep.subr.mxu0 0.0
  %2167 = vmatpush1.msra.mxu0 %v2123
  %2168 = vmatprep.subr.mxu0 0.0
  %2169 = vmatpush1.msra.mxu0 %v2122
  %2170 = vmatprep.subr.mxu0 0.0
  %2171 = vmatpush2.msra.mxu0 0.0
  %2172 = vmatprep.subr.mxu0 0.0
  %2173 = vmatpush2.msra.mxu0 0.0
  %2174 = vmatprep.subr.mxu0 0.0
  %2175 = vmatpush2.msra.mxu0 0.0
  %2176 = vmatprep.subr.mxu0 0.0
  %2177 = vmatpush2.msra.mxu0 0.0
  %2178 = vmatprep.subr.mxu0 0.0
  %2179 = vmatpush2.msra.mxu0 0.0
  %2180 = vmatprep.subr.mxu0 0.0
  %2181 = vmatpush2.msra.mxu0 0.0
  %2182 = vmatprep.subr.mxu0 0.0
  %2183 = vmatpush2.msra.mxu0 0.0
  %2184 = vmatprep.subr.mxu0 0.0
  %2185 = vmatpush2.msra.mxu0 0.0
  %2186 = vmatprep.subr.mxu0 0.0
  %2187 = vmatpush2.msra.mxu0 0.0
  %2188 = vmatprep.subr.mxu0 0.0
  %2189 = vmatpush2.msra.mxu0 0.0
  %2190 = vmatprep.subr.mxu0 0.0
  %2191 = vmatpush2.msra.mxu0 0.0
  %2192 = vmatprep.subr.mxu0 0.0
  %2193 = vmatpush2.msra.mxu0 0.0
  %2194 = vmatprep.subr.mxu0 0.0
  %2195 = vmatpush2.msra.mxu0 0.0
  %2196 = vmatprep.subr.mxu0 0.0
  %2197 = vmatpush2.msra.mxu0 0.0
  %2198 = vmatprep.subr.mxu0 0.0
  %2199 = vmatpush2.msra.mxu0 0.0
  %2200 = vmatprep.subr.mxu0 0.0
  %2201 = vmatpush2.msra.mxu0 0.0
  %2202 = vmatprep.mubr.f32.mxu0 0.0
  %2203 = vmatmul.mubr.f32.gmra.mxu0 %v2099
  %v2204 = vpop.f32.mrf.mxu0
  %v2205 = vadd.f32 0.0, %v2204
  %v2206 = vpop.f32.mrf.mxu0
  %2207 = vdwg.mxu0
  %2208 = vmatprep.subr.mxu0 0.0
  %2209 = vmatpush1.msra.mxu0 %v2120
  %2210 = vmatprep.subr.mxu0 0.0
  %2211 = vmatpush1.msra.mxu0 %v2119
  %2212 = vmatprep.subr.mxu0 0.0
  %2213 = vmatpush1.msra.mxu0 %v2118
  %2214 = vmatprep.subr.mxu0 0.0
  %2215 = vmatpush1.msra.mxu0 %v2117
  %2216 = vmatprep.subr.mxu0 0.0
  %2217 = vmatpush1.msra.mxu0 %v2116
  %2218 = vmatprep.subr.mxu0 0.0
  %2219 = vmatpush1.msra.mxu0 %v2115
  %2220 = vmatprep.subr.mxu0 0.0
  %2221 = vmatpush1.msra.mxu0 %v2114
  %2222 = vmatprep.subr.mxu0 0.0
  %2223 = vmatpush1.msra.mxu0 %v2113
  %2224 = vmatprep.subr.mxu0 0.0
  %2225 = vmatpush1.msra.mxu0 %v2112
  %2226 = vmatprep.subr.mxu0 0.0
  %2227 = vmatpush1.msra.mxu0 %v2111
  %2228 = vmatprep.subr.mxu0 0.0
  %2229 = vmatpush1.msra.mxu0 %v2110
  %2230 = vmatprep.subr.mxu0 0.0
  %2231 = vmatpush1.msra.mxu0 %v2109
  %2232 = vmatprep.subr.mxu0 0.0
  %2233 = vmatpush1.msra.mxu0 %v2108
  %2234 = vmatprep.subr.mxu0 0.0
  %2235 = vmatpush1.msra.mxu0 %v2107
  %2236 = vmatprep.subr.mxu0 0.0
  %2237 = vmatpush1.msra.mxu0 %v2106
  %2238 = vmatprep.subr.mxu0 0.0
  %2239 = vmatpush1.msra.mxu0 %v2105
  %2240 = vmatprep.subr.mxu0 0.0
  %2241 = vmatpush2.msra.mxu0 0.0
  %2242 = vmatprep.subr.mxu0 0.0
  %2243 = vmatpush2.msra.mxu0 0.0
  %2244 = vmatprep.subr.mxu0 0.0
  %2245 = vmatpush2.msra.mxu0 0.0
  %2246 = vmatprep.subr.mxu0 0.0
  %2247 = vmatpush2.msra.mxu0 0.0
  %2248 = vmatprep.subr.mxu0 0.0
  %2249 = vmatpush2.msra.mxu0 0.0
  %2250 = vmatprep.subr.mxu0 0.0
  %2251 = vmatpush2.msra.mxu0 0.0
  %2252 = vmatprep.subr.mxu0 0.0
  %2253 = vmatpush2.msra.mxu0 0.0
  %2254 = vmatprep.subr.mxu0 0.0
  %2255 = vmatpush2.msra.mxu0 0.0
  %2256 = vmatprep.subr.mxu0 0.0
  %2257 = vmatpush2.msra.mxu0 0.0
  %2258 = vmatprep.subr.mxu0 0.0
  %2259 = vmatpush2.msra.mxu0 0.0
  %2260 = vmatprep.subr.mxu0 0.0
  %2261 = vmatpush2.msra.mxu0 0.0
  %2262 = vmatprep.subr.mxu0 0.0
  %2263 = vmatpush2.msra.mxu0 0.0
  %2264 = vmatprep.subr.mxu0 0.0
  %2265 = vmatpush2.msra.mxu0 0.0
  %2266 = vmatprep.subr.mxu0 0.0
  %2267 = vmatpush2.msra.mxu0 0.0
  %2268 = vmatprep.subr.mxu0 0.0
  %2269 = vmatpush2.msra.mxu0 0.0
  %2270 = vmatprep.subr.mxu0 0.0
  %2271 = vmatpush2.msra.mxu0 0.0
  %2272 = vmatprep.mubr.f32.mxu0 0.0
  %2273 = vmatmul.mubr.f32.gmra.mxu0 %v2101
  %v2274 = vpop.f32.mrf.mxu0
  %v2275 = vadd.f32 %v2205, %v2274
  %v2276 = vpop.f32.mrf.mxu0
  %2277 = vdwg.mxu0
  %s2278 = scalar_lea.vmem %s3, 2944
  %v2279 = vld [vmem:[%s2278] sm:$0xff]
  %v2280 = vld [vmem:[%s2278 + $0x8] sm:$0xff]
  %v2281 = vld [vmem:[%s2278 + $0x10] sm:$0xff]
  %v2282 = vld [vmem:[%s2278 + $0x18] sm:$0xff]
  %v2283 = vld [vmem:[%s2278 + $0x20] sm:$0xff]
  %v2284 = vld [vmem:[%s2278 + $0x28] sm:$0xff]
  %v2285 = vld [vmem:[%s2278 + $0x30] sm:$0xff]
  %v2286 = vld [vmem:[%s2278 + $0x38] sm:$0xff]
  %v2287 = vld [vmem:[%s2278 + $0x40] sm:$0xff]
  %v2288 = vld [vmem:[%s2278 + $0x48] sm:$0xff]
  %v2289 = vld [vmem:[%s2278 + $0x50] sm:$0xff]
  %v2290 = vld [vmem:[%s2278 + $0x58] sm:$0xff]
  %v2291 = vld [vmem:[%s2278 + $0x60] sm:$0xff]
  %v2292 = vld [vmem:[%s2278 + $0x68] sm:$0xff]
  %v2293 = vld [vmem:[%s2278 + $0x70] sm:$0xff]
  %v2294 = vld [vmem:[%s2278 + $0x78] sm:$0xff]
  %2295 = vmatprep.subr.mxu0 0.0
  %2296 = vmatpush1.msra.mxu0 %v2294
  %2297 = vmatprep.subr.mxu0 0.0
  %2298 = vmatpush1.msra.mxu0 %v2293
  %2299 = vmatprep.subr.mxu0 0.0
  %2300 = vmatpush1.msra.mxu0 %v2292
  %2301 = vmatprep.subr.mxu0 0.0
  %2302 = vmatpush1.msra.mxu0 %v2291
  %2303 = vmatprep.subr.mxu0 0.0
  %2304 = vmatpush1.msra.mxu0 %v2290
  %2305 = vmatprep.subr.mxu0 0.0
  %2306 = vmatpush1.msra.mxu0 %v2289
  %2307 = vmatprep.subr.mxu0 0.0
  %2308 = vmatpush1.msra.mxu0 %v2288
  %2309 = vmatprep.subr.mxu0 0.0
  %2310 = vmatpush1.msra.mxu0 %v2287
  %2311 = vmatprep.subr.mxu0 0.0
  %2312 = vmatpush1.msra.mxu0 %v2286
  %2313 = vmatprep.subr.mxu0 0.0
  %2314 = vmatpush1.msra.mxu0 %v2285
  %2315 = vmatprep.subr.mxu0 0.0
  %2316 = vmatpush1.msra.mxu0 %v2284
  %2317 = vmatprep.subr.mxu0 0.0
  %2318 = vmatpush1.msra.mxu0 %v2283
  %2319 = vmatprep.subr.mxu0 0.0
  %2320 = vmatpush1.msra.mxu0 %v2282
  %2321 = vmatprep.subr.mxu0 0.0
  %2322 = vmatpush1.msra.mxu0 %v2281
  %2323 = vmatprep.subr.mxu0 0.0
  %2324 = vmatpush1.msra.mxu0 %v2280
  %2325 = vmatprep.subr.mxu0 0.0
  %2326 = vmatpush1.msra.mxu0 %v2279
  %2327 = vmatprep.subr.mxu0 0.0
  %2328 = vmatpush2.msra.mxu0 0.0
  %2329 = vmatprep.subr.mxu0 0.0
  %2330 = vmatpush2.msra.mxu0 0.0
  %2331 = vmatprep.subr.mxu0 0.0
  %2332 = vmatpush2.msra.mxu0 0.0
  %2333 = vmatprep.subr.mxu0 0.0
  %2334 = vmatpush2.msra.mxu0 0.0
  %2335 = vmatprep.subr.mxu0 0.0
  %2336 = vmatpush2.msra.mxu0 0.0
  %2337 = vmatprep.subr.mxu0 0.0
  %2338 = vmatpush2.msra.mxu0 0.0
  %2339 = vmatprep.subr.mxu0 0.0
  %2340 = vmatpush2.msra.mxu0 0.0
  %2341 = vmatprep.subr.mxu0 0.0
  %2342 = vmatpush2.msra.mxu0 0.0
  %2343 = vmatprep.subr.mxu0 0.0
  %2344 = vmatpush2.msra.mxu0 0.0
  %2345 = vmatprep.subr.mxu0 0.0
  %2346 = vmatpush2.msra.mxu0 0.0
  %2347 = vmatprep.subr.mxu0 0.0
  %2348 = vmatpush2.msra.mxu0 0.0
  %2349 = vmatprep.subr.mxu0 0.0
  %2350 = vmatpush2.msra.mxu0 0.0
  %2351 = vmatprep.subr.mxu0 0.0
  %2352 = vmatpush2.msra.mxu0 0.0
  %2353 = vmatprep.subr.mxu0 0.0
  %2354 = vmatpush2.msra.mxu0 0.0
  %2355 = vmatprep.subr.mxu0 0.0
  %2356 = vmatpush2.msra.mxu0 0.0
  %2357 = vmatprep.subr.mxu0 0.0
  %2358 = vmatpush2.msra.mxu0 0.0
  %2359 = vmatprep.mubr.f32.mxu0 0.0
  %2360 = vmatmul.mubr.f32.gmra.mxu0 %v2103
  %v2361 = vpop.f32.mrf.mxu0
  %v2362 = vadd.f32 0.0, %v2361
  %v2363 = vpop.f32.mrf.mxu0
  %2364 = vdwg.mxu0
  %v2365 = vadd.f32 %v2275, %v2362
  %s2366 = scalar_lea.vmem %s4, 7
  %v2367 = vld [vmem:[%s2366] sm:$0x1]
  %v2369 = vlaneseq
  %v2370 = vshrl.u32 %v2369, 7
  %v2371 = vsub.s32 0, %v2370
  %v2372 = vrot.slane %v2367, %v2371
  %v2374 = vadd.f32 %v2365, %v2372
  %v2375 = vadd.f32 %v2374, %v1823
  %v2376 = vmax.f32 %v2375, 0.0
  %v2377 = vrot.slane %v2376, 4
  %v2378 = vmax.f32 %v2376, %v2377
  %v2379 = vrot.slane %v2378, 2
  %v2380 = vmax.f32 %v2378, %v2379
  %v2381 = vrot.slane %v2380, 1
  %v2382 = vmax.f32 %v2380, %v2381
  %2384 = vrot.lane.b32.xlu0 %v2382, 96
  %v2385 = vpop.permute.xlu0 %2384
  %2387 = vrot.lane.b32.xlu0 %v2382, 64
  %v2388 = vpop.permute.xlu0 %2387
  %2390 = vrot.lane.b32.xlu0 %v2382, 32
  %v2391 = vpop.permute.xlu0 %2390
  %vm2393 = vcmask 1040384
  %v2394 = vsel %vm2393, %v2382, %v2385
  %vm2395 = vcmask 1041408
  %v2396 = vsel %vm2395, %v2394, %v2388
  %vm2397 = vcmask 1042432
  %v2398 = vsel %vm2397, %v2396, %v2391
  %v2399 = vld [vmem:[%s6] sm:$0xff]
  %v2400 = vld [vmem:[%s6 + $0x8] sm:$0xff]
  %v2401 = vld [vmem:[%s6 + $0x10] sm:$0xff]
  %v2402 = vld [vmem:[%s6 + $0x18] sm:$0xff]
  %v2403 = vld [vmem:[%s6 + $0x20] sm:$0xff]
  %v2404 = vld [vmem:[%s6 + $0x28] sm:$0xff]
  %v2405 = vld [vmem:[%s6 + $0x30] sm:$0xff]
  %v2406 = vld [vmem:[%s6 + $0x38] sm:$0xff]
  %v2407 = vld [vmem:[%s5] sm:$0xf]
  %v2408 = vld [vmem:[%s6 + $0x40] sm:$0xff]
  %v2409 = vld [vmem:[%s6 + $0x48] sm:$0xff]
  %v2410 = vld [vmem:[%s6 + $0x50] sm:$0xff]
  %v2411 = vld [vmem:[%s6 + $0x58] sm:$0xff]
  %vm2412 = vcmask 130048
  %v2414 = vsel %vm2412, %v2407, 0
  %2416 = vmatprep.subr.mxu0 0.0
  %2417 = vmatpush1.msra.mxu0 0.0
  %2418 = vmatprep.subr.mxu0 0.0
  %2419 = vmatpush1.msra.mxu0 0.0
  %2420 = vmatprep.subr.mxu0 0.0
  %2421 = vmatpush1.msra.mxu0 0.0
  %2422 = vmatprep.subr.mxu0 0.0
  %2423 = vmatpush1.msra.mxu0 0.0
  %2424 = vmatprep.subr.mxu0 0.0
  %2425 = vmatpush1.msra.mxu0 0.0
  %2426 = vmatprep.subr.mxu0 0.0
  %2427 = vmatpush1.msra.mxu0 0.0
  %2428 = vmatprep.subr.mxu0 0.0
  %2429 = vmatpush1.msra.mxu0 0.0
  %2430 = vmatprep.subr.mxu0 0.0
  %2431 = vmatpush1.msra.mxu0 0.0
  %2432 = vmatprep.subr.mxu0 0.0
  %2433 = vmatpush1.msra.mxu0 0.0
  %2434 = vmatprep.subr.mxu0 0.0
  %2435 = vmatpush1.msra.mxu0 0.0
  %2436 = vmatprep.subr.mxu0 0.0
  %2437 = vmatpush1.msra.mxu0 0.0
  %2438 = vmatprep.subr.mxu0 0.0
  %2439 = vmatpush1.msra.mxu0 0.0
  %2440 = vmatprep.subr.mxu0 0.0
  %2441 = vmatpush1.msra.mxu0 0.0
  %2442 = vmatprep.subr.mxu0 0.0
  %2443 = vmatpush1.msra.mxu0 0.0
  %2444 = vmatprep.subr.mxu0 %v2411
  %2445 = vmatpush1.msra.mxu0 %v2410
  %2446 = vmatprep.subr.mxu0 %v2409
  %2447 = vmatpush1.msra.mxu0 %v2408
  %2448 = vmatprep.subr.mxu0 0.0
  %2449 = vmatpush2.msra.mxu0 0.0
  %2450 = vmatprep.subr.mxu0 0.0
  %2451 = vmatpush2.msra.mxu0 0.0
  %2452 = vmatprep.subr.mxu0 0.0
  %2453 = vmatpush2.msra.mxu0 0.0
  %2454 = vmatprep.subr.mxu0 0.0
  %2455 = vmatpush2.msra.mxu0 0.0
  %2456 = vmatprep.subr.mxu0 0.0
  %2457 = vmatpush2.msra.mxu0 0.0
  %2458 = vmatprep.subr.mxu0 0.0
  %2459 = vmatpush2.msra.mxu0 0.0
  %2460 = vmatprep.subr.mxu0 0.0
  %2461 = vmatpush2.msra.mxu0 0.0
  %2462 = vmatprep.subr.mxu0 0.0
  %2463 = vmatpush2.msra.mxu0 0.0
  %2464 = vmatprep.subr.mxu0 0.0
  %2465 = vmatpush2.msra.mxu0 0.0
  %2466 = vmatprep.subr.mxu0 0.0
  %2467 = vmatpush2.msra.mxu0 0.0
  %2468 = vmatprep.subr.mxu0 0.0
  %2469 = vmatpush2.msra.mxu0 0.0
  %2470 = vmatprep.subr.mxu0 0.0
  %2471 = vmatpush2.msra.mxu0 0.0
  %2472 = vmatprep.subr.mxu0 0.0
  %2473 = vmatpush2.msra.mxu0 0.0
  %2474 = vmatprep.subr.mxu0 0.0
  %2475 = vmatpush2.msra.mxu0 0.0
  %2476 = vmatprep.subr.mxu0 0.0
  %2477 = vmatpush2.msra.mxu0 0.0
  %2478 = vmatprep.subr.mxu0 0.0
  %2479 = vmatpush2.msra.mxu0 0.0
  %2480 = vmatprep.mubr.f32.mxu0 0.0
  %2481 = vmatmul.mubr.f32.gmra.mxu0 %v2414
  %v2482 = vpop.f32.mrf.mxu0
  %v2483 = vadd.f32 0.0, %v2482
  %v2484 = vpop.f32.mrf.mxu0
  %v2485 = vadd.f32 0.0, %v2484
  %2486 = vdwg.mxu0
  %vm2487 = vcmask 261120
  %v2489 = vsel %vm2487, %v2398, 0
  %2491 = vmatprep.subr.mxu0 0.0
  %2492 = vmatpush1.msra.mxu0 0.0
  %2493 = vmatprep.subr.mxu0 0.0
  %2494 = vmatpush1.msra.mxu0 0.0
  %2495 = vmatprep.subr.mxu0 0.0
  %2496 = vmatpush1.msra.mxu0 0.0
  %2497 = vmatprep.subr.mxu0 0.0
  %2498 = vmatpush1.msra.mxu0 0.0
  %2499 = vmatprep.subr.mxu0 0.0
  %2500 = vmatpush1.msra.mxu0 0.0
  %2501 = vmatprep.subr.mxu0 0.0
  %2502 = vmatpush1.msra.mxu0 0.0
  %2503 = vmatprep.subr.mxu0 0.0
  %2504 = vmatpush1.msra.mxu0 0.0
  %2505 = vmatprep.subr.mxu0 0.0
  %2506 = vmatpush1.msra.mxu0 0.0
  %2507 = vmatprep.subr.mxu0 0.0
  %2508 = vmatpush1.msra.mxu0 0.0
  %2509 = vmatprep.subr.mxu0 0.0
  %2510 = vmatpush1.msra.mxu0 0.0
  %2511 = vmatprep.subr.mxu0 0.0
  %2512 = vmatpush1.msra.mxu0 0.0
  %2513 = vmatprep.subr.mxu0 0.0
  %2514 = vmatpush1.msra.mxu0 0.0
  %2515 = vmatprep.subr.mxu0 %v2406
  %2516 = vmatpush1.msra.mxu0 %v2405
  %2517 = vmatprep.subr.mxu0 %v2404
  %2518 = vmatpush1.msra.mxu0 %v2403
  %2519 = vmatprep.subr.mxu0 %v2402
  %2520 = vmatpush1.msra.mxu0 %v2401
  %2521 = vmatprep.subr.mxu0 %v2400
  %2522 = vmatpush1.msra.mxu0 %v2399
  %2523 = vmatprep.subr.mxu0 0.0
  %2524 = vmatpush2.msra.mxu0 0.0
  %2525 = vmatprep.subr.mxu0 0.0
  %2526 = vmatpush2.msra.mxu0 0.0
  %2527 = vmatprep.subr.mxu0 0.0
  %2528 = vmatpush2.msra.mxu0 0.0
  %2529 = vmatprep.subr.mxu0 0.0
  %2530 = vmatpush2.msra.mxu0 0.0
  %2531 = vmatprep.subr.mxu0 0.0
  %2532 = vmatpush2.msra.mxu0 0.0
  %2533 = vmatprep.subr.mxu0 0.0
  %2534 = vmatpush2.msra.mxu0 0.0
  %2535 = vmatprep.subr.mxu0 0.0
  %2536 = vmatpush2.msra.mxu0 0.0
  %2537 = vmatprep.subr.mxu0 0.0
  %2538 = vmatpush2.msra.mxu0 0.0
  %2539 = vmatprep.subr.mxu0 0.0
  %2540 = vmatpush2.msra.mxu0 0.0
  %2541 = vmatprep.subr.mxu0 0.0
  %2542 = vmatpush2.msra.mxu0 0.0
  %2543 = vmatprep.subr.mxu0 0.0
  %2544 = vmatpush2.msra.mxu0 0.0
  %2545 = vmatprep.subr.mxu0 0.0
  %2546 = vmatpush2.msra.mxu0 0.0
  %2547 = vmatprep.subr.mxu0 0.0
  %2548 = vmatpush2.msra.mxu0 0.0
  %2549 = vmatprep.subr.mxu0 0.0
  %2550 = vmatpush2.msra.mxu0 0.0
  %2551 = vmatprep.subr.mxu0 0.0
  %2552 = vmatpush2.msra.mxu0 0.0
  %2553 = vmatprep.subr.mxu0 0.0
  %2554 = vmatpush2.msra.mxu0 0.0
  %2555 = vmatprep.mubr.f32.mxu0 0.0
  %2556 = vmatmul.mubr.f32.gmra.mxu0 %v2489
  %v2557 = vpop.f32.mrf.mxu0
  %v2558 = vadd.f32 %v2483, %v2557
  %v2559 = vpop.f32.mrf.mxu0
  %v2560 = vadd.f32 %v2485, %v2559
  %2561 = vdwg.mxu0
  %v2562 = vld [vmem:[%s7] sm:$0x3]
  %v2564 = vlaneseq
  %v2565 = vshrl.u32 %v2564, 7
  %v2566 = vsub.s32 0, %v2565
  %v2567 = vrot.slane %v2562, %v2566
  %v2568 = vlaneseq
  %v2569 = vshrl.u32 %v2568, 7
  %v2570 = vsub.s32 1, %v2569
  %v2571 = vrot.slane %v2562, %v2570
  %v2574 = vadd.f32 %v2558, %v2567
  %v2575 = vadd.f32 %v2560, %v2571
  %v2576 = vmax.f32 %v2574, 0.0
  %v2577 = vmax.f32 %v2575, 0.0
  %v2578 = vld [vmem:[%s8] sm:$0xff]
  %v2579 = vld [vmem:[%s8 + $0x8] sm:$0xff]
  %v2580 = vld [vmem:[%s8 + $0x10] sm:$0xff]
  %v2581 = vld [vmem:[%s8 + $0x18] sm:$0xff]
  %v2582 = vld [vmem:[%s8 + $0x20] sm:$0xff]
  %v2583 = vld [vmem:[%s8 + $0x28] sm:$0xff]
  %v2584 = vld [vmem:[%s8 + $0x30] sm:$0xff]
  %v2585 = vld [vmem:[%s8 + $0x38] sm:$0xff]
  %v2586 = vld [vmem:[%s8 + $0x40] sm:$0xff]
  %v2587 = vld [vmem:[%s8 + $0x48] sm:$0xff]
  %v2588 = vld [vmem:[%s8 + $0x50] sm:$0xff]
  %v2589 = vld [vmem:[%s8 + $0x58] sm:$0xff]
  %v2590 = vld [vmem:[%s8 + $0x60] sm:$0xff]
  %v2591 = vld [vmem:[%s8 + $0x68] sm:$0xff]
  %v2592 = vld [vmem:[%s8 + $0x70] sm:$0xff]
  %v2593 = vld [vmem:[%s8 + $0x78] sm:$0xff]
  %v2594 = vld [vmem:[%s8 + $0x80] sm:$0xff]
  %v2595 = vld [vmem:[%s8 + $0x88] sm:$0xff]
  %v2596 = vld [vmem:[%s8 + $0x90] sm:$0xff]
  %v2597 = vld [vmem:[%s8 + $0x98] sm:$0xff]
  %v2598 = vld [vmem:[%s8 + $0xa0] sm:$0xff]
  %v2599 = vld [vmem:[%s8 + $0xa8] sm:$0xff]
  %v2600 = vld [vmem:[%s8 + $0xb0] sm:$0xff]
  %v2601 = vld [vmem:[%s8 + $0xb8] sm:$0xff]
  %v2602 = vld [vmem:[%s8 + $0xc0] sm:$0xff]
  %v2603 = vld [vmem:[%s8 + $0xc8] sm:$0xff]
  %v2604 = vld [vmem:[%s8 + $0xd0] sm:$0xff]
  %v2605 = vld [vmem:[%s8 + $0xd8] sm:$0xff]
  %v2606 = vld [vmem:[%s8 + $0xe0] sm:$0xff]
  %v2607 = vld [vmem:[%s8 + $0xe8] sm:$0xff]
  %v2608 = vld [vmem:[%s8 + $0xf0] sm:$0xff]
  %v2609 = vld [vmem:[%s8 + $0xf8] sm:$0xff]
  %v2610 = vld [vmem:[%s9] sm:$0x1]
  %v2612 = vlaneseq
  %v2613 = vshrl.u32 %v2612, 7
  %v2614 = vsub.s32 0, %v2613
  %v2615 = vrot.slane %v2610, %v2614
  %2617 = vmatprep.subr.mxu0 0.0
  %2618 = vmatpush1.msra.mxu0 %v2593
  %2619 = vmatprep.subr.mxu0 0.0
  %2620 = vmatpush1.msra.mxu0 %v2592
  %2621 = vmatprep.subr.mxu0 0.0
  %2622 = vmatpush1.msra.mxu0 %v2591
  %2623 = vmatprep.subr.mxu0 0.0
  %2624 = vmatpush1.msra.mxu0 %v2590
  %2625 = vmatprep.subr.mxu0 0.0
  %2626 = vmatpush1.msra.mxu0 %v2589
  %2627 = vmatprep.subr.mxu0 0.0
  %2628 = vmatpush1.msra.mxu0 %v2588
  %2629 = vmatprep.subr.mxu0 0.0
  %2630 = vmatpush1.msra.mxu0 %v2587
  %2631 = vmatprep.subr.mxu0 0.0
  %2632 = vmatpush1.msra.mxu0 %v2586
  %2633 = vmatprep.subr.mxu0 0.0
  %2634 = vmatpush1.msra.mxu0 %v2585
  %2635 = vmatprep.subr.mxu0 0.0
  %2636 = vmatpush1.msra.mxu0 %v2584
  %2637 = vmatprep.subr.mxu0 0.0
  %2638 = vmatpush1.msra.mxu0 %v2583
  %2639 = vmatprep.subr.mxu0 0.0
  %2640 = vmatpush1.msra.mxu0 %v2582
  %2641 = vmatprep.subr.mxu0 0.0
  %2642 = vmatpush1.msra.mxu0 %v2581
  %2643 = vmatprep.subr.mxu0 0.0
  %2644 = vmatpush1.msra.mxu0 %v2580
  %2645 = vmatprep.subr.mxu0 0.0
  %2646 = vmatpush1.msra.mxu0 %v2579
  %2647 = vmatprep.subr.mxu0 0.0
  %2648 = vmatpush1.msra.mxu0 %v2578
  %2649 = vmatprep.subr.mxu0 0.0
  %2650 = vmatpush2.msra.mxu0 %v2609
  %2651 = vmatprep.subr.mxu0 0.0
  %2652 = vmatpush2.msra.mxu0 %v2608
  %2653 = vmatprep.subr.mxu0 0.0
  %2654 = vmatpush2.msra.mxu0 %v2607
  %2655 = vmatprep.subr.mxu0 0.0
  %2656 = vmatpush2.msra.mxu0 %v2606
  %2657 = vmatprep.subr.mxu0 0.0
  %2658 = vmatpush2.msra.mxu0 %v2605
  %2659 = vmatprep.subr.mxu0 0.0
  %2660 = vmatpush2.msra.mxu0 %v2604
  %2661 = vmatprep.subr.mxu0 0.0
  %2662 = vmatpush2.msra.mxu0 %v2603
  %2663 = vmatprep.subr.mxu0 0.0
  %2664 = vmatpush2.msra.mxu0 %v2602
  %2665 = vmatprep.subr.mxu0 0.0
  %2666 = vmatpush2.msra.mxu0 %v2601
  %2667 = vmatprep.subr.mxu0 0.0
  %2668 = vmatpush2.msra.mxu0 %v2600
  %2669 = vmatprep.subr.mxu0 0.0
  %2670 = vmatpush2.msra.mxu0 %v2599
  %2671 = vmatprep.subr.mxu0 0.0
  %2672 = vmatpush2.msra.mxu0 %v2598
  %2673 = vmatprep.subr.mxu0 0.0
  %2674 = vmatpush2.msra.mxu0 %v2597
  %2675 = vmatprep.subr.mxu0 0.0
  %2676 = vmatpush2.msra.mxu0 %v2596
  %2677 = vmatprep.subr.mxu0 0.0
  %2678 = vmatpush2.msra.mxu0 %v2595
  %2679 = vmatprep.subr.mxu0 0.0
  %2680 = vmatpush2.msra.mxu0 %v2594
  %2681 = vmatprep.mubr.f32.mxu0 %v2577
  %2682 = vmatmul.mubr.f32.gmra.mxu0 %v2576
  %v2683 = vpop.f32.mrf.mxu0
  %v2684 = vadd.f32 %v2615, %v2683
  %v2685 = vpop.f32.mrf.mxu0
  %2686 = vdwg.mxu0
  %vm2687 = vcmask 257024
  %v2688 = vsel %vm2687, %v2684, 0.0
  %v2689 = vrot.slane %v2688, 4
  %v2690 = vadd.f32 %v2688, %v2689
  %v2691 = vrot.slane %v2690, 2
  %v2692 = vadd.f32 %v2690, %v2691
  %v2693 = vrot.slane %v2692, 1
  %v2694 = vadd.f32 %v2692, %v2693
  %v2695 = vrcp.pop 4.0
  %v2696 = vmul.f32 %v2694, %v2695
  %v2697 = vsub.f32 %v2684, %v2696
  %v2698 = vmul.f32 %v2697, %v2697
  %v2699 = vsel %vm2687, %v2698, 0.0
  %v2700 = vrot.slane %v2699, 4
  %v2701 = vadd.f32 %v2699, %v2700
  %v2702 = vrot.slane %v2701, 2
  %v2703 = vadd.f32 %v2701, %v2702
  %v2704 = vrot.slane %v2703, 1
  %v2705 = vadd.f32 %v2703, %v2704
  %v2706 = vmul.f32 %v2705, %v2695
  %v2707 = vadd.f32 %v2706, 1e-05
  %v2708 = vrsqrt.pop %v2707
  %v2709 = vmul.f32 %v2697, %v2708
  %v2710 = vld [vmem:[%s10] sm:$0x1]
  %v2712 = vlaneseq
  %v2713 = vshrl.u32 %v2712, 7
  %v2714 = vsub.s32 0, %v2713
  %v2715 = vrot.slane %v2710, %v2714
  %v2717 = vmul.f32 %v2709, %v2715
  %v2718 = vld [vmem:[%s11] sm:$0x1]
  %v2720 = vlaneseq
  %v2721 = vshrl.u32 %v2720, 7
  %v2722 = vsub.s32 0, %v2721
  %v2723 = vrot.slane %v2718, %v2722
  %v2725 = vadd.f32 %v2717, %v2723
  %v2726 = vmax.f32 %v2725, 0.0
  %v2727 = vld [vmem:[%s12] sm:$0xff]
  %v2728 = vld [vmem:[%s12 + $0x8] sm:$0xff]
  %v2729 = vld [vmem:[%s12 + $0x10] sm:$0xff]
  %v2730 = vld [vmem:[%s12 + $0x18] sm:$0xff]
  %v2731 = vld [vmem:[%s13] sm:$0x1]
  %v2733 = vlaneseq
  %v2734 = vshrl.u32 %v2733, 7
  %v2735 = vsub.s32 0, %v2734
  %v2736 = vrot.slane %v2731, %v2735
  %v2739 = vsel %vm2487, %v2726, 0
  %2741 = vmatprep.subr.mxu0 0.0
  %2742 = vmatpush1.msra.mxu0 0.0
  %2743 = vmatprep.subr.mxu0 0.0
  %2744 = vmatpush1.msra.mxu0 0.0
  %2745 = vmatprep.subr.mxu0 0.0
  %2746 = vmatpush1.msra.mxu0 0.0
  %2747 = vmatprep.subr.mxu0 0.0
  %2748 = vmatpush1.msra.mxu0 0.0
  %2749 = vmatprep.subr.mxu0 0.0
  %2750 = vmatpush1.msra.mxu0 0.0
  %2751 = vmatprep.subr.mxu0 0.0
  %2752 = vmatpush1.msra.mxu0 0.0
  %2753 = vmatprep.subr.mxu0 0.0
  %2754 = vmatpush1.msra.mxu0 0.0
  %2755 = vmatprep.subr.mxu0 0.0
  %2756 = vmatpush1.msra.mxu0 0.0
  %2757 = vmatprep.subr.mxu0 0.0
  %2758 = vmatpush1.msra.mxu0 0.0
  %2759 = vmatprep.subr.mxu0 0.0
  %2760 = vmatpush1.msra.mxu0 0.0
  %2761 = vmatprep.subr.mxu0 0.0
  %2762 = vmatpush1.msra.mxu0 0.0
  %2763 = vmatprep.subr.mxu0 0.0
  %2764 = vmatpush1.msra.mxu0 0.0
  %2765 = vmatprep.subr.mxu0 0.0
  %2766 = vmatpush1.msra.mxu0 %v2730
  %2767 = vmatprep.subr.mxu0 0.0
  %2768 = vmatpush1.msra.mxu0 %v2729
  %2769 = vmatprep.subr.mxu0 0.0
  %2770 = vmatpush1.msra.mxu0 %v2728
  %2771 = vmatprep.subr.mxu0 0.0
  %2772 = vmatpush1.msra.mxu0 %v2727
  %2773 = vmatprep.subr.mxu0 0.0
  %2774 = vmatpush2.msra.mxu0 0.0
  %2775 = vmatprep.subr.mxu0 0.0
  %2776 = vmatpush2.msra.mxu0 0.0
  %2777 = vmatprep.subr.mxu0 0.0
  %2778 = vmatpush2.msra.mxu0 0.0
  %2779 = vmatprep.subr.mxu0 0.0
  %2780 = vmatpush2.msra.mxu0 0.0
  %2781 = vmatprep.subr.mxu0 0.0
  %2782 = vmatpush2.msra.mxu0 0.0
  %2783 = vmatprep.subr.mxu0 0.0
  %2784 = vmatpush2.msra.mxu0 0.0
  %2785 = vmatprep.subr.mxu0 0.0
  %2786 = vmatpush2.msra.mxu0 0.0
  %2787 = vmatprep.subr.mxu0 0.0
  %2788 = vmatpush2.msra.mxu0 0.0
  %2789 = vmatprep.subr.mxu0 0.0
  %2790 = vmatpush2.msra.mxu0 0.0
  %2791 = vmatprep.subr.mxu0 0.0
  %2792 = vmatpush2.msra.mxu0 0.0
  %2793 = vmatprep.subr.mxu0 0.0
  %2794 = vmatpush2.msra.mxu0 0.0
  %2795 = vmatprep.subr.mxu0 0.0
  %2796 = vmatpush2.msra.mxu0 0.0
  %2797 = vmatprep.subr.mxu0 0.0
  %2798 = vmatpush2.msra.mxu0 0.0
  %2799 = vmatprep.subr.mxu0 0.0
  %2800 = vmatpush2.msra.mxu0 0.0
  %2801 = vmatprep.subr.mxu0 0.0
  %2802 = vmatpush2.msra.mxu0 0.0
  %2803 = vmatprep.subr.mxu0 0.0
  %2804 = vmatpush2.msra.mxu0 0.0
  %2805 = vmatprep.mubr.f32.mxu0 0.0
  %2806 = vmatmul.mubr.f32.gmra.mxu0 %v2739
  %v2807 = vpop.f32.mrf.mxu0
  %v2808 = vadd.f32 %v2736, %v2807
  %v2809 = vpop.f32.mrf.mxu0
  %2810 = vdwg.mxu0
  %2812 = vrot.lane.b32.xlu0 %v2808, 32
  %v2813 = vpop.permute.xlu0 %2812
  %v2815 = vsel %vm2487, %v2726, %v2813
  %vm2816 = vcmask 302080
  %v2817 = vsel %vm2816, %v2815, 0.0
  %2818 = vst [vmem:[%s14] sm:$0xf] %v2817
  // Predicated region
  $region58: #{cluster_forward.1} parent=0 // pred_check
    _
  $region59: #{cluster_forward.1} parent=0 // pred_check_branch
    %2820 = sbr.rel (0) target = $region61
  $region60: #{cluster_forward.1} parent=0 // pred_region
    _
  $region61: #{cluster_forward.1} parent=0 // pred_fallthru
    _
  // Predicated region
  $region62: #{cluster_forward.1} parent=0 // pred_check
    _
  $region63: #{cluster_forward.1} parent=0 // pred_check_branch
    %2822 = sbr.rel (0) target = $region65
  $region64: #{cluster_forward.1} parent=0 // pred_region
    _
  $region65: #{cluster_forward.1} parent=0 // pred_fallthru
    _

</llo_original>
